<compile_context>
chip_gen: v7x
topology: tpu7x:2x2x1
jax: 0.10.0
libtpu: 0.0.40
codegen_flags: <defaults>
</compile_context>

<pallas_src>
import functools

import jax
import jax.numpy as jnp
from jax.experimental import pallas as pl
from jax.experimental.pallas import tpu as pltpu


def residual_block_kernel(xpf_ref, mask_ref,
                          w1_ref, g1_ref, be1_ref,
                          alpha_ref,
                          w2_ref, g2_ref, be2_ref,
                          out_ref, *, wp, n_valid):
    """
    xpf_ref : (Cp, M)      zero-padded input; channels on sublanes, flat padded spatial on lanes
    mask_ref: (1, M)       1.0 at real (interior) pixels, 0.0 at halo / lane-padding positions
    w*_ref  : (9, Cp, Cp)  conv weights per tap t = dy*3+dx, w[t, co, ci]
    g/be    : (Cp, 1)      BN gamma, BN beta (per channel)
    alpha   : (1,) SMEM    PReLU slope (single shared parameter)
    out_ref : (Cp, M)      x + residual, same padded-flat layout (wrapper drops the halo)
    """
    cp, m = xpf_ref.shape
    eps = 1e-5
    inv_cnt = 1.0 / float(n_valid)

    x = xpf_ref[...]
    mask = mask_ref[...]
    alpha = alpha_ref[0]

    def conv3x3(a, w_ref):
        # Tap-accumulated conv: 9 small (Cp,Cp)@(Cp,M) MXU matmuls, no im2col slab.
        # Tap offset in flat padded space is (dy-1)*wp + (dx-1); rolling by the negated
        # offset gives shifted[ci, q] == a[ci, q + off].  Roll wrap-around only touches
        # halo / lane-padding positions, which are masked downstream or dropped.
        acc = jnp.dot(w_ref[4], a, preferred_element_type=jnp.float32)   # center tap
        for dy in range(3):
            for dx in range(3):
                t = dy * 3 + dx
                if t == 4:
                    continue
                off = (dy - 1) * wp + (dx - 1)
                shifted = pltpu.roll(a, shift=(-off) % m, axis=1)
                acc = acc + jnp.dot(w_ref[t], shifted,
                                    preferred_element_type=jnp.float32)
        return acc

    def bn_center(y):
        # Training-mode BN stats, two-pass (numerically robust), masked to valid pixels.
        mean = jnp.sum(y * mask, axis=1, keepdims=True) * inv_cnt        # (Cp, 1)
        c = (y - mean) * mask                                            # centered, masked
        var = jnp.sum(c * c, axis=1, keepdims=True) * inv_cnt            # biased variance
        return c, var

    # conv1 -> bn1 -> prelu.  (Conv bias omitted: it cancels exactly in y - mean.)
    # The mask factor re-zeros the halo so conv2 sees proper zero padding.
    y = conv3x3(x, w1_ref)
    c1, v1 = bn_center(y)
    h = c1 * (g1_ref[...] * jax.lax.rsqrt(v1 + eps)) + be1_ref[...]
    h = jnp.where(h >= 0.0, h, alpha * h) * mask

    # conv2 -> bn2 -> residual add (halo / lane-pad positions are don't-care; dropped).
    z = conv3x3(h, w2_ref)
    c2, v2 = bn_center(z)
    out_ref[...] = x + c2 * (g2_ref[...] * jax.lax.rsqrt(v2 + eps)) + be2_ref[...]


def residual_block(x_nhwc, params):
    N, H, W, C = x_nhwc.shape
    Hp, Wp = H + 2, W + 2
    Cp = ((C + 7) // 8) * 8                    # channels -> sublanes (multiple of 8)
    M = N * Hp * Wp
    Mp = ((M + 127) // 128) * 128              # flat padded spatial -> lanes (multiple of 128)

    # Roll-based im2col invariant: the farthest tap of the last interior pixel stays
    # inside the flat buffer (so no wrap-around ever reaches a valid output position).
    assert (N - 1) * Hp * Wp + (H + 1) * Wp + (W + 1) <= Mp - 1

    # NHWC -> (Cp, Mp): channels first (zero-padded to Cp), spatial zero-padded by 1 and
    # flattened (n, hp, wp) onto the lane axis (zero-padded up to Mp).
    x_c = jnp.transpose(x_nhwc, (3, 0, 1, 2))                        # (C, N, H, W)
    xpf = jnp.pad(x_c, ((0, Cp - C), (0, 0), (1, 1), (1, 1)))        # (Cp, N, Hp, Wp)
    xpf = jnp.pad(xpf.reshape(Cp, M), ((0, 0), (0, Mp - M)))         # (Cp, Mp)

    # interior-pixel mask in the same flat layout
    core = jnp.pad(jnp.ones((H, W), jnp.float32), ((1, 1), (1, 1)))  # (Hp, Wp)
    mask = jnp.tile(core.reshape(1, Hp * Wp), (N, 1)).reshape(1, M)
    mask = jnp.pad(mask, ((0, 0), (0, Mp - M)))                      # (1, Mp)

    def w_taps(w):  # OIHW -> (9, Cp, Cp): [t = dy*3+dx, co, ci]
        wt = jnp.transpose(jnp.asarray(w, jnp.float32), (2, 3, 0, 1))   # (dy, dx, co, ci)
        wt = jnp.pad(wt, ((0, 0), (0, 0), (0, Cp - C), (0, Cp - C)))
        return wt.reshape(9, Cp, Cp)

    def cvec(v):    # per-channel vector -> (Cp, 1)
        return jnp.pad(jnp.asarray(v, jnp.float32).reshape(C, 1), ((0, Cp - C), (0, 0)))

    kern = functools.partial(residual_block_kernel, wp=Wp, n_valid=N * H * W)

    # Generation-aware scoped-VMEM budget.  grid=() => no double-buffering, so the
    # footprint is just the live full-width arrays (x, out, y/h, z, centered, temps)
    # plus tiny weights/vectors and fixed headroom for Mosaic internal scratch.
    try:
        physical_vmem = int(pltpu.get_tpu_info().vmem_capacity_bytes)
    except Exception:  # pragma: no cover - conservative fallback
        physical_vmem = 128 * 2**20
    ceiling = int(physical_vmem * 0.8)              # ~51 MiB on v7x, ~102 MiB on v5e/v6e
    est = 8 * Cp * Mp * 4 + 2 * 9 * Cp * 128 * 4 + (4 << 20)
    vmem_limit = int(min(ceiling, max(est, 32 * 2**20)))

    vmem = pl.BlockSpec(memory_space=pltpu.MemorySpace.VMEM)
    smem = pl.BlockSpec(memory_space=pltpu.MemorySpace.SMEM)

    # NOTE: params["cb1"] / params["cb2"] (conv biases) are intentionally NOT passed:
    # a per-channel constant added before training-mode BatchNorm cancels exactly.
    out_pf = pl.pallas_call(
        kern,
        out_shape=jax.ShapeDtypeStruct((Cp, Mp), jnp.float32),
        in_specs=[vmem, vmem,
                  vmem, vmem, vmem,
                  smem,
                  vmem, vmem, vmem],
        out_specs=vmem,
        compiler_params=pltpu.CompilerParams(vmem_limit_bytes=vmem_limit),
    )(xpf, mask,
      w_taps(params["w1"]), cvec(params["g1"]), cvec(params["be1"]),
      jnp.asarray(params["alpha"], jnp.float32).reshape(1),
      w_taps(params["w2"]), cvec(params["g2"]), cvec(params["be2"]))

    # back to NHWC, dropping channel / halo / lane padding
    out = out_pf[:C, :M].reshape(C, N, Hp, Wp)[:, :, 1:H + 1, 1:W + 1]
    return jnp.transpose(out, (1, 2, 3, 0))


def ref_residual_block(x_nhwc, params):
    """Pure-JAX reference (matches PyTorch training-mode forward, WITH conv biases)."""
    dn = ("NHWC", "HWIO", "NHWC")
    eps = 1e-5

    def bn(y, g, b):
        mean = jnp.mean(y, axis=(0, 1, 2))
        var = jnp.mean((y - mean) ** 2, axis=(0, 1, 2))
        return (y - mean) * jax.lax.rsqrt(var + eps) * g + b

    w1 = jnp.transpose(params["w1"], (2, 3, 1, 0))
    w2 = jnp.transpose(params["w2"], (2, 3, 1, 0))

    y = jax.lax.conv_general_dilated(x_nhwc, w1, (1, 1), "SAME",
                                     dimension_numbers=dn) + params["cb1"]
    y = bn(y, params["g1"], params["be1"])
    y = jnp.where(y >= 0.0, y, params["alpha"] * y)
    z = jax.lax.conv_general_dilated(y, w2, (1, 1), "SAME",
                                     dimension_numbers=dn) + params["cb2"]
    z = bn(z, params["g2"], params["be2"])
    return x_nhwc + z


if __name__ == "__main__":
    N, C, H, W = 2, 4, 16, 16
    key = jax.random.PRNGKey(0)
    kx, kw1, kb1, kw2, kb2 = jax.random.split(key, 5)

    # PyTorch-style NCHW input, converted to NHWC for the wrapper.
    x_nchw = jax.random.normal(kx, (N, C, H, W), dtype=jnp.float32)
    x_nhwc = jnp.transpose(x_nchw, (0, 2, 3, 1))

    bound = 1.0 / jnp.sqrt(jnp.float32(C * 3 * 3))
    params = {
        "w1": jax.random.uniform(kw1, (C, C, 3, 3), jnp.float32, -bound, bound),  # OIHW
        "cb1": jax.random.uniform(kb1, (C,), jnp.float32, -bound, bound),
        "g1": jnp.ones((C,), jnp.float32),
        "be1": jnp.zeros((C,), jnp.float32),
        "alpha": jnp.float32(0.25),  # nn.PReLU() default: single shared slope
        "w2": jax.random.uniform(kw2, (C, C, 3, 3), jnp.float32, -bound, bound),
        "cb2": jax.random.uniform(kb2, (C,), jnp.float32, -bound, bound),
        "g2": jnp.ones((C,), jnp.float32),
        "be2": jnp.zeros((C,), jnp.float32),
    }

    out = residual_block(x_nhwc, params)
    out = jax.block_until_ready(out)

    ref = ref_residual_block(x_nhwc, params)
    assert out.shape == (N, H, W, C)
    assert jnp.allclose(out, ref, rtol=1e-4, atol=1e-4), "mismatch vs JAX reference"

    print("KERNEL_OK")
</pallas_src>

<mosaic_0001>
module attributes {stable_mosaic.version = 11 : i64} {
  func.func @residual_block_kernel(%arg0: memref<8x768xf32, #tpu.memory_space<vmem>>, %arg1: memref<1x768xf32, #tpu.memory_space<vmem>>, %arg2: memref<9x8x8xf32, #tpu.memory_space<vmem>>, %arg3: memref<8x1xf32, #tpu.memory_space<vmem>>, %arg4: memref<8x1xf32, #tpu.memory_space<vmem>>, %arg5: memref<1xf32, #tpu.memory_space<smem>>, %arg6: memref<9x8x8xf32, #tpu.memory_space<vmem>>, %arg7: memref<8x1xf32, #tpu.memory_space<vmem>>, %arg8: memref<8x1xf32, #tpu.memory_space<vmem>>, %arg9: memref<8x768xf32, #tpu.memory_space<vmem>>) attributes {dimension_semantics = [], scalar_prefetch = 0 : i64, scratch_operands = 0 : i64, tpu.core_type = #tpu.core_type<tc>} {
    %c0 = arith.constant 0 : index
    %c0_0 = arith.constant 0 : index
    %0 = vector.load %arg0[%c0, %c0_0] : memref<8x768xf32, #tpu.memory_space<vmem>>, vector<8x768xf32>
    %c0_1 = arith.constant 0 : index
    %c0_2 = arith.constant 0 : index
    %1 = vector.load %arg1[%c0_1, %c0_2] : memref<1x768xf32, #tpu.memory_space<vmem>>, vector<1x768xf32>
    %c0_3 = arith.constant 0 : index
    %2 = memref.load %arg5[%c0_3] : memref<1xf32, #tpu.memory_space<smem>>
    %c4 = arith.constant 4 : index
    %c0_4 = arith.constant 0 : index
    %c0_5 = arith.constant 0 : index
    %3 = vector.load %arg2[%c4, %c0_4, %c0_5] : memref<9x8x8xf32, #tpu.memory_space<vmem>>, vector<1x8x8xf32>
    %4 = vector.shape_cast %3 : vector<1x8x8xf32> to vector<8x8xf32>
    %cst = arith.constant dense<0.000000e+00> : vector<8x768xf32>
    %5 = tpu.matmul %4, %0, %cst {dimension_numbers = #tpu.dot_dimension_numbers<[1], [0], [0], [1], [0, 0, 1, 1], [], []>} : vector<8x8xf32>, vector<8x768xf32>, vector<8x768xf32> -> vector<8x768xf32>
    %c19_i32 = arith.constant 19 : i32
    %6 = tpu.dynamic_rotate %0 by %c19_i32 dim 1 : vector<8x768xf32>, i32 -> vector<8x768xf32>
    %c0_6 = arith.constant 0 : index
    %c0_7 = arith.constant 0 : index
    %c0_8 = arith.constant 0 : index
    %7 = vector.load %arg2[%c0_6, %c0_7, %c0_8] : memref<9x8x8xf32, #tpu.memory_space<vmem>>, vector<1x8x8xf32>
    %8 = vector.shape_cast %7 : vector<1x8x8xf32> to vector<8x8xf32>
    %cst_9 = arith.constant dense<0.000000e+00> : vector<8x768xf32>
    %9 = tpu.matmul %8, %6, %cst_9 {dimension_numbers = #tpu.dot_dimension_numbers<[1], [0], [0], [1], [0, 0, 1, 1], [], []>} : vector<8x8xf32>, vector<8x768xf32>, vector<8x768xf32> -> vector<8x768xf32>
    %10 = arith.addf %5, %9 : vector<8x768xf32>
    %c18_i32 = arith.constant 18 : i32
    %11 = tpu.dynamic_rotate %0 by %c18_i32 dim 1 : vector<8x768xf32>, i32 -> vector<8x768xf32>
    %c1 = arith.constant 1 : index
    %c0_10 = arith.constant 0 : index
    %c0_11 = arith.constant 0 : index
    %12 = vector.load %arg2[%c1, %c0_10, %c0_11] : memref<9x8x8xf32, #tpu.memory_space<vmem>>, vector<1x8x8xf32>
    %13 = vector.shape_cast %12 : vector<1x8x8xf32> to vector<8x8xf32>
    %cst_12 = arith.constant dense<0.000000e+00> : vector<8x768xf32>
    %14 = tpu.matmul %13, %11, %cst_12 {dimension_numbers = #tpu.dot_dimension_numbers<[1], [0], [0], [1], [0, 0, 1, 1], [], []>} : vector<8x8xf32>, vector<8x768xf32>, vector<8x768xf32> -> vector<8x768xf32>
    %15 = arith.addf %10, %14 : vector<8x768xf32>
    %c17_i32 = arith.constant 17 : i32
    %16 = tpu.dynamic_rotate %0 by %c17_i32 dim 1 : vector<8x768xf32>, i32 -> vector<8x768xf32>
    %c2 = arith.constant 2 : index
    %c0_13 = arith.constant 0 : index
    %c0_14 = arith.constant 0 : index
    %17 = vector.load %arg2[%c2, %c0_13, %c0_14] : memref<9x8x8xf32, #tpu.memory_space<vmem>>, vector<1x8x8xf32>
    %18 = vector.shape_cast %17 : vector<1x8x8xf32> to vector<8x8xf32>
    %cst_15 = arith.constant dense<0.000000e+00> : vector<8x768xf32>
    %19 = tpu.matmul %18, %16, %cst_15 {dimension_numbers = #tpu.dot_dimension_numbers<[1], [0], [0], [1], [0, 0, 1, 1], [], []>} : vector<8x8xf32>, vector<8x768xf32>, vector<8x768xf32> -> vector<8x768xf32>
    %20 = arith.addf %15, %19 : vector<8x768xf32>
    %c1_i32 = arith.constant 1 : i32
    %21 = tpu.dynamic_rotate %0 by %c1_i32 dim 1 : vector<8x768xf32>, i32 -> vector<8x768xf32>
    %c3 = arith.constant 3 : index
    %c0_16 = arith.constant 0 : index
    %c0_17 = arith.constant 0 : index
    %22 = vector.load %arg2[%c3, %c0_16, %c0_17] : memref<9x8x8xf32, #tpu.memory_space<vmem>>, vector<1x8x8xf32>
    %23 = vector.shape_cast %22 : vector<1x8x8xf32> to vector<8x8xf32>
    %cst_18 = arith.constant dense<0.000000e+00> : vector<8x768xf32>
    %24 = tpu.matmul %23, %21, %cst_18 {dimension_numbers = #tpu.dot_dimension_numbers<[1], [0], [0], [1], [0, 0, 1, 1], [], []>} : vector<8x8xf32>, vector<8x768xf32>, vector<8x768xf32> -> vector<8x768xf32>
    %25 = arith.addf %20, %24 : vector<8x768xf32>
    %c767_i32 = arith.constant 767 : i32
    %26 = tpu.dynamic_rotate %0 by %c767_i32 dim 1 : vector<8x768xf32>, i32 -> vector<8x768xf32>
    %c5 = arith.constant 5 : index
    %c0_19 = arith.constant 0 : index
    %c0_20 = arith.constant 0 : index
    %27 = vector.load %arg2[%c5, %c0_19, %c0_20] : memref<9x8x8xf32, #tpu.memory_space<vmem>>, vector<1x8x8xf32>
    %28 = vector.shape_cast %27 : vector<1x8x8xf32> to vector<8x8xf32>
    %cst_21 = arith.constant dense<0.000000e+00> : vector<8x768xf32>
    %29 = tpu.matmul %28, %26, %cst_21 {dimension_numbers = #tpu.dot_dimension_numbers<[1], [0], [0], [1], [0, 0, 1, 1], [], []>} : vector<8x8xf32>, vector<8x768xf32>, vector<8x768xf32> -> vector<8x768xf32>
    %30 = arith.addf %25, %29 : vector<8x768xf32>
    %c751_i32 = arith.constant 751 : i32
    %31 = tpu.dynamic_rotate %0 by %c751_i32 dim 1 : vector<8x768xf32>, i32 -> vector<8x768xf32>
    %c6 = arith.constant 6 : index
    %c0_22 = arith.constant 0 : index
    %c0_23 = arith.constant 0 : index
    %32 = vector.load %arg2[%c6, %c0_22, %c0_23] : memref<9x8x8xf32, #tpu.memory_space<vmem>>, vector<1x8x8xf32>
    %33 = vector.shape_cast %32 : vector<1x8x8xf32> to vector<8x8xf32>
    %cst_24 = arith.constant dense<0.000000e+00> : vector<8x768xf32>
    %34 = tpu.matmul %33, %31, %cst_24 {dimension_numbers = #tpu.dot_dimension_numbers<[1], [0], [0], [1], [0, 0, 1, 1], [], []>} : vector<8x8xf32>, vector<8x768xf32>, vector<8x768xf32> -> vector<8x768xf32>
    %35 = arith.addf %30, %34 : vector<8x768xf32>
    %c750_i32 = arith.constant 750 : i32
    %36 = tpu.dynamic_rotate %0 by %c750_i32 dim 1 : vector<8x768xf32>, i32 -> vector<8x768xf32>
    %c7 = arith.constant 7 : index
    %c0_25 = arith.constant 0 : index
    %c0_26 = arith.constant 0 : index
    %37 = vector.load %arg2[%c7, %c0_25, %c0_26] : memref<9x8x8xf32, #tpu.memory_space<vmem>>, vector<1x8x8xf32>
    %38 = vector.shape_cast %37 : vector<1x8x8xf32> to vector<8x8xf32>
    %cst_27 = arith.constant dense<0.000000e+00> : vector<8x768xf32>
    %39 = tpu.matmul %38, %36, %cst_27 {dimension_numbers = #tpu.dot_dimension_numbers<[1], [0], [0], [1], [0, 0, 1, 1], [], []>} : vector<8x8xf32>, vector<8x768xf32>, vector<8x768xf32> -> vector<8x768xf32>
    %40 = arith.addf %35, %39 : vector<8x768xf32>
    %c749_i32 = arith.constant 749 : i32
    %41 = tpu.dynamic_rotate %0 by %c749_i32 dim 1 : vector<8x768xf32>, i32 -> vector<8x768xf32>
    %c8 = arith.constant 8 : index
    %c0_28 = arith.constant 0 : index
    %c0_29 = arith.constant 0 : index
    %42 = vector.load %arg2[%c8, %c0_28, %c0_29] : memref<9x8x8xf32, #tpu.memory_space<vmem>>, vector<1x8x8xf32>
    %43 = vector.shape_cast %42 : vector<1x8x8xf32> to vector<8x8xf32>
    %cst_30 = arith.constant dense<0.000000e+00> : vector<8x768xf32>
    %44 = tpu.matmul %43, %41, %cst_30 {dimension_numbers = #tpu.dot_dimension_numbers<[1], [0], [0], [1], [0, 0, 1, 1], [], []>} : vector<8x8xf32>, vector<8x768xf32>, vector<8x768xf32> -> vector<8x768xf32>
    %45 = arith.addf %40, %44 : vector<8x768xf32>
    %46 = vector.broadcast %1 : vector<1x768xf32> to vector<8x768xf32>
    %47 = arith.mulf %45, %46 : vector<8x768xf32>
    %cst_31 = arith.constant dense<0.000000e+00> : vector<8xf32>
    %48 = vector.multi_reduction <add>, %47, %cst_31 [1] : vector<8x768xf32> to vector<8xf32>
    %49 = vector.shape_cast %48 : vector<8xf32> to vector<8x1xf32>
    %cst_32 = arith.constant 0.001953125 : f32
    %50 = vector.broadcast %cst_32 : f32 to vector<8x1xf32>
    %51 = arith.mulf %49, %50 : vector<8x1xf32>
    %52 = vector.broadcast %51 : vector<8x1xf32> to vector<8x768xf32>
    %53 = arith.subf %45, %52 : vector<8x768xf32>
    %54 = vector.broadcast %1 : vector<1x768xf32> to vector<8x768xf32>
    %55 = arith.mulf %53, %54 : vector<8x768xf32>
    %56 = arith.mulf %55, %55 : vector<8x768xf32>
    %cst_33 = arith.constant dense<0.000000e+00> : vector<8xf32>
    %57 = vector.multi_reduction <add>, %56, %cst_33 [1] : vector<8x768xf32> to vector<8xf32>
    %58 = vector.shape_cast %57 : vector<8xf32> to vector<8x1xf32>
    %cst_34 = arith.constant 0.001953125 : f32
    %59 = vector.broadcast %cst_34 : f32 to vector<8x1xf32>
    %60 = arith.mulf %58, %59 : vector<8x1xf32>
    %c0_35 = arith.constant 0 : index
    %c0_36 = arith.constant 0 : index
    %61 = vector.load %arg3[%c0_35, %c0_36] : memref<8x1xf32, #tpu.memory_space<vmem>>, vector<8x1xf32>
    %cst_37 = arith.constant 9.99999974E-6 : f32
    %62 = vector.broadcast %cst_37 : f32 to vector<8x1xf32>
    %63 = arith.addf %60, %62 : vector<8x1xf32>
    %64 = math.rsqrt %63 : vector<8x1xf32>
    %65 = arith.mulf %61, %64 : vector<8x1xf32>
    %66 = vector.broadcast %65 : vector<8x1xf32> to vector<8x768xf32>
    %67 = arith.mulf %55, %66 : vector<8x768xf32>
    %c0_38 = arith.constant 0 : index
    %c0_39 = arith.constant 0 : index
    %68 = vector.load %arg4[%c0_38, %c0_39] : memref<8x1xf32, #tpu.memory_space<vmem>>, vector<8x1xf32>
    %69 = vector.broadcast %68 : vector<8x1xf32> to vector<8x768xf32>
    %70 = arith.addf %67, %69 : vector<8x768xf32>
    %cst_40 = arith.constant 0.000000e+00 : f32
    %71 = vector.broadcast %cst_40 : f32 to vector<8x768xf32>
    %72 = arith.cmpf oge, %70, %71 : vector<8x768xf32>
    %73 = vector.broadcast %2 : f32 to vector<8x768xf32>
    %74 = arith.mulf %73, %70 : vector<8x768xf32>
    %75 = arith.select %72, %70, %74 : vector<8x768xi1>, vector<8x768xf32>
    %76 = vector.broadcast %1 : vector<1x768xf32> to vector<8x768xf32>
    %77 = arith.mulf %75, %76 : vector<8x768xf32>
    %c4_41 = arith.constant 4 : index
    %c0_42 = arith.constant 0 : index
    %c0_43 = arith.constant 0 : index
    %78 = vector.load %arg6[%c4_41, %c0_42, %c0_43] : memref<9x8x8xf32, #tpu.memory_space<vmem>>, vector<1x8x8xf32>
    %79 = vector.shape_cast %78 : vector<1x8x8xf32> to vector<8x8xf32>
    %cst_44 = arith.constant dense<0.000000e+00> : vector<8x768xf32>
    %80 = tpu.matmul %79, %77, %cst_44 {dimension_numbers = #tpu.dot_dimension_numbers<[1], [0], [0], [1], [0, 0, 1, 1], [], []>} : vector<8x8xf32>, vector<8x768xf32>, vector<8x768xf32> -> vector<8x768xf32>
    %c19_i32_45 = arith.constant 19 : i32
    %81 = tpu.dynamic_rotate %77 by %c19_i32_45 dim 1 : vector<8x768xf32>, i32 -> vector<8x768xf32>
    %c0_46 = arith.constant 0 : index
    %c0_47 = arith.constant 0 : index
    %c0_48 = arith.constant 0 : index
    %82 = vector.load %arg6[%c0_46, %c0_47, %c0_48] : memref<9x8x8xf32, #tpu.memory_space<vmem>>, vector<1x8x8xf32>
    %83 = vector.shape_cast %82 : vector<1x8x8xf32> to vector<8x8xf32>
    %cst_49 = arith.constant dense<0.000000e+00> : vector<8x768xf32>
    %84 = tpu.matmul %83, %81, %cst_49 {dimension_numbers = #tpu.dot_dimension_numbers<[1], [0], [0], [1], [0, 0, 1, 1], [], []>} : vector<8x8xf32>, vector<8x768xf32>, vector<8x768xf32> -> vector<8x768xf32>
    %85 = arith.addf %80, %84 : vector<8x768xf32>
    %c18_i32_50 = arith.constant 18 : i32
    %86 = tpu.dynamic_rotate %77 by %c18_i32_50 dim 1 : vector<8x768xf32>, i32 -> vector<8x768xf32>
    %c1_51 = arith.constant 1 : index
    %c0_52 = arith.constant 0 : index
    %c0_53 = arith.constant 0 : index
    %87 = vector.load %arg6[%c1_51, %c0_52, %c0_53] : memref<9x8x8xf32, #tpu.memory_space<vmem>>, vector<1x8x8xf32>
    %88 = vector.shape_cast %87 : vector<1x8x8xf32> to vector<8x8xf32>
    %cst_54 = arith.constant dense<0.000000e+00> : vector<8x768xf32>
    %89 = tpu.matmul %88, %86, %cst_54 {dimension_numbers = #tpu.dot_dimension_numbers<[1], [0], [0], [1], [0, 0, 1, 1], [], []>} : vector<8x8xf32>, vector<8x768xf32>, vector<8x768xf32> -> vector<8x768xf32>
    %90 = arith.addf %85, %89 : vector<8x768xf32>
    %c17_i32_55 = arith.constant 17 : i32
    %91 = tpu.dynamic_rotate %77 by %c17_i32_55 dim 1 : vector<8x768xf32>, i32 -> vector<8x768xf32>
    %c2_56 = arith.constant 2 : index
    %c0_57 = arith.constant 0 : index
    %c0_58 = arith.constant 0 : index
    %92 = vector.load %arg6[%c2_56, %c0_57, %c0_58] : memref<9x8x8xf32, #tpu.memory_space<vmem>>, vector<1x8x8xf32>
    %93 = vector.shape_cast %92 : vector<1x8x8xf32> to vector<8x8xf32>
    %cst_59 = arith.constant dense<0.000000e+00> : vector<8x768xf32>
    %94 = tpu.matmul %93, %91, %cst_59 {dimension_numbers = #tpu.dot_dimension_numbers<[1], [0], [0], [1], [0, 0, 1, 1], [], []>} : vector<8x8xf32>, vector<8x768xf32>, vector<8x768xf32> -> vector<8x768xf32>
    %95 = arith.addf %90, %94 : vector<8x768xf32>
    %c1_i32_60 = arith.constant 1 : i32
    %96 = tpu.dynamic_rotate %77 by %c1_i32_60 dim 1 : vector<8x768xf32>, i32 -> vector<8x768xf32>
    %c3_61 = arith.constant 3 : index
    %c0_62 = arith.constant 0 : index
    %c0_63 = arith.constant 0 : index
    %97 = vector.load %arg6[%c3_61, %c0_62, %c0_63] : memref<9x8x8xf32, #tpu.memory_space<vmem>>, vector<1x8x8xf32>
    %98 = vector.shape_cast %97 : vector<1x8x8xf32> to vector<8x8xf32>
    %cst_64 = arith.constant dense<0.000000e+00> : vector<8x768xf32>
    %99 = tpu.matmul %98, %96, %cst_64 {dimension_numbers = #tpu.dot_dimension_numbers<[1], [0], [0], [1], [0, 0, 1, 1], [], []>} : vector<8x8xf32>, vector<8x768xf32>, vector<8x768xf32> -> vector<8x768xf32>
    %100 = arith.addf %95, %99 : vector<8x768xf32>
    %c767_i32_65 = arith.constant 767 : i32
    %101 = tpu.dynamic_rotate %77 by %c767_i32_65 dim 1 : vector<8x768xf32>, i32 -> vector<8x768xf32>
    %c5_66 = arith.constant 5 : index
    %c0_67 = arith.constant 0 : index
    %c0_68 = arith.constant 0 : index
    %102 = vector.load %arg6[%c5_66, %c0_67, %c0_68] : memref<9x8x8xf32, #tpu.memory_space<vmem>>, vector<1x8x8xf32>
    %103 = vector.shape_cast %102 : vector<1x8x8xf32> to vector<8x8xf32>
    %cst_69 = arith.constant dense<0.000000e+00> : vector<8x768xf32>
    %104 = tpu.matmul %103, %101, %cst_69 {dimension_numbers = #tpu.dot_dimension_numbers<[1], [0], [0], [1], [0, 0, 1, 1], [], []>} : vector<8x8xf32>, vector<8x768xf32>, vector<8x768xf32> -> vector<8x768xf32>
    %105 = arith.addf %100, %104 : vector<8x768xf32>
    %c751_i32_70 = arith.constant 751 : i32
    %106 = tpu.dynamic_rotate %77 by %c751_i32_70 dim 1 : vector<8x768xf32>, i32 -> vector<8x768xf32>
    %c6_71 = arith.constant 6 : index
    %c0_72 = arith.constant 0 : index
    %c0_73 = arith.constant 0 : index
    %107 = vector.load %arg6[%c6_71, %c0_72, %c0_73] : memref<9x8x8xf32, #tpu.memory_space<vmem>>, vector<1x8x8xf32>
    %108 = vector.shape_cast %107 : vector<1x8x8xf32> to vector<8x8xf32>
    %cst_74 = arith.constant dense<0.000000e+00> : vector<8x768xf32>
    %109 = tpu.matmul %108, %106, %cst_74 {dimension_numbers = #tpu.dot_dimension_numbers<[1], [0], [0], [1], [0, 0, 1, 1], [], []>} : vector<8x8xf32>, vector<8x768xf32>, vector<8x768xf32> -> vector<8x768xf32>
    %110 = arith.addf %105, %109 : vector<8x768xf32>
    %c750_i32_75 = arith.constant 750 : i32
    %111 = tpu.dynamic_rotate %77 by %c750_i32_75 dim 1 : vector<8x768xf32>, i32 -> vector<8x768xf32>
    %c7_76 = arith.constant 7 : index
    %c0_77 = arith.constant 0 : index
    %c0_78 = arith.constant 0 : index
    %112 = vector.load %arg6[%c7_76, %c0_77, %c0_78] : memref<9x8x8xf32, #tpu.memory_space<vmem>>, vector<1x8x8xf32>
    %113 = vector.shape_cast %112 : vector<1x8x8xf32> to vector<8x8xf32>
    %cst_79 = arith.constant dense<0.000000e+00> : vector<8x768xf32>
    %114 = tpu.matmul %113, %111, %cst_79 {dimension_numbers = #tpu.dot_dimension_numbers<[1], [0], [0], [1], [0, 0, 1, 1], [], []>} : vector<8x8xf32>, vector<8x768xf32>, vector<8x768xf32> -> vector<8x768xf32>
    %115 = arith.addf %110, %114 : vector<8x768xf32>
    %c749_i32_80 = arith.constant 749 : i32
    %116 = tpu.dynamic_rotate %77 by %c749_i32_80 dim 1 : vector<8x768xf32>, i32 -> vector<8x768xf32>
    %c8_81 = arith.constant 8 : index
    %c0_82 = arith.constant 0 : index
    %c0_83 = arith.constant 0 : index
    %117 = vector.load %arg6[%c8_81, %c0_82, %c0_83] : memref<9x8x8xf32, #tpu.memory_space<vmem>>, vector<1x8x8xf32>
    %118 = vector.shape_cast %117 : vector<1x8x8xf32> to vector<8x8xf32>
    %cst_84 = arith.constant dense<0.000000e+00> : vector<8x768xf32>
    %119 = tpu.matmul %118, %116, %cst_84 {dimension_numbers = #tpu.dot_dimension_numbers<[1], [0], [0], [1], [0, 0, 1, 1], [], []>} : vector<8x8xf32>, vector<8x768xf32>, vector<8x768xf32> -> vector<8x768xf32>
    %120 = arith.addf %115, %119 : vector<8x768xf32>
    %121 = vector.broadcast %1 : vector<1x768xf32> to vector<8x768xf32>
    %122 = arith.mulf %120, %121 : vector<8x768xf32>
    %cst_85 = arith.constant dense<0.000000e+00> : vector<8xf32>
    %123 = vector.multi_reduction <add>, %122, %cst_85 [1] : vector<8x768xf32> to vector<8xf32>
    %124 = vector.shape_cast %123 : vector<8xf32> to vector<8x1xf32>
    %cst_86 = arith.constant 0.001953125 : f32
    %125 = vector.broadcast %cst_86 : f32 to vector<8x1xf32>
    %126 = arith.mulf %124, %125 : vector<8x1xf32>
    %127 = vector.broadcast %126 : vector<8x1xf32> to vector<8x768xf32>
    %128 = arith.subf %120, %127 : vector<8x768xf32>
    %129 = vector.broadcast %1 : vector<1x768xf32> to vector<8x768xf32>
    %130 = arith.mulf %128, %129 : vector<8x768xf32>
    %131 = arith.mulf %130, %130 : vector<8x768xf32>
    %cst_87 = arith.constant dense<0.000000e+00> : vector<8xf32>
    %132 = vector.multi_reduction <add>, %131, %cst_87 [1] : vector<8x768xf32> to vector<8xf32>
    %133 = vector.shape_cast %132 : vector<8xf32> to vector<8x1xf32>
    %cst_88 = arith.constant 0.001953125 : f32
    %134 = vector.broadcast %cst_88 : f32 to vector<8x1xf32>
    %135 = arith.mulf %133, %134 : vector<8x1xf32>
    %c0_89 = arith.constant 0 : index
    %c0_90 = arith.constant 0 : index
    %136 = vector.load %arg7[%c0_89, %c0_90] : memref<8x1xf32, #tpu.memory_space<vmem>>, vector<8x1xf32>
    %cst_91 = arith.constant 9.99999974E-6 : f32
    %137 = vector.broadcast %cst_91 : f32 to vector<8x1xf32>
    %138 = arith.addf %135, %137 : vector<8x1xf32>
    %139 = math.rsqrt %138 : vector<8x1xf32>
    %140 = arith.mulf %136, %139 : vector<8x1xf32>
    %141 = vector.broadcast %140 : vector<8x1xf32> to vector<8x768xf32>
    %142 = arith.mulf %130, %141 : vector<8x768xf32>
    %143 = arith.addf %0, %142 : vector<8x768xf32>
    %c0_92 = arith.constant 0 : index
    %c0_93 = arith.constant 0 : index
    %144 = vector.load %arg8[%c0_92, %c0_93] : memref<8x1xf32, #tpu.memory_space<vmem>>, vector<8x1xf32>
    %145 = vector.broadcast %144 : vector<8x1xf32> to vector<8x768xf32>
    %146 = arith.addf %143, %145 : vector<8x768xf32>
    %c0_94 = arith.constant 0 : index
    %c0_95 = arith.constant 0 : index
    %147 = vector.load %arg9[%c0_94, %c0_95] : memref<8x768xf32, #tpu.memory_space<vmem>>, vector<8x768xf32>
    tpu.vector_store %arg9[%c0_94, %c0_95], %146 {strides = array<i32>} : memref<8x768xf32, #tpu.memory_space<vmem>>, vector<8x768xf32>,
    return
  }
}

</mosaic_0001>

<llo_original>
// kernel: tpu_custom_call.1
$region0: #{tpu_custom_call.1}
  #allocation0 [shape = 'u32[]', space=smem, size = 0x4, offset = 0x4, fixed_abs, tag = 'smem constant byte address 0x4 - core index']
  #allocation1 [shape = 'u32[144,128]{1,0:T(1,128)}', space=vmem, size = 0x12000, scoped, tag = 'internal scratch']
  #allocation2 [shape = 'f32[1]{0:T(128)S(6)}', space=smem, size = 0x200, scoped, tag = 'scoped memory for tpu_custom_call.1']
  %s0 = inlined_call_operand.vmem [shape: f32[8,768], index: 0, kind: input, shape index: {}]
  %s1 = inlined_call_operand.vmem [shape: f32[1,768], index: 1, kind: input, shape index: {}]
  %s2 = inlined_call_operand.vmem [shape: f32[9,8,8], index: 2, kind: input, shape index: {}]
  %s3 = inlined_call_operand.vmem [shape: f32[8,1], index: 3, kind: input, shape index: {}]
  %s4 = inlined_call_operand.vmem [shape: f32[8,1], index: 4, kind: input, shape index: {}]
  %s5 = inlined_call_operand.<no memory space> [shape: f32[1], index: 5, kind: input, shape index: {}]
  %s6 = inlined_call_operand.vmem [shape: f32[9,8,8], index: 6, kind: input, shape index: {}]
  %s7 = inlined_call_operand.vmem [shape: f32[8,1], index: 7, kind: input, shape index: {}]
  %s8 = inlined_call_operand.vmem [shape: f32[8,1], index: 8, kind: input, shape index: {}]
  %s9 = inlined_call_operand.hbm [shape: f32[8,768], index: 9, kind: output, shape index: {}]
  %s10 = sld [smem:[#allocation0]]
  $region46: #{tpu_custom_call.1} parent=0
    _
  %s12 = ssub.s32 1, %s10
  %s13 = scalar_select 0, %s12, %s10
  %14 = sst [smem:[#allocation2]] %s5
  $region1: #{tpu_custom_call.1} parent=0
    #allocation3 [shape = 'u8[24576]{0}', space=vmem, size = 0x6000, scoped, tag = 'output window, operand 0, single buffered']
    #allocation4 [shape = 's32[1]{0}', space=sflag, size = 0x4, scoped, tag = 'scoped memory for tpu_custom_call.1']
    %15 = vsyncpa [#allocation4], 0
    // Predicated region
    $region2: #{tpu_custom_call.1} parent=1 // pred_check
      _
    $region3: #{tpu_custom_call.1} parent=1 // pred_check_branch
      %17 = sbr.rel (0) target = $region5
    $region4: #{tpu_custom_call.1} parent=1 // pred_region
      _
    $region5: #{tpu_custom_call.1} parent=1 // pred_fallthru
      _
    // Predicated region
    $region6: #{tpu_custom_call.1} parent=1 // pred_check
      _
    $region7: #{tpu_custom_call.1} parent=1 // pred_check_branch
      %19 = sbr.rel (0) target = $region9
    $region8: #{tpu_custom_call.1} parent=1 // pred_region
      _
    $region9: #{tpu_custom_call.1} parent=1 // pred_fallthru
      _
    // Predicated region
    $region10: #{tpu_custom_call.1} parent=1 // pred_check
      _
    $region11: #{tpu_custom_call.1} parent=1 // pred_check_branch
      %21 = sbr.rel (0) target = $region13
    $region12: #{tpu_custom_call.1} parent=1 // pred_region
      _
    $region13: #{tpu_custom_call.1} parent=1 // pred_fallthru
      _
    // Predicated region
    $region14: #{tpu_custom_call.1} parent=1 // pred_check
      _
    $region15: #{tpu_custom_call.1} parent=1 // pred_check_branch
      %23 = sbr.rel (0) target = $region17
    $region16: #{tpu_custom_call.1} parent=1 // pred_region
      _
    $region17: #{tpu_custom_call.1} parent=1 // pred_fallthru
      _
    // Predicated region
    $region18: #{tpu_custom_call.1} parent=1 // pred_check
      _
    $region19: #{tpu_custom_call.1} parent=1 // pred_check_branch
      %25 = sbr.rel (0) target = $region21
    $region20: #{tpu_custom_call.1} parent=1 // pred_region
      _
    $region21: #{tpu_custom_call.1} parent=1 // pred_fallthru
      _
    // Predicated region
    $region22: #{tpu_custom_call.1} parent=1 // pred_check
      _
    $region23: #{tpu_custom_call.1} parent=1 // pred_check_branch
      %27 = sbr.rel (0) target = $region25
    $region24: #{tpu_custom_call.1} parent=1 // pred_region
      _
    $region25: #{tpu_custom_call.1} parent=1 // pred_fallthru
      _
    // Predicated region
    $region26: #{tpu_custom_call.1} parent=1 // pred_check
      _
    $region27: #{tpu_custom_call.1} parent=1 // pred_check_branch
      %29 = sbr.rel (0) target = $region29
    $region28: #{tpu_custom_call.1} parent=1 // pred_region
      _
    $region29: #{tpu_custom_call.1} parent=1 // pred_fallthru
      _
    // Predicated region
    $region30: #{tpu_custom_call.1} parent=1 // pred_check
      _
    $region31: #{tpu_custom_call.1} parent=1 // pred_check_branch
      %31 = sbr.rel (0) target = $region33
    $region32: #{tpu_custom_call.1} parent=1 // pred_region
      _
    $region33: #{tpu_custom_call.1} parent=1 // pred_fallthru
      _
    // Predicated region
    $region34: #{tpu_custom_call.1} parent=1 // pred_check
      _
    $region35: #{tpu_custom_call.1} parent=1 // pred_check_branch
      %33 = sbr.rel (0) target = $region37
    $region36: #{tpu_custom_call.1} parent=1 // pred_region
      _
    $region37: #{tpu_custom_call.1} parent=1 // pred_fallthru
      _
    %v34 = vld [vmem:[%s0] sm:$0xff]
    %v35 = vld [vmem:[%s0 + $0x8] sm:$0xff]
    %v36 = vld [vmem:[%s0 + $0x10] sm:$0xff]
    %v37 = vld [vmem:[%s0 + $0x18] sm:$0xff]
    %v38 = vld [vmem:[%s0 + $0x20] sm:$0xff]
    %v39 = vld [vmem:[%s0 + $0x28] sm:$0xff]
    %v40 = vld [vmem:[%s1] sm:$0x3f]
    %s41 = sld [smem:[#allocation2]]
    %s42 = scalar_lea.vmem %s2, 32
    %v43 = vld [vmem:[%s42] sm:$0xff]
    %44 = vrot.lane.b32.xlu0 %v34, 19
    %v45 = vpop.permute.xlu0 %44
    %46 = vrot.lane.b32.xlu0 %v35, 19
    %v47 = vpop.permute.xlu0 %46
    %48 = vrot.lane.b32.xlu0 %v36, 19
    %v49 = vpop.permute.xlu0 %48
    %50 = vrot.lane.b32.xlu0 %v37, 19
    %v51 = vpop.permute.xlu0 %50
    %52 = vrot.lane.b32.xlu0 %v38, 19
    %v53 = vpop.permute.xlu0 %52
    %54 = vrot.lane.b32.xlu0 %v39, 19
    %v55 = vpop.permute.xlu0 %54
    %v56 = vlaneseq
    %v57 = vand.u32 %v56, 127
    %vm58 = vcmp.lt.s32.totalorder %v57, 19
    %v59 = vsel %vm58, %v53, %v55
    %v60 = vsel %vm58, %v51, %v53
    %v61 = vsel %vm58, %v49, %v51
    %v62 = vsel %vm58, %v47, %v49
    %v63 = vsel %vm58, %v45, %v47
    %v64 = vsel %vm58, %v55, %v45
    %v65 = vld [vmem:[%s2] sm:$0xff]
    %vm66 = vcmask 64512
    %v68 = vsel %vm66, %v65, 0
    %70 = vmatprep.subr.mxu0 %v63
    %71 = vmatpush1.msra.mxu0 %v64
    %72 = vmatprep.subr.mxu0 0.0
    %73 = vmatpush1.msra.mxu0 0.0
    %74 = vmatprep.subr.mxu0 0.0
    %75 = vmatpush1.msra.mxu0 0.0
    %76 = vmatprep.subr.mxu0 0.0
    %77 = vmatpush1.msra.mxu0 0.0
    %78 = vmatprep.subr.mxu0 0.0
    %79 = vmatpush1.msra.mxu0 0.0
    %80 = vmatprep.subr.mxu0 0.0
    %81 = vmatpush1.msra.mxu0 0.0
    %82 = vmatprep.subr.mxu0 0.0
    %83 = vmatpush1.msra.mxu0 0.0
    %84 = vmatprep.subr.mxu0 0.0
    %85 = vmatpush1.msra.mxu0 0.0
    %86 = vmatprep.subr.mxu0 0.0
    %87 = vmatpush1.msra.mxu0 0.0
    %88 = vmatprep.subr.mxu0 0.0
    %89 = vmatpush1.msra.mxu0 0.0
    %90 = vmatprep.subr.mxu0 0.0
    %91 = vmatpush1.msra.mxu0 0.0
    %92 = vmatprep.subr.mxu0 0.0
    %93 = vmatpush1.msra.mxu0 0.0
    %94 = vmatprep.subr.mxu0 0.0
    %95 = vmatpush1.msra.mxu0 0.0
    %96 = vmatprep.subr.mxu0 0.0
    %97 = vmatpush1.msra.mxu0 0.0
    %98 = vmatprep.subr.mxu0 0.0
    %99 = vmatpush1.msra.mxu0 0.0
    %100 = vmatprep.subr.mxu0 0.0
    %101 = vmatpush1.msra.mxu0 0.0
    %102 = vmatprep.subr.mxu0 0.0
    %103 = vmatpush1.msra.mxu0 0.0
    %104 = vmatprep.subr.mxu0 0.0
    %105 = vmatpush1.msra.mxu0 0.0
    %106 = vmatprep.subr.mxu0 0.0
    %107 = vmatpush1.msra.mxu0 0.0
    %108 = vmatprep.subr.mxu0 0.0
    %109 = vmatpush1.msra.mxu0 0.0
    %110 = vmatprep.subr.mxu0 0.0
    %111 = vmatpush1.msra.mxu0 0.0
    %112 = vmatprep.subr.mxu0 0.0
    %113 = vmatpush1.msra.mxu0 0.0
    %114 = vmatprep.subr.mxu0 0.0
    %115 = vmatpush1.msra.mxu0 0.0
    %116 = vmatprep.subr.mxu0 0.0
    %117 = vmatpush1.msra.mxu0 0.0
    %118 = vmatprep.subr.mxu0 0.0
    %119 = vmatpush1.msra.mxu0 0.0
    %120 = vmatprep.subr.mxu0 0.0
    %121 = vmatpush1.msra.mxu0 0.0
    %122 = vmatprep.subr.mxu0 0.0
    %123 = vmatpush1.msra.mxu0 0.0
    %124 = vmatprep.subr.mxu0 0.0
    %125 = vmatpush1.msra.mxu0 0.0
    %126 = vmatprep.subr.mxu0 0.0
    %127 = vmatpush1.msra.mxu0 0.0
    %128 = vmatprep.subr.mxu0 0.0
    %129 = vmatpush1.msra.mxu0 0.0
    %130 = vmatprep.subr.mxu0 0.0
    %131 = vmatpush1.msra.mxu0 0.0
    %132 = vmatprep.subr.mxu0 0.0
    %133 = vmatpush1.msra.mxu0 0.0
    %134 = vmatprep.mubr.f32.mxu0 0.0
    %135 = vmatmul.mubr.f32.gmra.mrb[0].mxu0 %v68
    %v136 = vpop.f32.mrb[0].mxu0
    %v137 = vadd.f32 0.0, %v136
    %v138 = vpop.f32.mrb[0].mxu0
    %v139 = vadd.f32 0.0, %v138
    %140 = vdwg.mxu0
    %141 = vmatprep.subr.mxu0 %v61
    %142 = vmatpush1.msra.mxu0 %v62
    %143 = vmatprep.subr.mxu0 0.0
    %144 = vmatpush1.msra.mxu0 0.0
    %145 = vmatprep.subr.mxu0 0.0
    %146 = vmatpush1.msra.mxu0 0.0
    %147 = vmatprep.subr.mxu0 0.0
    %148 = vmatpush1.msra.mxu0 0.0
    %149 = vmatprep.subr.mxu0 0.0
    %150 = vmatpush1.msra.mxu0 0.0
    %151 = vmatprep.subr.mxu0 0.0
    %152 = vmatpush1.msra.mxu0 0.0
    %153 = vmatprep.subr.mxu0 0.0
    %154 = vmatpush1.msra.mxu0 0.0
    %155 = vmatprep.subr.mxu0 0.0
    %156 = vmatpush1.msra.mxu0 0.0
    %157 = vmatprep.subr.mxu0 0.0
    %158 = vmatpush1.msra.mxu0 0.0
    %159 = vmatprep.subr.mxu0 0.0
    %160 = vmatpush1.msra.mxu0 0.0
    %161 = vmatprep.subr.mxu0 0.0
    %162 = vmatpush1.msra.mxu0 0.0
    %163 = vmatprep.subr.mxu0 0.0
    %164 = vmatpush1.msra.mxu0 0.0
    %165 = vmatprep.subr.mxu0 0.0
    %166 = vmatpush1.msra.mxu0 0.0
    %167 = vmatprep.subr.mxu0 0.0
    %168 = vmatpush1.msra.mxu0 0.0
    %169 = vmatprep.subr.mxu0 0.0
    %170 = vmatpush1.msra.mxu0 0.0
    %171 = vmatprep.subr.mxu0 0.0
    %172 = vmatpush1.msra.mxu0 0.0
    %173 = vmatprep.subr.mxu0 0.0
    %174 = vmatpush1.msra.mxu0 0.0
    %175 = vmatprep.subr.mxu0 0.0
    %176 = vmatpush1.msra.mxu0 0.0
    %177 = vmatprep.subr.mxu0 0.0
    %178 = vmatpush1.msra.mxu0 0.0
    %179 = vmatprep.subr.mxu0 0.0
    %180 = vmatpush1.msra.mxu0 0.0
    %181 = vmatprep.subr.mxu0 0.0
    %182 = vmatpush1.msra.mxu0 0.0
    %183 = vmatprep.subr.mxu0 0.0
    %184 = vmatpush1.msra.mxu0 0.0
    %185 = vmatprep.subr.mxu0 0.0
    %186 = vmatpush1.msra.mxu0 0.0
    %187 = vmatprep.subr.mxu0 0.0
    %188 = vmatpush1.msra.mxu0 0.0
    %189 = vmatprep.subr.mxu0 0.0
    %190 = vmatpush1.msra.mxu0 0.0
    %191 = vmatprep.subr.mxu0 0.0
    %192 = vmatpush1.msra.mxu0 0.0
    %193 = vmatprep.subr.mxu0 0.0
    %194 = vmatpush1.msra.mxu0 0.0
    %195 = vmatprep.subr.mxu0 0.0
    %196 = vmatpush1.msra.mxu0 0.0
    %197 = vmatprep.subr.mxu0 0.0
    %198 = vmatpush1.msra.mxu0 0.0
    %199 = vmatprep.subr.mxu0 0.0
    %200 = vmatpush1.msra.mxu0 0.0
    %201 = vmatprep.subr.mxu0 0.0
    %202 = vmatpush1.msra.mxu0 0.0
    %203 = vmatprep.subr.mxu0 0.0
    %204 = vmatpush1.msra.mxu0 0.0
    %205 = vmatprep.mubr.f32.mxu0 0.0
    %206 = vmatmul.mubr.f32.gmra.mrb[0].mxu0 %v68
    %v207 = vpop.f32.mrb[0].mxu0
    %v208 = vadd.f32 0.0, %v207
    %v209 = vpop.f32.mrb[0].mxu0
    %v210 = vadd.f32 0.0, %v209
    %211 = vdwg.mxu0
    %212 = vmatprep.subr.mxu0 %v59
    %213 = vmatpush1.msra.mxu0 %v60
    %214 = vmatprep.subr.mxu0 0.0
    %215 = vmatpush1.msra.mxu0 0.0
    %216 = vmatprep.subr.mxu0 0.0
    %217 = vmatpush1.msra.mxu0 0.0
    %218 = vmatprep.subr.mxu0 0.0
    %219 = vmatpush1.msra.mxu0 0.0
    %220 = vmatprep.subr.mxu0 0.0
    %221 = vmatpush1.msra.mxu0 0.0
    %222 = vmatprep.subr.mxu0 0.0
    %223 = vmatpush1.msra.mxu0 0.0
    %224 = vmatprep.subr.mxu0 0.0
    %225 = vmatpush1.msra.mxu0 0.0
    %226 = vmatprep.subr.mxu0 0.0
    %227 = vmatpush1.msra.mxu0 0.0
    %228 = vmatprep.subr.mxu0 0.0
    %229 = vmatpush1.msra.mxu0 0.0
    %230 = vmatprep.subr.mxu0 0.0
    %231 = vmatpush1.msra.mxu0 0.0
    %232 = vmatprep.subr.mxu0 0.0
    %233 = vmatpush1.msra.mxu0 0.0
    %234 = vmatprep.subr.mxu0 0.0
    %235 = vmatpush1.msra.mxu0 0.0
    %236 = vmatprep.subr.mxu0 0.0
    %237 = vmatpush1.msra.mxu0 0.0
    %238 = vmatprep.subr.mxu0 0.0
    %239 = vmatpush1.msra.mxu0 0.0
    %240 = vmatprep.subr.mxu0 0.0
    %241 = vmatpush1.msra.mxu0 0.0
    %242 = vmatprep.subr.mxu0 0.0
    %243 = vmatpush1.msra.mxu0 0.0
    %244 = vmatprep.subr.mxu0 0.0
    %245 = vmatpush1.msra.mxu0 0.0
    %246 = vmatprep.subr.mxu0 0.0
    %247 = vmatpush1.msra.mxu0 0.0
    %248 = vmatprep.subr.mxu0 0.0
    %249 = vmatpush1.msra.mxu0 0.0
    %250 = vmatprep.subr.mxu0 0.0
    %251 = vmatpush1.msra.mxu0 0.0
    %252 = vmatprep.subr.mxu0 0.0
    %253 = vmatpush1.msra.mxu0 0.0
    %254 = vmatprep.subr.mxu0 0.0
    %255 = vmatpush1.msra.mxu0 0.0
    %256 = vmatprep.subr.mxu0 0.0
    %257 = vmatpush1.msra.mxu0 0.0
    %258 = vmatprep.subr.mxu0 0.0
    %259 = vmatpush1.msra.mxu0 0.0
    %260 = vmatprep.subr.mxu0 0.0
    %261 = vmatpush1.msra.mxu0 0.0
    %262 = vmatprep.subr.mxu0 0.0
    %263 = vmatpush1.msra.mxu0 0.0
    %264 = vmatprep.subr.mxu0 0.0
    %265 = vmatpush1.msra.mxu0 0.0
    %266 = vmatprep.subr.mxu0 0.0
    %267 = vmatpush1.msra.mxu0 0.0
    %268 = vmatprep.subr.mxu0 0.0
    %269 = vmatpush1.msra.mxu0 0.0
    %270 = vmatprep.subr.mxu0 0.0
    %271 = vmatpush1.msra.mxu0 0.0
    %272 = vmatprep.subr.mxu0 0.0
    %273 = vmatpush1.msra.mxu0 0.0
    %274 = vmatprep.subr.mxu0 0.0
    %275 = vmatpush1.msra.mxu0 0.0
    %276 = vmatprep.mubr.f32.mxu0 0.0
    %277 = vmatmul.mubr.f32.gmra.mrb[0].mxu0 %v68
    %v278 = vpop.f32.mrb[0].mxu0
    %v279 = vadd.f32 0.0, %v278
    %v280 = vpop.f32.mrb[0].mxu0
    %v281 = vadd.f32 0.0, %v280
    %282 = vdwg.mxu0
    %v284 = vsel %vm66, %v43, 0
    %286 = vmatprep.subr.mxu0 %v35
    %287 = vmatpush1.msra.mxu0 %v34
    %288 = vmatprep.subr.mxu0 0.0
    %289 = vmatpush1.msra.mxu0 0.0
    %290 = vmatprep.subr.mxu0 0.0
    %291 = vmatpush1.msra.mxu0 0.0
    %292 = vmatprep.subr.mxu0 0.0
    %293 = vmatpush1.msra.mxu0 0.0
    %294 = vmatprep.subr.mxu0 0.0
    %295 = vmatpush1.msra.mxu0 0.0
    %296 = vmatprep.subr.mxu0 0.0
    %297 = vmatpush1.msra.mxu0 0.0
    %298 = vmatprep.subr.mxu0 0.0
    %299 = vmatpush1.msra.mxu0 0.0
    %300 = vmatprep.subr.mxu0 0.0
    %301 = vmatpush1.msra.mxu0 0.0
    %302 = vmatprep.subr.mxu0 0.0
    %303 = vmatpush1.msra.mxu0 0.0
    %304 = vmatprep.subr.mxu0 0.0
    %305 = vmatpush1.msra.mxu0 0.0
    %306 = vmatprep.subr.mxu0 0.0
    %307 = vmatpush1.msra.mxu0 0.0
    %308 = vmatprep.subr.mxu0 0.0
    %309 = vmatpush1.msra.mxu0 0.0
    %310 = vmatprep.subr.mxu0 0.0
    %311 = vmatpush1.msra.mxu0 0.0
    %312 = vmatprep.subr.mxu0 0.0
    %313 = vmatpush1.msra.mxu0 0.0
    %314 = vmatprep.subr.mxu0 0.0
    %315 = vmatpush1.msra.mxu0 0.0
    %316 = vmatprep.subr.mxu0 0.0
    %317 = vmatpush1.msra.mxu0 0.0
    %318 = vmatprep.subr.mxu0 0.0
    %319 = vmatpush1.msra.mxu0 0.0
    %320 = vmatprep.subr.mxu0 0.0
    %321 = vmatpush1.msra.mxu0 0.0
    %322 = vmatprep.subr.mxu0 0.0
    %323 = vmatpush1.msra.mxu0 0.0
    %324 = vmatprep.subr.mxu0 0.0
    %325 = vmatpush1.msra.mxu0 0.0
    %326 = vmatprep.subr.mxu0 0.0
    %327 = vmatpush1.msra.mxu0 0.0
    %328 = vmatprep.subr.mxu0 0.0
    %329 = vmatpush1.msra.mxu0 0.0
    %330 = vmatprep.subr.mxu0 0.0
    %331 = vmatpush1.msra.mxu0 0.0
    %332 = vmatprep.subr.mxu0 0.0
    %333 = vmatpush1.msra.mxu0 0.0
    %334 = vmatprep.subr.mxu0 0.0
    %335 = vmatpush1.msra.mxu0 0.0
    %336 = vmatprep.subr.mxu0 0.0
    %337 = vmatpush1.msra.mxu0 0.0
    %338 = vmatprep.subr.mxu0 0.0
    %339 = vmatpush1.msra.mxu0 0.0
    %340 = vmatprep.subr.mxu0 0.0
    %341 = vmatpush1.msra.mxu0 0.0
    %342 = vmatprep.subr.mxu0 0.0
    %343 = vmatpush1.msra.mxu0 0.0
    %344 = vmatprep.subr.mxu0 0.0
    %345 = vmatpush1.msra.mxu0 0.0
    %346 = vmatprep.subr.mxu0 0.0
    %347 = vmatpush1.msra.mxu0 0.0
    %348 = vmatprep.subr.mxu0 0.0
    %349 = vmatpush1.msra.mxu0 0.0
    %350 = vmatprep.mubr.f32.mxu0 0.0
    %351 = vmatmul.mubr.f32.gmra.mrb[0].mxu0 %v284
    %v352 = vpop.f32.mrb[0].mxu0
    %v353 = vadd.f32 %v137, %v352
    %v354 = vpop.f32.mrb[0].mxu0
    %v355 = vadd.f32 %v139, %v354
    %356 = vdwg.mxu0
    %357 = vmatprep.subr.mxu0 %v37
    %358 = vmatpush1.msra.mxu0 %v36
    %359 = vmatprep.subr.mxu0 0.0
    %360 = vmatpush1.msra.mxu0 0.0
    %361 = vmatprep.subr.mxu0 0.0
    %362 = vmatpush1.msra.mxu0 0.0
    %363 = vmatprep.subr.mxu0 0.0
    %364 = vmatpush1.msra.mxu0 0.0
    %365 = vmatprep.subr.mxu0 0.0
    %366 = vmatpush1.msra.mxu0 0.0
    %367 = vmatprep.subr.mxu0 0.0
    %368 = vmatpush1.msra.mxu0 0.0
    %369 = vmatprep.subr.mxu0 0.0
    %370 = vmatpush1.msra.mxu0 0.0
    %371 = vmatprep.subr.mxu0 0.0
    %372 = vmatpush1.msra.mxu0 0.0
    %373 = vmatprep.subr.mxu0 0.0
    %374 = vmatpush1.msra.mxu0 0.0
    %375 = vmatprep.subr.mxu0 0.0
    %376 = vmatpush1.msra.mxu0 0.0
    %377 = vmatprep.subr.mxu0 0.0
    %378 = vmatpush1.msra.mxu0 0.0
    %379 = vmatprep.subr.mxu0 0.0
    %380 = vmatpush1.msra.mxu0 0.0
    %381 = vmatprep.subr.mxu0 0.0
    %382 = vmatpush1.msra.mxu0 0.0
    %383 = vmatprep.subr.mxu0 0.0
    %384 = vmatpush1.msra.mxu0 0.0
    %385 = vmatprep.subr.mxu0 0.0
    %386 = vmatpush1.msra.mxu0 0.0
    %387 = vmatprep.subr.mxu0 0.0
    %388 = vmatpush1.msra.mxu0 0.0
    %389 = vmatprep.subr.mxu0 0.0
    %390 = vmatpush1.msra.mxu0 0.0
    %391 = vmatprep.subr.mxu0 0.0
    %392 = vmatpush1.msra.mxu0 0.0
    %393 = vmatprep.subr.mxu0 0.0
    %394 = vmatpush1.msra.mxu0 0.0
    %395 = vmatprep.subr.mxu0 0.0
    %396 = vmatpush1.msra.mxu0 0.0
    %397 = vmatprep.subr.mxu0 0.0
    %398 = vmatpush1.msra.mxu0 0.0
    %399 = vmatprep.subr.mxu0 0.0
    %400 = vmatpush1.msra.mxu0 0.0
    %401 = vmatprep.subr.mxu0 0.0
    %402 = vmatpush1.msra.mxu0 0.0
    %403 = vmatprep.subr.mxu0 0.0
    %404 = vmatpush1.msra.mxu0 0.0
    %405 = vmatprep.subr.mxu0 0.0
    %406 = vmatpush1.msra.mxu0 0.0
    %407 = vmatprep.subr.mxu0 0.0
    %408 = vmatpush1.msra.mxu0 0.0
    %409 = vmatprep.subr.mxu0 0.0
    %410 = vmatpush1.msra.mxu0 0.0
    %411 = vmatprep.subr.mxu0 0.0
    %412 = vmatpush1.msra.mxu0 0.0
    %413 = vmatprep.subr.mxu0 0.0
    %414 = vmatpush1.msra.mxu0 0.0
    %415 = vmatprep.subr.mxu0 0.0
    %416 = vmatpush1.msra.mxu0 0.0
    %417 = vmatprep.subr.mxu0 0.0
    %418 = vmatpush1.msra.mxu0 0.0
    %419 = vmatprep.subr.mxu0 0.0
    %420 = vmatpush1.msra.mxu0 0.0
    %421 = vmatprep.mubr.f32.mxu0 0.0
    %422 = vmatmul.mubr.f32.gmra.mrb[0].mxu0 %v284
    %v423 = vpop.f32.mrb[0].mxu0
    %v424 = vadd.f32 %v208, %v423
    %v425 = vpop.f32.mrb[0].mxu0
    %v426 = vadd.f32 %v210, %v425
    %427 = vdwg.mxu0
    %428 = vmatprep.subr.mxu0 %v39
    %429 = vmatpush1.msra.mxu0 %v38
    %430 = vmatprep.subr.mxu0 0.0
    %431 = vmatpush1.msra.mxu0 0.0
    %432 = vmatprep.subr.mxu0 0.0
    %433 = vmatpush1.msra.mxu0 0.0
    %434 = vmatprep.subr.mxu0 0.0
    %435 = vmatpush1.msra.mxu0 0.0
    %436 = vmatprep.subr.mxu0 0.0
    %437 = vmatpush1.msra.mxu0 0.0
    %438 = vmatprep.subr.mxu0 0.0
    %439 = vmatpush1.msra.mxu0 0.0
    %440 = vmatprep.subr.mxu0 0.0
    %441 = vmatpush1.msra.mxu0 0.0
    %442 = vmatprep.subr.mxu0 0.0
    %443 = vmatpush1.msra.mxu0 0.0
    %444 = vmatprep.subr.mxu0 0.0
    %445 = vmatpush1.msra.mxu0 0.0
    %446 = vmatprep.subr.mxu0 0.0
    %447 = vmatpush1.msra.mxu0 0.0
    %448 = vmatprep.subr.mxu0 0.0
    %449 = vmatpush1.msra.mxu0 0.0
    %450 = vmatprep.subr.mxu0 0.0
    %451 = vmatpush1.msra.mxu0 0.0
    %452 = vmatprep.subr.mxu0 0.0
    %453 = vmatpush1.msra.mxu0 0.0
    %454 = vmatprep.subr.mxu0 0.0
    %455 = vmatpush1.msra.mxu0 0.0
    %456 = vmatprep.subr.mxu0 0.0
    %457 = vmatpush1.msra.mxu0 0.0
    %458 = vmatprep.subr.mxu0 0.0
    %459 = vmatpush1.msra.mxu0 0.0
    %460 = vmatprep.subr.mxu0 0.0
    %461 = vmatpush1.msra.mxu0 0.0
    %462 = vmatprep.subr.mxu0 0.0
    %463 = vmatpush1.msra.mxu0 0.0
    %464 = vmatprep.subr.mxu0 0.0
    %465 = vmatpush1.msra.mxu0 0.0
    %466 = vmatprep.subr.mxu0 0.0
    %467 = vmatpush1.msra.mxu0 0.0
    %468 = vmatprep.subr.mxu0 0.0
    %469 = vmatpush1.msra.mxu0 0.0
    %470 = vmatprep.subr.mxu0 0.0
    %471 = vmatpush1.msra.mxu0 0.0
    %472 = vmatprep.subr.mxu0 0.0
    %473 = vmatpush1.msra.mxu0 0.0
    %474 = vmatprep.subr.mxu0 0.0
    %475 = vmatpush1.msra.mxu0 0.0
    %476 = vmatprep.subr.mxu0 0.0
    %477 = vmatpush1.msra.mxu0 0.0
    %478 = vmatprep.subr.mxu0 0.0
    %479 = vmatpush1.msra.mxu0 0.0
    %480 = vmatprep.subr.mxu0 0.0
    %481 = vmatpush1.msra.mxu0 0.0
    %482 = vmatprep.subr.mxu0 0.0
    %483 = vmatpush1.msra.mxu0 0.0
    %484 = vmatprep.subr.mxu0 0.0
    %485 = vmatpush1.msra.mxu0 0.0
    %486 = vmatprep.subr.mxu0 0.0
    %487 = vmatpush1.msra.mxu0 0.0
    %488 = vmatprep.subr.mxu0 0.0
    %489 = vmatpush1.msra.mxu0 0.0
    %490 = vmatprep.subr.mxu0 0.0
    %491 = vmatpush1.msra.mxu0 0.0
    %492 = vmatprep.mubr.f32.mxu0 0.0
    %493 = vmatmul.mubr.f32.gmra.mrb[0].mxu0 %v284
    %v494 = vpop.f32.mrb[0].mxu0
    %v495 = vadd.f32 %v279, %v494
    %v496 = vpop.f32.mrb[0].mxu0
    %v497 = vadd.f32 %v281, %v496
    %498 = vdwg.mxu0
    %499 = vrot.lane.b32.xlu0 %v34, 18
    %v500 = vpop.permute.xlu0 %499
    %501 = vrot.lane.b32.xlu0 %v35, 18
    %v502 = vpop.permute.xlu0 %501
    %503 = vrot.lane.b32.xlu0 %v36, 18
    %v504 = vpop.permute.xlu0 %503
    %505 = vrot.lane.b32.xlu0 %v37, 18
    %v506 = vpop.permute.xlu0 %505
    %507 = vrot.lane.b32.xlu0 %v38, 18
    %v508 = vpop.permute.xlu0 %507
    %509 = vrot.lane.b32.xlu0 %v39, 18
    %v510 = vpop.permute.xlu0 %509
    %vm511 = vcmp.lt.s32.totalorder %v57, 18
    %v512 = vsel %vm511, %v508, %v510
    %v513 = vsel %vm511, %v506, %v508
    %v514 = vsel %vm511, %v504, %v506
    %v515 = vsel %vm511, %v502, %v504
    %v516 = vsel %vm511, %v500, %v502
    %v517 = vsel %vm511, %v510, %v500
    %s518 = scalar_lea.vmem %s2, 8
    %v519 = vld [vmem:[%s518] sm:$0xff]
    %v521 = vsel %vm66, %v519, 0
    %523 = vmatprep.subr.mxu0 %v516
    %524 = vmatpush1.msra.mxu0 %v517
    %525 = vmatprep.subr.mxu0 0.0
    %526 = vmatpush1.msra.mxu0 0.0
    %527 = vmatprep.subr.mxu0 0.0
    %528 = vmatpush1.msra.mxu0 0.0
    %529 = vmatprep.subr.mxu0 0.0
    %530 = vmatpush1.msra.mxu0 0.0
    %531 = vmatprep.subr.mxu0 0.0
    %532 = vmatpush1.msra.mxu0 0.0
    %533 = vmatprep.subr.mxu0 0.0
    %534 = vmatpush1.msra.mxu0 0.0
    %535 = vmatprep.subr.mxu0 0.0
    %536 = vmatpush1.msra.mxu0 0.0
    %537 = vmatprep.subr.mxu0 0.0
    %538 = vmatpush1.msra.mxu0 0.0
    %539 = vmatprep.subr.mxu0 0.0
    %540 = vmatpush1.msra.mxu0 0.0
    %541 = vmatprep.subr.mxu0 0.0
    %542 = vmatpush1.msra.mxu0 0.0
    %543 = vmatprep.subr.mxu0 0.0
    %544 = vmatpush1.msra.mxu0 0.0
    %545 = vmatprep.subr.mxu0 0.0
    %546 = vmatpush1.msra.mxu0 0.0
    %547 = vmatprep.subr.mxu0 0.0
    %548 = vmatpush1.msra.mxu0 0.0
    %549 = vmatprep.subr.mxu0 0.0
    %550 = vmatpush1.msra.mxu0 0.0
    %551 = vmatprep.subr.mxu0 0.0
    %552 = vmatpush1.msra.mxu0 0.0
    %553 = vmatprep.subr.mxu0 0.0
    %554 = vmatpush1.msra.mxu0 0.0
    %555 = vmatprep.subr.mxu0 0.0
    %556 = vmatpush1.msra.mxu0 0.0
    %557 = vmatprep.subr.mxu0 0.0
    %558 = vmatpush1.msra.mxu0 0.0
    %559 = vmatprep.subr.mxu0 0.0
    %560 = vmatpush1.msra.mxu0 0.0
    %561 = vmatprep.subr.mxu0 0.0
    %562 = vmatpush1.msra.mxu0 0.0
    %563 = vmatprep.subr.mxu0 0.0
    %564 = vmatpush1.msra.mxu0 0.0
    %565 = vmatprep.subr.mxu0 0.0
    %566 = vmatpush1.msra.mxu0 0.0
    %567 = vmatprep.subr.mxu0 0.0
    %568 = vmatpush1.msra.mxu0 0.0
    %569 = vmatprep.subr.mxu0 0.0
    %570 = vmatpush1.msra.mxu0 0.0
    %571 = vmatprep.subr.mxu0 0.0
    %572 = vmatpush1.msra.mxu0 0.0
    %573 = vmatprep.subr.mxu0 0.0
    %574 = vmatpush1.msra.mxu0 0.0
    %575 = vmatprep.subr.mxu0 0.0
    %576 = vmatpush1.msra.mxu0 0.0
    %577 = vmatprep.subr.mxu0 0.0
    %578 = vmatpush1.msra.mxu0 0.0
    %579 = vmatprep.subr.mxu0 0.0
    %580 = vmatpush1.msra.mxu0 0.0
    %581 = vmatprep.subr.mxu0 0.0
    %582 = vmatpush1.msra.mxu0 0.0
    %583 = vmatprep.subr.mxu0 0.0
    %584 = vmatpush1.msra.mxu0 0.0
    %585 = vmatprep.subr.mxu0 0.0
    %586 = vmatpush1.msra.mxu0 0.0
    %587 = vmatprep.mubr.f32.mxu0 0.0
    %588 = vmatmul.mubr.f32.gmra.mrb[0].mxu0 %v521
    %v589 = vpop.f32.mrb[0].mxu0
    %v590 = vadd.f32 0.0, %v589
    %v591 = vpop.f32.mrb[0].mxu0
    %v592 = vadd.f32 0.0, %v591
    %593 = vdwg.mxu0
    %594 = vmatprep.subr.mxu0 %v514
    %595 = vmatpush1.msra.mxu0 %v515
    %596 = vmatprep.subr.mxu0 0.0
    %597 = vmatpush1.msra.mxu0 0.0
    %598 = vmatprep.subr.mxu0 0.0
    %599 = vmatpush1.msra.mxu0 0.0
    %600 = vmatprep.subr.mxu0 0.0
    %601 = vmatpush1.msra.mxu0 0.0
    %602 = vmatprep.subr.mxu0 0.0
    %603 = vmatpush1.msra.mxu0 0.0
    %604 = vmatprep.subr.mxu0 0.0
    %605 = vmatpush1.msra.mxu0 0.0
    %606 = vmatprep.subr.mxu0 0.0
    %607 = vmatpush1.msra.mxu0 0.0
    %608 = vmatprep.subr.mxu0 0.0
    %609 = vmatpush1.msra.mxu0 0.0
    %610 = vmatprep.subr.mxu0 0.0
    %611 = vmatpush1.msra.mxu0 0.0
    %612 = vmatprep.subr.mxu0 0.0
    %613 = vmatpush1.msra.mxu0 0.0
    %614 = vmatprep.subr.mxu0 0.0
    %615 = vmatpush1.msra.mxu0 0.0
    %616 = vmatprep.subr.mxu0 0.0
    %617 = vmatpush1.msra.mxu0 0.0
    %618 = vmatprep.subr.mxu0 0.0
    %619 = vmatpush1.msra.mxu0 0.0
    %620 = vmatprep.subr.mxu0 0.0
    %621 = vmatpush1.msra.mxu0 0.0
    %622 = vmatprep.subr.mxu0 0.0
    %623 = vmatpush1.msra.mxu0 0.0
    %624 = vmatprep.subr.mxu0 0.0
    %625 = vmatpush1.msra.mxu0 0.0
    %626 = vmatprep.subr.mxu0 0.0
    %627 = vmatpush1.msra.mxu0 0.0
    %628 = vmatprep.subr.mxu0 0.0
    %629 = vmatpush1.msra.mxu0 0.0
    %630 = vmatprep.subr.mxu0 0.0
    %631 = vmatpush1.msra.mxu0 0.0
    %632 = vmatprep.subr.mxu0 0.0
    %633 = vmatpush1.msra.mxu0 0.0
    %634 = vmatprep.subr.mxu0 0.0
    %635 = vmatpush1.msra.mxu0 0.0
    %636 = vmatprep.subr.mxu0 0.0
    %637 = vmatpush1.msra.mxu0 0.0
    %638 = vmatprep.subr.mxu0 0.0
    %639 = vmatpush1.msra.mxu0 0.0
    %640 = vmatprep.subr.mxu0 0.0
    %641 = vmatpush1.msra.mxu0 0.0
    %642 = vmatprep.subr.mxu0 0.0
    %643 = vmatpush1.msra.mxu0 0.0
    %644 = vmatprep.subr.mxu0 0.0
    %645 = vmatpush1.msra.mxu0 0.0
    %646 = vmatprep.subr.mxu0 0.0
    %647 = vmatpush1.msra.mxu0 0.0
    %648 = vmatprep.subr.mxu0 0.0
    %649 = vmatpush1.msra.mxu0 0.0
    %650 = vmatprep.subr.mxu0 0.0
    %651 = vmatpush1.msra.mxu0 0.0
    %652 = vmatprep.subr.mxu0 0.0
    %653 = vmatpush1.msra.mxu0 0.0
    %654 = vmatprep.subr.mxu0 0.0
    %655 = vmatpush1.msra.mxu0 0.0
    %656 = vmatprep.subr.mxu0 0.0
    %657 = vmatpush1.msra.mxu0 0.0
    %658 = vmatprep.mubr.f32.mxu0 0.0
    %659 = vmatmul.mubr.f32.gmra.mrb[0].mxu0 %v521
    %v660 = vpop.f32.mrb[0].mxu0
    %v661 = vadd.f32 0.0, %v660
    %v662 = vpop.f32.mrb[0].mxu0
    %v663 = vadd.f32 0.0, %v662
    %664 = vdwg.mxu0
    %665 = vmatprep.subr.mxu0 %v512
    %666 = vmatpush1.msra.mxu0 %v513
    %667 = vmatprep.subr.mxu0 0.0
    %668 = vmatpush1.msra.mxu0 0.0
    %669 = vmatprep.subr.mxu0 0.0
    %670 = vmatpush1.msra.mxu0 0.0
    %671 = vmatprep.subr.mxu0 0.0
    %672 = vmatpush1.msra.mxu0 0.0
    %673 = vmatprep.subr.mxu0 0.0
    %674 = vmatpush1.msra.mxu0 0.0
    %675 = vmatprep.subr.mxu0 0.0
    %676 = vmatpush1.msra.mxu0 0.0
    %677 = vmatprep.subr.mxu0 0.0
    %678 = vmatpush1.msra.mxu0 0.0
    %679 = vmatprep.subr.mxu0 0.0
    %680 = vmatpush1.msra.mxu0 0.0
    %681 = vmatprep.subr.mxu0 0.0
    %682 = vmatpush1.msra.mxu0 0.0
    %683 = vmatprep.subr.mxu0 0.0
    %684 = vmatpush1.msra.mxu0 0.0
    %685 = vmatprep.subr.mxu0 0.0
    %686 = vmatpush1.msra.mxu0 0.0
    %687 = vmatprep.subr.mxu0 0.0
    %688 = vmatpush1.msra.mxu0 0.0
    %689 = vmatprep.subr.mxu0 0.0
    %690 = vmatpush1.msra.mxu0 0.0
    %691 = vmatprep.subr.mxu0 0.0
    %692 = vmatpush1.msra.mxu0 0.0
    %693 = vmatprep.subr.mxu0 0.0
    %694 = vmatpush1.msra.mxu0 0.0
    %695 = vmatprep.subr.mxu0 0.0
    %696 = vmatpush1.msra.mxu0 0.0
    %697 = vmatprep.subr.mxu0 0.0
    %698 = vmatpush1.msra.mxu0 0.0
    %699 = vmatprep.subr.mxu0 0.0
    %700 = vmatpush1.msra.mxu0 0.0
    %701 = vmatprep.subr.mxu0 0.0
    %702 = vmatpush1.msra.mxu0 0.0
    %703 = vmatprep.subr.mxu0 0.0
    %704 = vmatpush1.msra.mxu0 0.0
    %705 = vmatprep.subr.mxu0 0.0
    %706 = vmatpush1.msra.mxu0 0.0
    %707 = vmatprep.subr.mxu0 0.0
    %708 = vmatpush1.msra.mxu0 0.0
    %709 = vmatprep.subr.mxu0 0.0
    %710 = vmatpush1.msra.mxu0 0.0
    %711 = vmatprep.subr.mxu0 0.0
    %712 = vmatpush1.msra.mxu0 0.0
    %713 = vmatprep.subr.mxu0 0.0
    %714 = vmatpush1.msra.mxu0 0.0
    %715 = vmatprep.subr.mxu0 0.0
    %716 = vmatpush1.msra.mxu0 0.0
    %717 = vmatprep.subr.mxu0 0.0
    %718 = vmatpush1.msra.mxu0 0.0
    %719 = vmatprep.subr.mxu0 0.0
    %720 = vmatpush1.msra.mxu0 0.0
    %721 = vmatprep.subr.mxu0 0.0
    %722 = vmatpush1.msra.mxu0 0.0
    %723 = vmatprep.subr.mxu0 0.0
    %724 = vmatpush1.msra.mxu0 0.0
    %725 = vmatprep.subr.mxu0 0.0
    %726 = vmatpush1.msra.mxu0 0.0
    %727 = vmatprep.subr.mxu0 0.0
    %728 = vmatpush1.msra.mxu0 0.0
    %729 = vmatprep.mubr.f32.mxu0 0.0
    %730 = vmatmul.mubr.f32.gmra.mrb[0].mxu0 %v521
    %v731 = vpop.f32.mrb[0].mxu0
    %v732 = vadd.f32 0.0, %v731
    %v733 = vpop.f32.mrb[0].mxu0
    %v734 = vadd.f32 0.0, %v733
    %735 = vdwg.mxu0
    %v736 = vadd.f32 %v353, %v590
    %v737 = vadd.f32 %v355, %v592
    %v738 = vadd.f32 %v424, %v661
    %v739 = vadd.f32 %v426, %v663
    %v740 = vadd.f32 %v495, %v732
    %v741 = vadd.f32 %v497, %v734
    %742 = vrot.lane.b32.xlu0 %v34, 17
    %v743 = vpop.permute.xlu0 %742
    %744 = vrot.lane.b32.xlu0 %v35, 17
    %v745 = vpop.permute.xlu0 %744
    %746 = vrot.lane.b32.xlu0 %v36, 17
    %v747 = vpop.permute.xlu0 %746
    %748 = vrot.lane.b32.xlu0 %v37, 17
    %v749 = vpop.permute.xlu0 %748
    %750 = vrot.lane.b32.xlu0 %v38, 17
    %v751 = vpop.permute.xlu0 %750
    %752 = vrot.lane.b32.xlu0 %v39, 17
    %v753 = vpop.permute.xlu0 %752
    %vm754 = vcmp.lt.s32.totalorder %v57, 17
    %v755 = vsel %vm754, %v751, %v753
    %v756 = vsel %vm754, %v749, %v751
    %v757 = vsel %vm754, %v747, %v749
    %v758 = vsel %vm754, %v745, %v747
    %v759 = vsel %vm754, %v743, %v745
    %v760 = vsel %vm754, %v753, %v743
    %s761 = scalar_lea.vmem %s2, 16
    %v762 = vld [vmem:[%s761] sm:$0xff]
    %v764 = vsel %vm66, %v762, 0
    %766 = vmatprep.subr.mxu0 %v759
    %767 = vmatpush1.msra.mxu0 %v760
    %768 = vmatprep.subr.mxu0 0.0
    %769 = vmatpush1.msra.mxu0 0.0
    %770 = vmatprep.subr.mxu0 0.0
    %771 = vmatpush1.msra.mxu0 0.0
    %772 = vmatprep.subr.mxu0 0.0
    %773 = vmatpush1.msra.mxu0 0.0
    %774 = vmatprep.subr.mxu0 0.0
    %775 = vmatpush1.msra.mxu0 0.0
    %776 = vmatprep.subr.mxu0 0.0
    %777 = vmatpush1.msra.mxu0 0.0
    %778 = vmatprep.subr.mxu0 0.0
    %779 = vmatpush1.msra.mxu0 0.0
    %780 = vmatprep.subr.mxu0 0.0
    %781 = vmatpush1.msra.mxu0 0.0
    %782 = vmatprep.subr.mxu0 0.0
    %783 = vmatpush1.msra.mxu0 0.0
    %784 = vmatprep.subr.mxu0 0.0
    %785 = vmatpush1.msra.mxu0 0.0
    %786 = vmatprep.subr.mxu0 0.0
    %787 = vmatpush1.msra.mxu0 0.0
    %788 = vmatprep.subr.mxu0 0.0
    %789 = vmatpush1.msra.mxu0 0.0
    %790 = vmatprep.subr.mxu0 0.0
    %791 = vmatpush1.msra.mxu0 0.0
    %792 = vmatprep.subr.mxu0 0.0
    %793 = vmatpush1.msra.mxu0 0.0
    %794 = vmatprep.subr.mxu0 0.0
    %795 = vmatpush1.msra.mxu0 0.0
    %796 = vmatprep.subr.mxu0 0.0
    %797 = vmatpush1.msra.mxu0 0.0
    %798 = vmatprep.subr.mxu0 0.0
    %799 = vmatpush1.msra.mxu0 0.0
    %800 = vmatprep.subr.mxu0 0.0
    %801 = vmatpush1.msra.mxu0 0.0
    %802 = vmatprep.subr.mxu0 0.0
    %803 = vmatpush1.msra.mxu0 0.0
    %804 = vmatprep.subr.mxu0 0.0
    %805 = vmatpush1.msra.mxu0 0.0
    %806 = vmatprep.subr.mxu0 0.0
    %807 = vmatpush1.msra.mxu0 0.0
    %808 = vmatprep.subr.mxu0 0.0
    %809 = vmatpush1.msra.mxu0 0.0
    %810 = vmatprep.subr.mxu0 0.0
    %811 = vmatpush1.msra.mxu0 0.0
    %812 = vmatprep.subr.mxu0 0.0
    %813 = vmatpush1.msra.mxu0 0.0
    %814 = vmatprep.subr.mxu0 0.0
    %815 = vmatpush1.msra.mxu0 0.0
    %816 = vmatprep.subr.mxu0 0.0
    %817 = vmatpush1.msra.mxu0 0.0
    %818 = vmatprep.subr.mxu0 0.0
    %819 = vmatpush1.msra.mxu0 0.0
    %820 = vmatprep.subr.mxu0 0.0
    %821 = vmatpush1.msra.mxu0 0.0
    %822 = vmatprep.subr.mxu0 0.0
    %823 = vmatpush1.msra.mxu0 0.0
    %824 = vmatprep.subr.mxu0 0.0
    %825 = vmatpush1.msra.mxu0 0.0
    %826 = vmatprep.subr.mxu0 0.0
    %827 = vmatpush1.msra.mxu0 0.0
    %828 = vmatprep.subr.mxu0 0.0
    %829 = vmatpush1.msra.mxu0 0.0
    %830 = vmatprep.mubr.f32.mxu0 0.0
    %831 = vmatmul.mubr.f32.gmra.mrb[0].mxu0 %v764
    %v832 = vpop.f32.mrb[0].mxu0
    %v833 = vadd.f32 0.0, %v832
    %v834 = vpop.f32.mrb[0].mxu0
    %v835 = vadd.f32 0.0, %v834
    %836 = vdwg.mxu0
    %837 = vmatprep.subr.mxu0 %v757
    %838 = vmatpush1.msra.mxu0 %v758
    %839 = vmatprep.subr.mxu0 0.0
    %840 = vmatpush1.msra.mxu0 0.0
    %841 = vmatprep.subr.mxu0 0.0
    %842 = vmatpush1.msra.mxu0 0.0
    %843 = vmatprep.subr.mxu0 0.0
    %844 = vmatpush1.msra.mxu0 0.0
    %845 = vmatprep.subr.mxu0 0.0
    %846 = vmatpush1.msra.mxu0 0.0
    %847 = vmatprep.subr.mxu0 0.0
    %848 = vmatpush1.msra.mxu0 0.0
    %849 = vmatprep.subr.mxu0 0.0
    %850 = vmatpush1.msra.mxu0 0.0
    %851 = vmatprep.subr.mxu0 0.0
    %852 = vmatpush1.msra.mxu0 0.0
    %853 = vmatprep.subr.mxu0 0.0
    %854 = vmatpush1.msra.mxu0 0.0
    %855 = vmatprep.subr.mxu0 0.0
    %856 = vmatpush1.msra.mxu0 0.0
    %857 = vmatprep.subr.mxu0 0.0
    %858 = vmatpush1.msra.mxu0 0.0
    %859 = vmatprep.subr.mxu0 0.0
    %860 = vmatpush1.msra.mxu0 0.0
    %861 = vmatprep.subr.mxu0 0.0
    %862 = vmatpush1.msra.mxu0 0.0
    %863 = vmatprep.subr.mxu0 0.0
    %864 = vmatpush1.msra.mxu0 0.0
    %865 = vmatprep.subr.mxu0 0.0
    %866 = vmatpush1.msra.mxu0 0.0
    %867 = vmatprep.subr.mxu0 0.0
    %868 = vmatpush1.msra.mxu0 0.0
    %869 = vmatprep.subr.mxu0 0.0
    %870 = vmatpush1.msra.mxu0 0.0
    %871 = vmatprep.subr.mxu0 0.0
    %872 = vmatpush1.msra.mxu0 0.0
    %873 = vmatprep.subr.mxu0 0.0
    %874 = vmatpush1.msra.mxu0 0.0
    %875 = vmatprep.subr.mxu0 0.0
    %876 = vmatpush1.msra.mxu0 0.0
    %877 = vmatprep.subr.mxu0 0.0
    %878 = vmatpush1.msra.mxu0 0.0
    %879 = vmatprep.subr.mxu0 0.0
    %880 = vmatpush1.msra.mxu0 0.0
    %881 = vmatprep.subr.mxu0 0.0
    %882 = vmatpush1.msra.mxu0 0.0
    %883 = vmatprep.subr.mxu0 0.0
    %884 = vmatpush1.msra.mxu0 0.0
    %885 = vmatprep.subr.mxu0 0.0
    %886 = vmatpush1.msra.mxu0 0.0
    %887 = vmatprep.subr.mxu0 0.0
    %888 = vmatpush1.msra.mxu0 0.0
    %889 = vmatprep.subr.mxu0 0.0
    %890 = vmatpush1.msra.mxu0 0.0
    %891 = vmatprep.subr.mxu0 0.0
    %892 = vmatpush1.msra.mxu0 0.0
    %893 = vmatprep.subr.mxu0 0.0
    %894 = vmatpush1.msra.mxu0 0.0
    %895 = vmatprep.subr.mxu0 0.0
    %896 = vmatpush1.msra.mxu0 0.0
    %897 = vmatprep.subr.mxu0 0.0
    %898 = vmatpush1.msra.mxu0 0.0
    %899 = vmatprep.subr.mxu0 0.0
    %900 = vmatpush1.msra.mxu0 0.0
    %901 = vmatprep.mubr.f32.mxu0 0.0
    %902 = vmatmul.mubr.f32.gmra.mrb[0].mxu0 %v764
    %v903 = vpop.f32.mrb[0].mxu0
    %v904 = vadd.f32 0.0, %v903
    %v905 = vpop.f32.mrb[0].mxu0
    %v906 = vadd.f32 0.0, %v905
    %907 = vdwg.mxu0
    %908 = vmatprep.subr.mxu0 %v755
    %909 = vmatpush1.msra.mxu0 %v756
    %910 = vmatprep.subr.mxu0 0.0
    %911 = vmatpush1.msra.mxu0 0.0
    %912 = vmatprep.subr.mxu0 0.0
    %913 = vmatpush1.msra.mxu0 0.0
    %914 = vmatprep.subr.mxu0 0.0
    %915 = vmatpush1.msra.mxu0 0.0
    %916 = vmatprep.subr.mxu0 0.0
    %917 = vmatpush1.msra.mxu0 0.0
    %918 = vmatprep.subr.mxu0 0.0
    %919 = vmatpush1.msra.mxu0 0.0
    %920 = vmatprep.subr.mxu0 0.0
    %921 = vmatpush1.msra.mxu0 0.0
    %922 = vmatprep.subr.mxu0 0.0
    %923 = vmatpush1.msra.mxu0 0.0
    %924 = vmatprep.subr.mxu0 0.0
    %925 = vmatpush1.msra.mxu0 0.0
    %926 = vmatprep.subr.mxu0 0.0
    %927 = vmatpush1.msra.mxu0 0.0
    %928 = vmatprep.subr.mxu0 0.0
    %929 = vmatpush1.msra.mxu0 0.0
    %930 = vmatprep.subr.mxu0 0.0
    %931 = vmatpush1.msra.mxu0 0.0
    %932 = vmatprep.subr.mxu0 0.0
    %933 = vmatpush1.msra.mxu0 0.0
    %934 = vmatprep.subr.mxu0 0.0
    %935 = vmatpush1.msra.mxu0 0.0
    %936 = vmatprep.subr.mxu0 0.0
    %937 = vmatpush1.msra.mxu0 0.0
    %938 = vmatprep.subr.mxu0 0.0
    %939 = vmatpush1.msra.mxu0 0.0
    %940 = vmatprep.subr.mxu0 0.0
    %941 = vmatpush1.msra.mxu0 0.0
    %942 = vmatprep.subr.mxu0 0.0
    %943 = vmatpush1.msra.mxu0 0.0
    %944 = vmatprep.subr.mxu0 0.0
    %945 = vmatpush1.msra.mxu0 0.0
    %946 = vmatprep.subr.mxu0 0.0
    %947 = vmatpush1.msra.mxu0 0.0
    %948 = vmatprep.subr.mxu0 0.0
    %949 = vmatpush1.msra.mxu0 0.0
    %950 = vmatprep.subr.mxu0 0.0
    %951 = vmatpush1.msra.mxu0 0.0
    %952 = vmatprep.subr.mxu0 0.0
    %953 = vmatpush1.msra.mxu0 0.0
    %954 = vmatprep.subr.mxu0 0.0
    %955 = vmatpush1.msra.mxu0 0.0
    %956 = vmatprep.subr.mxu0 0.0
    %957 = vmatpush1.msra.mxu0 0.0
    %958 = vmatprep.subr.mxu0 0.0
    %959 = vmatpush1.msra.mxu0 0.0
    %960 = vmatprep.subr.mxu0 0.0
    %961 = vmatpush1.msra.mxu0 0.0
    %962 = vmatprep.subr.mxu0 0.0
    %963 = vmatpush1.msra.mxu0 0.0
    %964 = vmatprep.subr.mxu0 0.0
    %965 = vmatpush1.msra.mxu0 0.0
    %966 = vmatprep.subr.mxu0 0.0
    %967 = vmatpush1.msra.mxu0 0.0
    %968 = vmatprep.subr.mxu0 0.0
    %969 = vmatpush1.msra.mxu0 0.0
    %970 = vmatprep.subr.mxu0 0.0
    %971 = vmatpush1.msra.mxu0 0.0
    %972 = vmatprep.mubr.f32.mxu0 0.0
    %973 = vmatmul.mubr.f32.gmra.mrb[0].mxu0 %v764
    %v974 = vpop.f32.mrb[0].mxu0
    %v975 = vadd.f32 0.0, %v974
    %v976 = vpop.f32.mrb[0].mxu0
    %v977 = vadd.f32 0.0, %v976
    %978 = vdwg.mxu0
    %v979 = vadd.f32 %v736, %v833
    %v980 = vadd.f32 %v737, %v835
    %v981 = vadd.f32 %v738, %v904
    %v982 = vadd.f32 %v739, %v906
    %v983 = vadd.f32 %v740, %v975
    %v984 = vadd.f32 %v741, %v977
    %985 = vrot.lane.b32.xlu0 %v34, 1
    %v986 = vpop.permute.xlu0 %985
    %987 = vrot.lane.b32.xlu0 %v35, 1
    %v988 = vpop.permute.xlu0 %987
    %989 = vrot.lane.b32.xlu0 %v36, 1
    %v990 = vpop.permute.xlu0 %989
    %991 = vrot.lane.b32.xlu0 %v37, 1
    %v992 = vpop.permute.xlu0 %991
    %993 = vrot.lane.b32.xlu0 %v38, 1
    %v994 = vpop.permute.xlu0 %993
    %995 = vrot.lane.b32.xlu0 %v39, 1
    %v996 = vpop.permute.xlu0 %995
    %vm997 = vcmp.lt.s32.totalorder %v57, 1
    %v998 = vsel %vm997, %v994, %v996
    %v999 = vsel %vm997, %v992, %v994
    %v1000 = vsel %vm997, %v990, %v992
    %v1001 = vsel %vm997, %v988, %v990
    %v1002 = vsel %vm997, %v986, %v988
    %v1003 = vsel %vm997, %v996, %v986
    %s1004 = scalar_lea.vmem %s2, 24
    %v1005 = vld [vmem:[%s1004] sm:$0xff]
    %v1007 = vsel %vm66, %v1005, 0
    %1009 = vmatprep.subr.mxu0 %v1002
    %1010 = vmatpush1.msra.mxu0 %v1003
    %1011 = vmatprep.subr.mxu0 0.0
    %1012 = vmatpush1.msra.mxu0 0.0
    %1013 = vmatprep.subr.mxu0 0.0
    %1014 = vmatpush1.msra.mxu0 0.0
    %1015 = vmatprep.subr.mxu0 0.0
    %1016 = vmatpush1.msra.mxu0 0.0
    %1017 = vmatprep.subr.mxu0 0.0
    %1018 = vmatpush1.msra.mxu0 0.0
    %1019 = vmatprep.subr.mxu0 0.0
    %1020 = vmatpush1.msra.mxu0 0.0
    %1021 = vmatprep.subr.mxu0 0.0
    %1022 = vmatpush1.msra.mxu0 0.0
    %1023 = vmatprep.subr.mxu0 0.0
    %1024 = vmatpush1.msra.mxu0 0.0
    %1025 = vmatprep.subr.mxu0 0.0
    %1026 = vmatpush1.msra.mxu0 0.0
    %1027 = vmatprep.subr.mxu0 0.0
    %1028 = vmatpush1.msra.mxu0 0.0
    %1029 = vmatprep.subr.mxu0 0.0
    %1030 = vmatpush1.msra.mxu0 0.0
    %1031 = vmatprep.subr.mxu0 0.0
    %1032 = vmatpush1.msra.mxu0 0.0
    %1033 = vmatprep.subr.mxu0 0.0
    %1034 = vmatpush1.msra.mxu0 0.0
    %1035 = vmatprep.subr.mxu0 0.0
    %1036 = vmatpush1.msra.mxu0 0.0
    %1037 = vmatprep.subr.mxu0 0.0
    %1038 = vmatpush1.msra.mxu0 0.0
    %1039 = vmatprep.subr.mxu0 0.0
    %1040 = vmatpush1.msra.mxu0 0.0
    %1041 = vmatprep.subr.mxu0 0.0
    %1042 = vmatpush1.msra.mxu0 0.0
    %1043 = vmatprep.subr.mxu0 0.0
    %1044 = vmatpush1.msra.mxu0 0.0
    %1045 = vmatprep.subr.mxu0 0.0
    %1046 = vmatpush1.msra.mxu0 0.0
    %1047 = vmatprep.subr.mxu0 0.0
    %1048 = vmatpush1.msra.mxu0 0.0
    %1049 = vmatprep.subr.mxu0 0.0
    %1050 = vmatpush1.msra.mxu0 0.0
    %1051 = vmatprep.subr.mxu0 0.0
    %1052 = vmatpush1.msra.mxu0 0.0
    %1053 = vmatprep.subr.mxu0 0.0
    %1054 = vmatpush1.msra.mxu0 0.0
    %1055 = vmatprep.subr.mxu0 0.0
    %1056 = vmatpush1.msra.mxu0 0.0
    %1057 = vmatprep.subr.mxu0 0.0
    %1058 = vmatpush1.msra.mxu0 0.0
    %1059 = vmatprep.subr.mxu0 0.0
    %1060 = vmatpush1.msra.mxu0 0.0
    %1061 = vmatprep.subr.mxu0 0.0
    %1062 = vmatpush1.msra.mxu0 0.0
    %1063 = vmatprep.subr.mxu0 0.0
    %1064 = vmatpush1.msra.mxu0 0.0
    %1065 = vmatprep.subr.mxu0 0.0
    %1066 = vmatpush1.msra.mxu0 0.0
    %1067 = vmatprep.subr.mxu0 0.0
    %1068 = vmatpush1.msra.mxu0 0.0
    %1069 = vmatprep.subr.mxu0 0.0
    %1070 = vmatpush1.msra.mxu0 0.0
    %1071 = vmatprep.subr.mxu0 0.0
    %1072 = vmatpush1.msra.mxu0 0.0
    %1073 = vmatprep.mubr.f32.mxu0 0.0
    %1074 = vmatmul.mubr.f32.gmra.mrb[0].mxu0 %v1007
    %v1075 = vpop.f32.mrb[0].mxu0
    %v1076 = vadd.f32 0.0, %v1075
    %v1077 = vpop.f32.mrb[0].mxu0
    %v1078 = vadd.f32 0.0, %v1077
    %1079 = vdwg.mxu0
    %1080 = vmatprep.subr.mxu0 %v1000
    %1081 = vmatpush1.msra.mxu0 %v1001
    %1082 = vmatprep.subr.mxu0 0.0
    %1083 = vmatpush1.msra.mxu0 0.0
    %1084 = vmatprep.subr.mxu0 0.0
    %1085 = vmatpush1.msra.mxu0 0.0
    %1086 = vmatprep.subr.mxu0 0.0
    %1087 = vmatpush1.msra.mxu0 0.0
    %1088 = vmatprep.subr.mxu0 0.0
    %1089 = vmatpush1.msra.mxu0 0.0
    %1090 = vmatprep.subr.mxu0 0.0
    %1091 = vmatpush1.msra.mxu0 0.0
    %1092 = vmatprep.subr.mxu0 0.0
    %1093 = vmatpush1.msra.mxu0 0.0
    %1094 = vmatprep.subr.mxu0 0.0
    %1095 = vmatpush1.msra.mxu0 0.0
    %1096 = vmatprep.subr.mxu0 0.0
    %1097 = vmatpush1.msra.mxu0 0.0
    %1098 = vmatprep.subr.mxu0 0.0
    %1099 = vmatpush1.msra.mxu0 0.0
    %1100 = vmatprep.subr.mxu0 0.0
    %1101 = vmatpush1.msra.mxu0 0.0
    %1102 = vmatprep.subr.mxu0 0.0
    %1103 = vmatpush1.msra.mxu0 0.0
    %1104 = vmatprep.subr.mxu0 0.0
    %1105 = vmatpush1.msra.mxu0 0.0
    %1106 = vmatprep.subr.mxu0 0.0
    %1107 = vmatpush1.msra.mxu0 0.0
    %1108 = vmatprep.subr.mxu0 0.0
    %1109 = vmatpush1.msra.mxu0 0.0
    %1110 = vmatprep.subr.mxu0 0.0
    %1111 = vmatpush1.msra.mxu0 0.0
    %1112 = vmatprep.subr.mxu0 0.0
    %1113 = vmatpush1.msra.mxu0 0.0
    %1114 = vmatprep.subr.mxu0 0.0
    %1115 = vmatpush1.msra.mxu0 0.0
    %1116 = vmatprep.subr.mxu0 0.0
    %1117 = vmatpush1.msra.mxu0 0.0
    %1118 = vmatprep.subr.mxu0 0.0
    %1119 = vmatpush1.msra.mxu0 0.0
    %1120 = vmatprep.subr.mxu0 0.0
    %1121 = vmatpush1.msra.mxu0 0.0
    %1122 = vmatprep.subr.mxu0 0.0
    %1123 = vmatpush1.msra.mxu0 0.0
    %1124 = vmatprep.subr.mxu0 0.0
    %1125 = vmatpush1.msra.mxu0 0.0
    %1126 = vmatprep.subr.mxu0 0.0
    %1127 = vmatpush1.msra.mxu0 0.0
    %1128 = vmatprep.subr.mxu0 0.0
    %1129 = vmatpush1.msra.mxu0 0.0
    %1130 = vmatprep.subr.mxu0 0.0
    %1131 = vmatpush1.msra.mxu0 0.0
    %1132 = vmatprep.subr.mxu0 0.0
    %1133 = vmatpush1.msra.mxu0 0.0
    %1134 = vmatprep.subr.mxu0 0.0
    %1135 = vmatpush1.msra.mxu0 0.0
    %1136 = vmatprep.subr.mxu0 0.0
    %1137 = vmatpush1.msra.mxu0 0.0
    %1138 = vmatprep.subr.mxu0 0.0
    %1139 = vmatpush1.msra.mxu0 0.0
    %1140 = vmatprep.subr.mxu0 0.0
    %1141 = vmatpush1.msra.mxu0 0.0
    %1142 = vmatprep.subr.mxu0 0.0
    %1143 = vmatpush1.msra.mxu0 0.0
    %1144 = vmatprep.mubr.f32.mxu0 0.0
    %1145 = vmatmul.mubr.f32.gmra.mrb[0].mxu0 %v1007
    %v1146 = vpop.f32.mrb[0].mxu0
    %v1147 = vadd.f32 0.0, %v1146
    %v1148 = vpop.f32.mrb[0].mxu0
    %v1149 = vadd.f32 0.0, %v1148
    %1150 = vdwg.mxu0
    %1151 = vmatprep.subr.mxu0 %v998
    %1152 = vmatpush1.msra.mxu0 %v999
    %1153 = vmatprep.subr.mxu0 0.0
    %1154 = vmatpush1.msra.mxu0 0.0
    %1155 = vmatprep.subr.mxu0 0.0
    %1156 = vmatpush1.msra.mxu0 0.0
    %1157 = vmatprep.subr.mxu0 0.0
    %1158 = vmatpush1.msra.mxu0 0.0
    %1159 = vmatprep.subr.mxu0 0.0
    %1160 = vmatpush1.msra.mxu0 0.0
    %1161 = vmatprep.subr.mxu0 0.0
    %1162 = vmatpush1.msra.mxu0 0.0
    %1163 = vmatprep.subr.mxu0 0.0
    %1164 = vmatpush1.msra.mxu0 0.0
    %1165 = vmatprep.subr.mxu0 0.0
    %1166 = vmatpush1.msra.mxu0 0.0
    %1167 = vmatprep.subr.mxu0 0.0
    %1168 = vmatpush1.msra.mxu0 0.0
    %1169 = vmatprep.subr.mxu0 0.0
    %1170 = vmatpush1.msra.mxu0 0.0
    %1171 = vmatprep.subr.mxu0 0.0
    %1172 = vmatpush1.msra.mxu0 0.0
    %1173 = vmatprep.subr.mxu0 0.0
    %1174 = vmatpush1.msra.mxu0 0.0
    %1175 = vmatprep.subr.mxu0 0.0
    %1176 = vmatpush1.msra.mxu0 0.0
    %1177 = vmatprep.subr.mxu0 0.0
    %1178 = vmatpush1.msra.mxu0 0.0
    %1179 = vmatprep.subr.mxu0 0.0
    %1180 = vmatpush1.msra.mxu0 0.0
    %1181 = vmatprep.subr.mxu0 0.0
    %1182 = vmatpush1.msra.mxu0 0.0
    %1183 = vmatprep.subr.mxu0 0.0
    %1184 = vmatpush1.msra.mxu0 0.0
    %1185 = vmatprep.subr.mxu0 0.0
    %1186 = vmatpush1.msra.mxu0 0.0
    %1187 = vmatprep.subr.mxu0 0.0
    %1188 = vmatpush1.msra.mxu0 0.0
    %1189 = vmatprep.subr.mxu0 0.0
    %1190 = vmatpush1.msra.mxu0 0.0
    %1191 = vmatprep.subr.mxu0 0.0
    %1192 = vmatpush1.msra.mxu0 0.0
    %1193 = vmatprep.subr.mxu0 0.0
    %1194 = vmatpush1.msra.mxu0 0.0
    %1195 = vmatprep.subr.mxu0 0.0
    %1196 = vmatpush1.msra.mxu0 0.0
    %1197 = vmatprep.subr.mxu0 0.0
    %1198 = vmatpush1.msra.mxu0 0.0
    %1199 = vmatprep.subr.mxu0 0.0
    %1200 = vmatpush1.msra.mxu0 0.0
    %1201 = vmatprep.subr.mxu0 0.0
    %1202 = vmatpush1.msra.mxu0 0.0
    %1203 = vmatprep.subr.mxu0 0.0
    %1204 = vmatpush1.msra.mxu0 0.0
    %1205 = vmatprep.subr.mxu0 0.0
    %1206 = vmatpush1.msra.mxu0 0.0
    %1207 = vmatprep.subr.mxu0 0.0
    %1208 = vmatpush1.msra.mxu0 0.0
    %1209 = vmatprep.subr.mxu0 0.0
    %1210 = vmatpush1.msra.mxu0 0.0
    %1211 = vmatprep.subr.mxu0 0.0
    %1212 = vmatpush1.msra.mxu0 0.0
    %1213 = vmatprep.subr.mxu0 0.0
    %1214 = vmatpush1.msra.mxu0 0.0
    %1215 = vmatprep.mubr.f32.mxu0 0.0
    %1216 = vmatmul.mubr.f32.gmra.mrb[0].mxu0 %v1007
    %v1217 = vpop.f32.mrb[0].mxu0
    %v1218 = vadd.f32 0.0, %v1217
    %v1219 = vpop.f32.mrb[0].mxu0
    %v1220 = vadd.f32 0.0, %v1219
    %1221 = vdwg.mxu0
    %v1222 = vadd.f32 %v979, %v1076
    %v1223 = vadd.f32 %v980, %v1078
    %v1224 = vadd.f32 %v981, %v1147
    %v1225 = vadd.f32 %v982, %v1149
    %v1226 = vadd.f32 %v983, %v1218
    %v1227 = vadd.f32 %v984, %v1220
    %1228 = vrot.lane.b32.xlu0 %v34, 127
    %v1229 = vpop.permute.xlu0 %1228
    %1230 = vrot.lane.b32.xlu0 %v35, 127
    %v1231 = vpop.permute.xlu0 %1230
    %1232 = vrot.lane.b32.xlu0 %v36, 127
    %v1233 = vpop.permute.xlu0 %1232
    %1234 = vrot.lane.b32.xlu0 %v37, 127
    %v1235 = vpop.permute.xlu0 %1234
    %1236 = vrot.lane.b32.xlu0 %v38, 127
    %v1237 = vpop.permute.xlu0 %1236
    %1238 = vrot.lane.b32.xlu0 %v39, 127
    %v1239 = vpop.permute.xlu0 %1238
    %vm1240 = vcmp.lt.s32.totalorder %v57, 127
    %v1241 = vsel %vm1240, %v1237, %v1239
    %v1242 = vsel %vm1240, %v1235, %v1237
    %v1243 = vsel %vm1240, %v1233, %v1235
    %v1244 = vsel %vm1240, %v1231, %v1233
    %v1245 = vsel %vm1240, %v1229, %v1231
    %v1246 = vsel %vm1240, %v1239, %v1229
    %s1247 = scalar_lea.vmem %s2, 40
    %v1248 = vld [vmem:[%s1247] sm:$0xff]
    %v1250 = vsel %vm66, %v1248, 0
    %1252 = vmatprep.subr.mxu0 %v1244
    %1253 = vmatpush1.msra.mxu0 %v1245
    %1254 = vmatprep.subr.mxu0 0.0
    %1255 = vmatpush1.msra.mxu0 0.0
    %1256 = vmatprep.subr.mxu0 0.0
    %1257 = vmatpush1.msra.mxu0 0.0
    %1258 = vmatprep.subr.mxu0 0.0
    %1259 = vmatpush1.msra.mxu0 0.0
    %1260 = vmatprep.subr.mxu0 0.0
    %1261 = vmatpush1.msra.mxu0 0.0
    %1262 = vmatprep.subr.mxu0 0.0
    %1263 = vmatpush1.msra.mxu0 0.0
    %1264 = vmatprep.subr.mxu0 0.0
    %1265 = vmatpush1.msra.mxu0 0.0
    %1266 = vmatprep.subr.mxu0 0.0
    %1267 = vmatpush1.msra.mxu0 0.0
    %1268 = vmatprep.subr.mxu0 0.0
    %1269 = vmatpush1.msra.mxu0 0.0
    %1270 = vmatprep.subr.mxu0 0.0
    %1271 = vmatpush1.msra.mxu0 0.0
    %1272 = vmatprep.subr.mxu0 0.0
    %1273 = vmatpush1.msra.mxu0 0.0
    %1274 = vmatprep.subr.mxu0 0.0
    %1275 = vmatpush1.msra.mxu0 0.0
    %1276 = vmatprep.subr.mxu0 0.0
    %1277 = vmatpush1.msra.mxu0 0.0
    %1278 = vmatprep.subr.mxu0 0.0
    %1279 = vmatpush1.msra.mxu0 0.0
    %1280 = vmatprep.subr.mxu0 0.0
    %1281 = vmatpush1.msra.mxu0 0.0
    %1282 = vmatprep.subr.mxu0 0.0
    %1283 = vmatpush1.msra.mxu0 0.0
    %1284 = vmatprep.subr.mxu0 0.0
    %1285 = vmatpush1.msra.mxu0 0.0
    %1286 = vmatprep.subr.mxu0 0.0
    %1287 = vmatpush1.msra.mxu0 0.0
    %1288 = vmatprep.subr.mxu0 0.0
    %1289 = vmatpush1.msra.mxu0 0.0
    %1290 = vmatprep.subr.mxu0 0.0
    %1291 = vmatpush1.msra.mxu0 0.0
    %1292 = vmatprep.subr.mxu0 0.0
    %1293 = vmatpush1.msra.mxu0 0.0
    %1294 = vmatprep.subr.mxu0 0.0
    %1295 = vmatpush1.msra.mxu0 0.0
    %1296 = vmatprep.subr.mxu0 0.0
    %1297 = vmatpush1.msra.mxu0 0.0
    %1298 = vmatprep.subr.mxu0 0.0
    %1299 = vmatpush1.msra.mxu0 0.0
    %1300 = vmatprep.subr.mxu0 0.0
    %1301 = vmatpush1.msra.mxu0 0.0
    %1302 = vmatprep.subr.mxu0 0.0
    %1303 = vmatpush1.msra.mxu0 0.0
    %1304 = vmatprep.subr.mxu0 0.0
    %1305 = vmatpush1.msra.mxu0 0.0
    %1306 = vmatprep.subr.mxu0 0.0
    %1307 = vmatpush1.msra.mxu0 0.0
    %1308 = vmatprep.subr.mxu0 0.0
    %1309 = vmatpush1.msra.mxu0 0.0
    %1310 = vmatprep.subr.mxu0 0.0
    %1311 = vmatpush1.msra.mxu0 0.0
    %1312 = vmatprep.subr.mxu0 0.0
    %1313 = vmatpush1.msra.mxu0 0.0
    %1314 = vmatprep.subr.mxu0 0.0
    %1315 = vmatpush1.msra.mxu0 0.0
    %1316 = vmatprep.mubr.f32.mxu0 0.0
    %1317 = vmatmul.mubr.f32.gmra.mrb[0].mxu0 %v1250
    %v1318 = vpop.f32.mrb[0].mxu0
    %v1319 = vadd.f32 0.0, %v1318
    %v1320 = vpop.f32.mrb[0].mxu0
    %v1321 = vadd.f32 0.0, %v1320
    %1322 = vdwg.mxu0
    %1323 = vmatprep.subr.mxu0 %v1242
    %1324 = vmatpush1.msra.mxu0 %v1243
    %1325 = vmatprep.subr.mxu0 0.0
    %1326 = vmatpush1.msra.mxu0 0.0
    %1327 = vmatprep.subr.mxu0 0.0
    %1328 = vmatpush1.msra.mxu0 0.0
    %1329 = vmatprep.subr.mxu0 0.0
    %1330 = vmatpush1.msra.mxu0 0.0
    %1331 = vmatprep.subr.mxu0 0.0
    %1332 = vmatpush1.msra.mxu0 0.0
    %1333 = vmatprep.subr.mxu0 0.0
    %1334 = vmatpush1.msra.mxu0 0.0
    %1335 = vmatprep.subr.mxu0 0.0
    %1336 = vmatpush1.msra.mxu0 0.0
    %1337 = vmatprep.subr.mxu0 0.0
    %1338 = vmatpush1.msra.mxu0 0.0
    %1339 = vmatprep.subr.mxu0 0.0
    %1340 = vmatpush1.msra.mxu0 0.0
    %1341 = vmatprep.subr.mxu0 0.0
    %1342 = vmatpush1.msra.mxu0 0.0
    %1343 = vmatprep.subr.mxu0 0.0
    %1344 = vmatpush1.msra.mxu0 0.0
    %1345 = vmatprep.subr.mxu0 0.0
    %1346 = vmatpush1.msra.mxu0 0.0
    %1347 = vmatprep.subr.mxu0 0.0
    %1348 = vmatpush1.msra.mxu0 0.0
    %1349 = vmatprep.subr.mxu0 0.0
    %1350 = vmatpush1.msra.mxu0 0.0
    %1351 = vmatprep.subr.mxu0 0.0
    %1352 = vmatpush1.msra.mxu0 0.0
    %1353 = vmatprep.subr.mxu0 0.0
    %1354 = vmatpush1.msra.mxu0 0.0
    %1355 = vmatprep.subr.mxu0 0.0
    %1356 = vmatpush1.msra.mxu0 0.0
    %1357 = vmatprep.subr.mxu0 0.0
    %1358 = vmatpush1.msra.mxu0 0.0
    %1359 = vmatprep.subr.mxu0 0.0
    %1360 = vmatpush1.msra.mxu0 0.0
    %1361 = vmatprep.subr.mxu0 0.0
    %1362 = vmatpush1.msra.mxu0 0.0
    %1363 = vmatprep.subr.mxu0 0.0
    %1364 = vmatpush1.msra.mxu0 0.0
    %1365 = vmatprep.subr.mxu0 0.0
    %1366 = vmatpush1.msra.mxu0 0.0
    %1367 = vmatprep.subr.mxu0 0.0
    %1368 = vmatpush1.msra.mxu0 0.0
    %1369 = vmatprep.subr.mxu0 0.0
    %1370 = vmatpush1.msra.mxu0 0.0
    %1371 = vmatprep.subr.mxu0 0.0
    %1372 = vmatpush1.msra.mxu0 0.0
    %1373 = vmatprep.subr.mxu0 0.0
    %1374 = vmatpush1.msra.mxu0 0.0
    %1375 = vmatprep.subr.mxu0 0.0
    %1376 = vmatpush1.msra.mxu0 0.0
    %1377 = vmatprep.subr.mxu0 0.0
    %1378 = vmatpush1.msra.mxu0 0.0
    %1379 = vmatprep.subr.mxu0 0.0
    %1380 = vmatpush1.msra.mxu0 0.0
    %1381 = vmatprep.subr.mxu0 0.0
    %1382 = vmatpush1.msra.mxu0 0.0
    %1383 = vmatprep.subr.mxu0 0.0
    %1384 = vmatpush1.msra.mxu0 0.0
    %1385 = vmatprep.subr.mxu0 0.0
    %1386 = vmatpush1.msra.mxu0 0.0
    %1387 = vmatprep.mubr.f32.mxu0 0.0
    %1388 = vmatmul.mubr.f32.gmra.mrb[0].mxu0 %v1250
    %v1389 = vpop.f32.mrb[0].mxu0
    %v1390 = vadd.f32 0.0, %v1389
    %v1391 = vpop.f32.mrb[0].mxu0
    %v1392 = vadd.f32 0.0, %v1391
    %1393 = vdwg.mxu0
    %1394 = vmatprep.subr.mxu0 %v1246
    %1395 = vmatpush1.msra.mxu0 %v1241
    %1396 = vmatprep.subr.mxu0 0.0
    %1397 = vmatpush1.msra.mxu0 0.0
    %1398 = vmatprep.subr.mxu0 0.0
    %1399 = vmatpush1.msra.mxu0 0.0
    %1400 = vmatprep.subr.mxu0 0.0
    %1401 = vmatpush1.msra.mxu0 0.0
    %1402 = vmatprep.subr.mxu0 0.0
    %1403 = vmatpush1.msra.mxu0 0.0
    %1404 = vmatprep.subr.mxu0 0.0
    %1405 = vmatpush1.msra.mxu0 0.0
    %1406 = vmatprep.subr.mxu0 0.0
    %1407 = vmatpush1.msra.mxu0 0.0
    %1408 = vmatprep.subr.mxu0 0.0
    %1409 = vmatpush1.msra.mxu0 0.0
    %1410 = vmatprep.subr.mxu0 0.0
    %1411 = vmatpush1.msra.mxu0 0.0
    %1412 = vmatprep.subr.mxu0 0.0
    %1413 = vmatpush1.msra.mxu0 0.0
    %1414 = vmatprep.subr.mxu0 0.0
    %1415 = vmatpush1.msra.mxu0 0.0
    %1416 = vmatprep.subr.mxu0 0.0
    %1417 = vmatpush1.msra.mxu0 0.0
    %1418 = vmatprep.subr.mxu0 0.0
    %1419 = vmatpush1.msra.mxu0 0.0
    %1420 = vmatprep.subr.mxu0 0.0
    %1421 = vmatpush1.msra.mxu0 0.0
    %1422 = vmatprep.subr.mxu0 0.0
    %1423 = vmatpush1.msra.mxu0 0.0
    %1424 = vmatprep.subr.mxu0 0.0
    %1425 = vmatpush1.msra.mxu0 0.0
    %1426 = vmatprep.subr.mxu0 0.0
    %1427 = vmatpush1.msra.mxu0 0.0
    %1428 = vmatprep.subr.mxu0 0.0
    %1429 = vmatpush1.msra.mxu0 0.0
    %1430 = vmatprep.subr.mxu0 0.0
    %1431 = vmatpush1.msra.mxu0 0.0
    %1432 = vmatprep.subr.mxu0 0.0
    %1433 = vmatpush1.msra.mxu0 0.0
    %1434 = vmatprep.subr.mxu0 0.0
    %1435 = vmatpush1.msra.mxu0 0.0
    %1436 = vmatprep.subr.mxu0 0.0
    %1437 = vmatpush1.msra.mxu0 0.0
    %1438 = vmatprep.subr.mxu0 0.0
    %1439 = vmatpush1.msra.mxu0 0.0
    %1440 = vmatprep.subr.mxu0 0.0
    %1441 = vmatpush1.msra.mxu0 0.0
    %1442 = vmatprep.subr.mxu0 0.0
    %1443 = vmatpush1.msra.mxu0 0.0
    %1444 = vmatprep.subr.mxu0 0.0
    %1445 = vmatpush1.msra.mxu0 0.0
    %1446 = vmatprep.subr.mxu0 0.0
    %1447 = vmatpush1.msra.mxu0 0.0
    %1448 = vmatprep.subr.mxu0 0.0
    %1449 = vmatpush1.msra.mxu0 0.0
    %1450 = vmatprep.subr.mxu0 0.0
    %1451 = vmatpush1.msra.mxu0 0.0
    %1452 = vmatprep.subr.mxu0 0.0
    %1453 = vmatpush1.msra.mxu0 0.0
    %1454 = vmatprep.subr.mxu0 0.0
    %1455 = vmatpush1.msra.mxu0 0.0
    %1456 = vmatprep.subr.mxu0 0.0
    %1457 = vmatpush1.msra.mxu0 0.0
    %1458 = vmatprep.mubr.f32.mxu0 0.0
    %1459 = vmatmul.mubr.f32.gmra.mrb[0].mxu0 %v1250
    %v1460 = vpop.f32.mrb[0].mxu0
    %v1461 = vadd.f32 0.0, %v1460
    %v1462 = vpop.f32.mrb[0].mxu0
    %v1463 = vadd.f32 0.0, %v1462
    %1464 = vdwg.mxu0
    %v1465 = vadd.f32 %v1222, %v1319
    %v1466 = vadd.f32 %v1223, %v1321
    %v1467 = vadd.f32 %v1224, %v1390
    %v1468 = vadd.f32 %v1225, %v1392
    %v1469 = vadd.f32 %v1226, %v1461
    %v1470 = vadd.f32 %v1227, %v1463
    %1471 = vrot.lane.b32.xlu0 %v34, 111
    %v1472 = vpop.permute.xlu0 %1471
    %1473 = vrot.lane.b32.xlu0 %v35, 111
    %v1474 = vpop.permute.xlu0 %1473
    %1475 = vrot.lane.b32.xlu0 %v36, 111
    %v1476 = vpop.permute.xlu0 %1475
    %1477 = vrot.lane.b32.xlu0 %v37, 111
    %v1478 = vpop.permute.xlu0 %1477
    %1479 = vrot.lane.b32.xlu0 %v38, 111
    %v1480 = vpop.permute.xlu0 %1479
    %1481 = vrot.lane.b32.xlu0 %v39, 111
    %v1482 = vpop.permute.xlu0 %1481
    %vm1483 = vcmp.lt.s32.totalorder %v57, 111
    %v1484 = vsel %vm1483, %v1480, %v1482
    %v1485 = vsel %vm1483, %v1478, %v1480
    %v1486 = vsel %vm1483, %v1476, %v1478
    %v1487 = vsel %vm1483, %v1474, %v1476
    %v1488 = vsel %vm1483, %v1472, %v1474
    %v1489 = vsel %vm1483, %v1482, %v1472
    %s1490 = scalar_lea.vmem %s2, 48
    %v1491 = vld [vmem:[%s1490] sm:$0xff]
    %v1493 = vsel %vm66, %v1491, 0
    %1495 = vmatprep.subr.mxu0 %v1487
    %1496 = vmatpush1.msra.mxu0 %v1488
    %1497 = vmatprep.subr.mxu0 0.0
    %1498 = vmatpush1.msra.mxu0 0.0
    %1499 = vmatprep.subr.mxu0 0.0
    %1500 = vmatpush1.msra.mxu0 0.0
    %1501 = vmatprep.subr.mxu0 0.0
    %1502 = vmatpush1.msra.mxu0 0.0
    %1503 = vmatprep.subr.mxu0 0.0
    %1504 = vmatpush1.msra.mxu0 0.0
    %1505 = vmatprep.subr.mxu0 0.0
    %1506 = vmatpush1.msra.mxu0 0.0
    %1507 = vmatprep.subr.mxu0 0.0
    %1508 = vmatpush1.msra.mxu0 0.0
    %1509 = vmatprep.subr.mxu0 0.0
    %1510 = vmatpush1.msra.mxu0 0.0
    %1511 = vmatprep.subr.mxu0 0.0
    %1512 = vmatpush1.msra.mxu0 0.0
    %1513 = vmatprep.subr.mxu0 0.0
    %1514 = vmatpush1.msra.mxu0 0.0
    %1515 = vmatprep.subr.mxu0 0.0
    %1516 = vmatpush1.msra.mxu0 0.0
    %1517 = vmatprep.subr.mxu0 0.0
    %1518 = vmatpush1.msra.mxu0 0.0
    %1519 = vmatprep.subr.mxu0 0.0
    %1520 = vmatpush1.msra.mxu0 0.0
    %1521 = vmatprep.subr.mxu0 0.0
    %1522 = vmatpush1.msra.mxu0 0.0
    %1523 = vmatprep.subr.mxu0 0.0
    %1524 = vmatpush1.msra.mxu0 0.0
    %1525 = vmatprep.subr.mxu0 0.0
    %1526 = vmatpush1.msra.mxu0 0.0
    %1527 = vmatprep.subr.mxu0 0.0
    %1528 = vmatpush1.msra.mxu0 0.0
    %1529 = vmatprep.subr.mxu0 0.0
    %1530 = vmatpush1.msra.mxu0 0.0
    %1531 = vmatprep.subr.mxu0 0.0
    %1532 = vmatpush1.msra.mxu0 0.0
    %1533 = vmatprep.subr.mxu0 0.0
    %1534 = vmatpush1.msra.mxu0 0.0
    %1535 = vmatprep.subr.mxu0 0.0
    %1536 = vmatpush1.msra.mxu0 0.0
    %1537 = vmatprep.subr.mxu0 0.0
    %1538 = vmatpush1.msra.mxu0 0.0
    %1539 = vmatprep.subr.mxu0 0.0
    %1540 = vmatpush1.msra.mxu0 0.0
    %1541 = vmatprep.subr.mxu0 0.0
    %1542 = vmatpush1.msra.mxu0 0.0
    %1543 = vmatprep.subr.mxu0 0.0
    %1544 = vmatpush1.msra.mxu0 0.0
    %1545 = vmatprep.subr.mxu0 0.0
    %1546 = vmatpush1.msra.mxu0 0.0
    %1547 = vmatprep.subr.mxu0 0.0
    %1548 = vmatpush1.msra.mxu0 0.0
    %1549 = vmatprep.subr.mxu0 0.0
    %1550 = vmatpush1.msra.mxu0 0.0
    %1551 = vmatprep.subr.mxu0 0.0
    %1552 = vmatpush1.msra.mxu0 0.0
    %1553 = vmatprep.subr.mxu0 0.0
    %1554 = vmatpush1.msra.mxu0 0.0
    %1555 = vmatprep.subr.mxu0 0.0
    %1556 = vmatpush1.msra.mxu0 0.0
    %1557 = vmatprep.subr.mxu0 0.0
    %1558 = vmatpush1.msra.mxu0 0.0
    %1559 = vmatprep.mubr.f32.mxu0 0.0
    %1560 = vmatmul.mubr.f32.gmra.mrb[0].mxu0 %v1493
    %v1561 = vpop.f32.mrb[0].mxu0
    %v1562 = vadd.f32 0.0, %v1561
    %v1563 = vpop.f32.mrb[0].mxu0
    %v1564 = vadd.f32 0.0, %v1563
    %1565 = vdwg.mxu0
    %1566 = vmatprep.subr.mxu0 %v1485
    %1567 = vmatpush1.msra.mxu0 %v1486
    %1568 = vmatprep.subr.mxu0 0.0
    %1569 = vmatpush1.msra.mxu0 0.0
    %1570 = vmatprep.subr.mxu0 0.0
    %1571 = vmatpush1.msra.mxu0 0.0
    %1572 = vmatprep.subr.mxu0 0.0
    %1573 = vmatpush1.msra.mxu0 0.0
    %1574 = vmatprep.subr.mxu0 0.0
    %1575 = vmatpush1.msra.mxu0 0.0
    %1576 = vmatprep.subr.mxu0 0.0
    %1577 = vmatpush1.msra.mxu0 0.0
    %1578 = vmatprep.subr.mxu0 0.0
    %1579 = vmatpush1.msra.mxu0 0.0
    %1580 = vmatprep.subr.mxu0 0.0
    %1581 = vmatpush1.msra.mxu0 0.0
    %1582 = vmatprep.subr.mxu0 0.0
    %1583 = vmatpush1.msra.mxu0 0.0
    %1584 = vmatprep.subr.mxu0 0.0
    %1585 = vmatpush1.msra.mxu0 0.0
    %1586 = vmatprep.subr.mxu0 0.0
    %1587 = vmatpush1.msra.mxu0 0.0
    %1588 = vmatprep.subr.mxu0 0.0
    %1589 = vmatpush1.msra.mxu0 0.0
    %1590 = vmatprep.subr.mxu0 0.0
    %1591 = vmatpush1.msra.mxu0 0.0
    %1592 = vmatprep.subr.mxu0 0.0
    %1593 = vmatpush1.msra.mxu0 0.0
    %1594 = vmatprep.subr.mxu0 0.0
    %1595 = vmatpush1.msra.mxu0 0.0
    %1596 = vmatprep.subr.mxu0 0.0
    %1597 = vmatpush1.msra.mxu0 0.0
    %1598 = vmatprep.subr.mxu0 0.0
    %1599 = vmatpush1.msra.mxu0 0.0
    %1600 = vmatprep.subr.mxu0 0.0
    %1601 = vmatpush1.msra.mxu0 0.0
    %1602 = vmatprep.subr.mxu0 0.0
    %1603 = vmatpush1.msra.mxu0 0.0
    %1604 = vmatprep.subr.mxu0 0.0
    %1605 = vmatpush1.msra.mxu0 0.0
    %1606 = vmatprep.subr.mxu0 0.0
    %1607 = vmatpush1.msra.mxu0 0.0
    %1608 = vmatprep.subr.mxu0 0.0
    %1609 = vmatpush1.msra.mxu0 0.0
    %1610 = vmatprep.subr.mxu0 0.0
    %1611 = vmatpush1.msra.mxu0 0.0
    %1612 = vmatprep.subr.mxu0 0.0
    %1613 = vmatpush1.msra.mxu0 0.0
    %1614 = vmatprep.subr.mxu0 0.0
    %1615 = vmatpush1.msra.mxu0 0.0
    %1616 = vmatprep.subr.mxu0 0.0
    %1617 = vmatpush1.msra.mxu0 0.0
    %1618 = vmatprep.subr.mxu0 0.0
    %1619 = vmatpush1.msra.mxu0 0.0
    %1620 = vmatprep.subr.mxu0 0.0
    %1621 = vmatpush1.msra.mxu0 0.0
    %1622 = vmatprep.subr.mxu0 0.0
    %1623 = vmatpush1.msra.mxu0 0.0
    %1624 = vmatprep.subr.mxu0 0.0
    %1625 = vmatpush1.msra.mxu0 0.0
    %1626 = vmatprep.subr.mxu0 0.0
    %1627 = vmatpush1.msra.mxu0 0.0
    %1628 = vmatprep.subr.mxu0 0.0
    %1629 = vmatpush1.msra.mxu0 0.0
    %1630 = vmatprep.mubr.f32.mxu0 0.0
    %1631 = vmatmul.mubr.f32.gmra.mrb[0].mxu0 %v1493
    %v1632 = vpop.f32.mrb[0].mxu0
    %v1633 = vadd.f32 0.0, %v1632
    %v1634 = vpop.f32.mrb[0].mxu0
    %v1635 = vadd.f32 0.0, %v1634
    %1636 = vdwg.mxu0
    %1637 = vmatprep.subr.mxu0 %v1489
    %1638 = vmatpush1.msra.mxu0 %v1484
    %1639 = vmatprep.subr.mxu0 0.0
    %1640 = vmatpush1.msra.mxu0 0.0
    %1641 = vmatprep.subr.mxu0 0.0
    %1642 = vmatpush1.msra.mxu0 0.0
    %1643 = vmatprep.subr.mxu0 0.0
    %1644 = vmatpush1.msra.mxu0 0.0
    %1645 = vmatprep.subr.mxu0 0.0
    %1646 = vmatpush1.msra.mxu0 0.0
    %1647 = vmatprep.subr.mxu0 0.0
    %1648 = vmatpush1.msra.mxu0 0.0
    %1649 = vmatprep.subr.mxu0 0.0
    %1650 = vmatpush1.msra.mxu0 0.0
    %1651 = vmatprep.subr.mxu0 0.0
    %1652 = vmatpush1.msra.mxu0 0.0
    %1653 = vmatprep.subr.mxu0 0.0
    %1654 = vmatpush1.msra.mxu0 0.0
    %1655 = vmatprep.subr.mxu0 0.0
    %1656 = vmatpush1.msra.mxu0 0.0
    %1657 = vmatprep.subr.mxu0 0.0
    %1658 = vmatpush1.msra.mxu0 0.0
    %1659 = vmatprep.subr.mxu0 0.0
    %1660 = vmatpush1.msra.mxu0 0.0
    %1661 = vmatprep.subr.mxu0 0.0
    %1662 = vmatpush1.msra.mxu0 0.0
    %1663 = vmatprep.subr.mxu0 0.0
    %1664 = vmatpush1.msra.mxu0 0.0
    %1665 = vmatprep.subr.mxu0 0.0
    %1666 = vmatpush1.msra.mxu0 0.0
    %1667 = vmatprep.subr.mxu0 0.0
    %1668 = vmatpush1.msra.mxu0 0.0
    %1669 = vmatprep.subr.mxu0 0.0
    %1670 = vmatpush1.msra.mxu0 0.0
    %1671 = vmatprep.subr.mxu0 0.0
    %1672 = vmatpush1.msra.mxu0 0.0
    %1673 = vmatprep.subr.mxu0 0.0
    %1674 = vmatpush1.msra.mxu0 0.0
    %1675 = vmatprep.subr.mxu0 0.0
    %1676 = vmatpush1.msra.mxu0 0.0
    %1677 = vmatprep.subr.mxu0 0.0
    %1678 = vmatpush1.msra.mxu0 0.0
    %1679 = vmatprep.subr.mxu0 0.0
    %1680 = vmatpush1.msra.mxu0 0.0
    %1681 = vmatprep.subr.mxu0 0.0
    %1682 = vmatpush1.msra.mxu0 0.0
    %1683 = vmatprep.subr.mxu0 0.0
    %1684 = vmatpush1.msra.mxu0 0.0
    %1685 = vmatprep.subr.mxu0 0.0
    %1686 = vmatpush1.msra.mxu0 0.0
    %1687 = vmatprep.subr.mxu0 0.0
    %1688 = vmatpush1.msra.mxu0 0.0
    %1689 = vmatprep.subr.mxu0 0.0
    %1690 = vmatpush1.msra.mxu0 0.0
    %1691 = vmatprep.subr.mxu0 0.0
    %1692 = vmatpush1.msra.mxu0 0.0
    %1693 = vmatprep.subr.mxu0 0.0
    %1694 = vmatpush1.msra.mxu0 0.0
    %1695 = vmatprep.subr.mxu0 0.0
    %1696 = vmatpush1.msra.mxu0 0.0
    %1697 = vmatprep.subr.mxu0 0.0
    %1698 = vmatpush1.msra.mxu0 0.0
    %1699 = vmatprep.subr.mxu0 0.0
    %1700 = vmatpush1.msra.mxu0 0.0
    %1701 = vmatprep.mubr.f32.mxu0 0.0
    %1702 = vmatmul.mubr.f32.gmra.mrb[0].mxu0 %v1493
    %v1703 = vpop.f32.mrb[0].mxu0
    %v1704 = vadd.f32 0.0, %v1703
    %v1705 = vpop.f32.mrb[0].mxu0
    %v1706 = vadd.f32 0.0, %v1705
    %1707 = vdwg.mxu0
    %v1708 = vadd.f32 %v1465, %v1562
    %v1709 = vadd.f32 %v1466, %v1564
    %v1710 = vadd.f32 %v1467, %v1633
    %v1711 = vadd.f32 %v1468, %v1635
    %v1712 = vadd.f32 %v1469, %v1704
    %v1713 = vadd.f32 %v1470, %v1706
    %1714 = vrot.lane.b32.xlu0 %v34, 110
    %v1715 = vpop.permute.xlu0 %1714
    %1716 = vrot.lane.b32.xlu0 %v35, 110
    %v1717 = vpop.permute.xlu0 %1716
    %1718 = vrot.lane.b32.xlu0 %v36, 110
    %v1719 = vpop.permute.xlu0 %1718
    %1720 = vrot.lane.b32.xlu0 %v37, 110
    %v1721 = vpop.permute.xlu0 %1720
    %1722 = vrot.lane.b32.xlu0 %v38, 110
    %v1723 = vpop.permute.xlu0 %1722
    %1724 = vrot.lane.b32.xlu0 %v39, 110
    %v1725 = vpop.permute.xlu0 %1724
    %vm1726 = vcmp.lt.s32.totalorder %v57, 110
    %v1727 = vsel %vm1726, %v1723, %v1725
    %v1728 = vsel %vm1726, %v1721, %v1723
    %v1729 = vsel %vm1726, %v1719, %v1721
    %v1730 = vsel %vm1726, %v1717, %v1719
    %v1731 = vsel %vm1726, %v1715, %v1717
    %v1732 = vsel %vm1726, %v1725, %v1715
    %s1733 = scalar_lea.vmem %s2, 56
    %v1734 = vld [vmem:[%s1733] sm:$0xff]
    %v1736 = vsel %vm66, %v1734, 0
    %1738 = vmatprep.subr.mxu0 %v1730
    %1739 = vmatpush1.msra.mxu0 %v1731
    %1740 = vmatprep.subr.mxu0 0.0
    %1741 = vmatpush1.msra.mxu0 0.0
    %1742 = vmatprep.subr.mxu0 0.0
    %1743 = vmatpush1.msra.mxu0 0.0
    %1744 = vmatprep.subr.mxu0 0.0
    %1745 = vmatpush1.msra.mxu0 0.0
    %1746 = vmatprep.subr.mxu0 0.0
    %1747 = vmatpush1.msra.mxu0 0.0
    %1748 = vmatprep.subr.mxu0 0.0
    %1749 = vmatpush1.msra.mxu0 0.0
    %1750 = vmatprep.subr.mxu0 0.0
    %1751 = vmatpush1.msra.mxu0 0.0
    %1752 = vmatprep.subr.mxu0 0.0
    %1753 = vmatpush1.msra.mxu0 0.0
    %1754 = vmatprep.subr.mxu0 0.0
    %1755 = vmatpush1.msra.mxu0 0.0
    %1756 = vmatprep.subr.mxu0 0.0
    %1757 = vmatpush1.msra.mxu0 0.0
    %1758 = vmatprep.subr.mxu0 0.0
    %1759 = vmatpush1.msra.mxu0 0.0
    %1760 = vmatprep.subr.mxu0 0.0
    %1761 = vmatpush1.msra.mxu0 0.0
    %1762 = vmatprep.subr.mxu0 0.0
    %1763 = vmatpush1.msra.mxu0 0.0
    %1764 = vmatprep.subr.mxu0 0.0
    %1765 = vmatpush1.msra.mxu0 0.0
    %1766 = vmatprep.subr.mxu0 0.0
    %1767 = vmatpush1.msra.mxu0 0.0
    %1768 = vmatprep.subr.mxu0 0.0
    %1769 = vmatpush1.msra.mxu0 0.0
    %1770 = vmatprep.subr.mxu0 0.0
    %1771 = vmatpush1.msra.mxu0 0.0
    %1772 = vmatprep.subr.mxu0 0.0
    %1773 = vmatpush1.msra.mxu0 0.0
    %1774 = vmatprep.subr.mxu0 0.0
    %1775 = vmatpush1.msra.mxu0 0.0
    %1776 = vmatprep.subr.mxu0 0.0
    %1777 = vmatpush1.msra.mxu0 0.0
    %1778 = vmatprep.subr.mxu0 0.0
    %1779 = vmatpush1.msra.mxu0 0.0
    %1780 = vmatprep.subr.mxu0 0.0
    %1781 = vmatpush1.msra.mxu0 0.0
    %1782 = vmatprep.subr.mxu0 0.0
    %1783 = vmatpush1.msra.mxu0 0.0
    %1784 = vmatprep.subr.mxu0 0.0
    %1785 = vmatpush1.msra.mxu0 0.0
    %1786 = vmatprep.subr.mxu0 0.0
    %1787 = vmatpush1.msra.mxu0 0.0
    %1788 = vmatprep.subr.mxu0 0.0
    %1789 = vmatpush1.msra.mxu0 0.0
    %1790 = vmatprep.subr.mxu0 0.0
    %1791 = vmatpush1.msra.mxu0 0.0
    %1792 = vmatprep.subr.mxu0 0.0
    %1793 = vmatpush1.msra.mxu0 0.0
    %1794 = vmatprep.subr.mxu0 0.0
    %1795 = vmatpush1.msra.mxu0 0.0
    %1796 = vmatprep.subr.mxu0 0.0
    %1797 = vmatpush1.msra.mxu0 0.0
    %1798 = vmatprep.subr.mxu0 0.0
    %1799 = vmatpush1.msra.mxu0 0.0
    %1800 = vmatprep.subr.mxu0 0.0
    %1801 = vmatpush1.msra.mxu0 0.0
    %1802 = vmatprep.mubr.f32.mxu0 0.0
    %1803 = vmatmul.mubr.f32.gmra.mrb[0].mxu0 %v1736
    %v1804 = vpop.f32.mrb[0].mxu0
    %v1805 = vadd.f32 0.0, %v1804
    %v1806 = vpop.f32.mrb[0].mxu0
    %v1807 = vadd.f32 0.0, %v1806
    %1808 = vdwg.mxu0
    %1809 = vmatprep.subr.mxu0 %v1728
    %1810 = vmatpush1.msra.mxu0 %v1729
    %1811 = vmatprep.subr.mxu0 0.0
    %1812 = vmatpush1.msra.mxu0 0.0
    %1813 = vmatprep.subr.mxu0 0.0
    %1814 = vmatpush1.msra.mxu0 0.0
    %1815 = vmatprep.subr.mxu0 0.0
    %1816 = vmatpush1.msra.mxu0 0.0
    %1817 = vmatprep.subr.mxu0 0.0
    %1818 = vmatpush1.msra.mxu0 0.0
    %1819 = vmatprep.subr.mxu0 0.0
    %1820 = vmatpush1.msra.mxu0 0.0
    %1821 = vmatprep.subr.mxu0 0.0
    %1822 = vmatpush1.msra.mxu0 0.0
    %1823 = vmatprep.subr.mxu0 0.0
    %1824 = vmatpush1.msra.mxu0 0.0
    %1825 = vmatprep.subr.mxu0 0.0
    %1826 = vmatpush1.msra.mxu0 0.0
    %1827 = vmatprep.subr.mxu0 0.0
    %1828 = vmatpush1.msra.mxu0 0.0
    %1829 = vmatprep.subr.mxu0 0.0
    %1830 = vmatpush1.msra.mxu0 0.0
    %1831 = vmatprep.subr.mxu0 0.0
    %1832 = vmatpush1.msra.mxu0 0.0
    %1833 = vmatprep.subr.mxu0 0.0
    %1834 = vmatpush1.msra.mxu0 0.0
    %1835 = vmatprep.subr.mxu0 0.0
    %1836 = vmatpush1.msra.mxu0 0.0
    %1837 = vmatprep.subr.mxu0 0.0
    %1838 = vmatpush1.msra.mxu0 0.0
    %1839 = vmatprep.subr.mxu0 0.0
    %1840 = vmatpush1.msra.mxu0 0.0
    %1841 = vmatprep.subr.mxu0 0.0
    %1842 = vmatpush1.msra.mxu0 0.0
    %1843 = vmatprep.subr.mxu0 0.0
    %1844 = vmatpush1.msra.mxu0 0.0
    %1845 = vmatprep.subr.mxu0 0.0
    %1846 = vmatpush1.msra.mxu0 0.0
    %1847 = vmatprep.subr.mxu0 0.0
    %1848 = vmatpush1.msra.mxu0 0.0
    %1849 = vmatprep.subr.mxu0 0.0
    %1850 = vmatpush1.msra.mxu0 0.0
    %1851 = vmatprep.subr.mxu0 0.0
    %1852 = vmatpush1.msra.mxu0 0.0
    %1853 = vmatprep.subr.mxu0 0.0
    %1854 = vmatpush1.msra.mxu0 0.0
    %1855 = vmatprep.subr.mxu0 0.0
    %1856 = vmatpush1.msra.mxu0 0.0
    %1857 = vmatprep.subr.mxu0 0.0
    %1858 = vmatpush1.msra.mxu0 0.0
    %1859 = vmatprep.subr.mxu0 0.0
    %1860 = vmatpush1.msra.mxu0 0.0
    %1861 = vmatprep.subr.mxu0 0.0
    %1862 = vmatpush1.msra.mxu0 0.0
    %1863 = vmatprep.subr.mxu0 0.0
    %1864 = vmatpush1.msra.mxu0 0.0
    %1865 = vmatprep.subr.mxu0 0.0
    %1866 = vmatpush1.msra.mxu0 0.0
    %1867 = vmatprep.subr.mxu0 0.0
    %1868 = vmatpush1.msra.mxu0 0.0
    %1869 = vmatprep.subr.mxu0 0.0
    %1870 = vmatpush1.msra.mxu0 0.0
    %1871 = vmatprep.subr.mxu0 0.0
    %1872 = vmatpush1.msra.mxu0 0.0
    %1873 = vmatprep.mubr.f32.mxu0 0.0
    %1874 = vmatmul.mubr.f32.gmra.mrb[0].mxu0 %v1736
    %v1875 = vpop.f32.mrb[0].mxu0
    %v1876 = vadd.f32 0.0, %v1875
    %v1877 = vpop.f32.mrb[0].mxu0
    %v1878 = vadd.f32 0.0, %v1877
    %1879 = vdwg.mxu0
    %1880 = vmatprep.subr.mxu0 %v1732
    %1881 = vmatpush1.msra.mxu0 %v1727
    %1882 = vmatprep.subr.mxu0 0.0
    %1883 = vmatpush1.msra.mxu0 0.0
    %1884 = vmatprep.subr.mxu0 0.0
    %1885 = vmatpush1.msra.mxu0 0.0
    %1886 = vmatprep.subr.mxu0 0.0
    %1887 = vmatpush1.msra.mxu0 0.0
    %1888 = vmatprep.subr.mxu0 0.0
    %1889 = vmatpush1.msra.mxu0 0.0
    %1890 = vmatprep.subr.mxu0 0.0
    %1891 = vmatpush1.msra.mxu0 0.0
    %1892 = vmatprep.subr.mxu0 0.0
    %1893 = vmatpush1.msra.mxu0 0.0
    %1894 = vmatprep.subr.mxu0 0.0
    %1895 = vmatpush1.msra.mxu0 0.0
    %1896 = vmatprep.subr.mxu0 0.0
    %1897 = vmatpush1.msra.mxu0 0.0
    %1898 = vmatprep.subr.mxu0 0.0
    %1899 = vmatpush1.msra.mxu0 0.0
    %1900 = vmatprep.subr.mxu0 0.0
    %1901 = vmatpush1.msra.mxu0 0.0
    %1902 = vmatprep.subr.mxu0 0.0
    %1903 = vmatpush1.msra.mxu0 0.0
    %1904 = vmatprep.subr.mxu0 0.0
    %1905 = vmatpush1.msra.mxu0 0.0
    %1906 = vmatprep.subr.mxu0 0.0
    %1907 = vmatpush1.msra.mxu0 0.0
    %1908 = vmatprep.subr.mxu0 0.0
    %1909 = vmatpush1.msra.mxu0 0.0
    %1910 = vmatprep.subr.mxu0 0.0
    %1911 = vmatpush1.msra.mxu0 0.0
    %1912 = vmatprep.subr.mxu0 0.0
    %1913 = vmatpush1.msra.mxu0 0.0
    %1914 = vmatprep.subr.mxu0 0.0
    %1915 = vmatpush1.msra.mxu0 0.0
    %1916 = vmatprep.subr.mxu0 0.0
    %1917 = vmatpush1.msra.mxu0 0.0
    %1918 = vmatprep.subr.mxu0 0.0
    %1919 = vmatpush1.msra.mxu0 0.0
    %1920 = vmatprep.subr.mxu0 0.0
    %1921 = vmatpush1.msra.mxu0 0.0
    %1922 = vmatprep.subr.mxu0 0.0
    %1923 = vmatpush1.msra.mxu0 0.0
    %1924 = vmatprep.subr.mxu0 0.0
    %1925 = vmatpush1.msra.mxu0 0.0
    %1926 = vmatprep.subr.mxu0 0.0
    %1927 = vmatpush1.msra.mxu0 0.0
    %1928 = vmatprep.subr.mxu0 0.0
    %1929 = vmatpush1.msra.mxu0 0.0
    %1930 = vmatprep.subr.mxu0 0.0
    %1931 = vmatpush1.msra.mxu0 0.0
    %1932 = vmatprep.subr.mxu0 0.0
    %1933 = vmatpush1.msra.mxu0 0.0
    %1934 = vmatprep.subr.mxu0 0.0
    %1935 = vmatpush1.msra.mxu0 0.0
    %1936 = vmatprep.subr.mxu0 0.0
    %1937 = vmatpush1.msra.mxu0 0.0
    %1938 = vmatprep.subr.mxu0 0.0
    %1939 = vmatpush1.msra.mxu0 0.0
    %1940 = vmatprep.subr.mxu0 0.0
    %1941 = vmatpush1.msra.mxu0 0.0
    %1942 = vmatprep.subr.mxu0 0.0
    %1943 = vmatpush1.msra.mxu0 0.0
    %1944 = vmatprep.mubr.f32.mxu0 0.0
    %1945 = vmatmul.mubr.f32.gmra.mrb[0].mxu0 %v1736
    %v1946 = vpop.f32.mrb[0].mxu0
    %v1947 = vadd.f32 0.0, %v1946
    %v1948 = vpop.f32.mrb[0].mxu0
    %v1949 = vadd.f32 0.0, %v1948
    %1950 = vdwg.mxu0
    %v1951 = vadd.f32 %v1708, %v1805
    %v1952 = vadd.f32 %v1709, %v1807
    %v1953 = vadd.f32 %v1710, %v1876
    %v1954 = vadd.f32 %v1711, %v1878
    %v1955 = vadd.f32 %v1712, %v1947
    %v1956 = vadd.f32 %v1713, %v1949
    %1957 = vrot.lane.b32.xlu0 %v34, 109
    %v1958 = vpop.permute.xlu0 %1957
    %1959 = vrot.lane.b32.xlu0 %v35, 109
    %v1960 = vpop.permute.xlu0 %1959
    %1961 = vrot.lane.b32.xlu0 %v36, 109
    %v1962 = vpop.permute.xlu0 %1961
    %1963 = vrot.lane.b32.xlu0 %v37, 109
    %v1964 = vpop.permute.xlu0 %1963
    %1965 = vrot.lane.b32.xlu0 %v38, 109
    %v1966 = vpop.permute.xlu0 %1965
    %1967 = vrot.lane.b32.xlu0 %v39, 109
    %v1968 = vpop.permute.xlu0 %1967
    %vm1969 = vcmp.lt.s32.totalorder %v57, 109
    %v1970 = vsel %vm1969, %v1966, %v1968
    %v1971 = vsel %vm1969, %v1964, %v1966
    %v1972 = vsel %vm1969, %v1962, %v1964
    %v1973 = vsel %vm1969, %v1960, %v1962
    %v1974 = vsel %vm1969, %v1958, %v1960
    %v1975 = vsel %vm1969, %v1968, %v1958
    %s1976 = scalar_lea.vmem %s2, 64
    %v1977 = vld [vmem:[%s1976] sm:$0xff]
    %v1979 = vsel %vm66, %v1977, 0
    %1981 = vmatprep.subr.mxu0 %v1973
    %1982 = vmatpush1.msra.mxu0 %v1974
    %1983 = vmatprep.subr.mxu0 0.0
    %1984 = vmatpush1.msra.mxu0 0.0
    %1985 = vmatprep.subr.mxu0 0.0
    %1986 = vmatpush1.msra.mxu0 0.0
    %1987 = vmatprep.subr.mxu0 0.0
    %1988 = vmatpush1.msra.mxu0 0.0
    %1989 = vmatprep.subr.mxu0 0.0
    %1990 = vmatpush1.msra.mxu0 0.0
    %1991 = vmatprep.subr.mxu0 0.0
    %1992 = vmatpush1.msra.mxu0 0.0
    %1993 = vmatprep.subr.mxu0 0.0
    %1994 = vmatpush1.msra.mxu0 0.0
    %1995 = vmatprep.subr.mxu0 0.0
    %1996 = vmatpush1.msra.mxu0 0.0
    %1997 = vmatprep.subr.mxu0 0.0
    %1998 = vmatpush1.msra.mxu0 0.0
    %1999 = vmatprep.subr.mxu0 0.0
    %2000 = vmatpush1.msra.mxu0 0.0
    %2001 = vmatprep.subr.mxu0 0.0
    %2002 = vmatpush1.msra.mxu0 0.0
    %2003 = vmatprep.subr.mxu0 0.0
    %2004 = vmatpush1.msra.mxu0 0.0
    %2005 = vmatprep.subr.mxu0 0.0
    %2006 = vmatpush1.msra.mxu0 0.0
    %2007 = vmatprep.subr.mxu0 0.0
    %2008 = vmatpush1.msra.mxu0 0.0
    %2009 = vmatprep.subr.mxu0 0.0
    %2010 = vmatpush1.msra.mxu0 0.0
    %2011 = vmatprep.subr.mxu0 0.0
    %2012 = vmatpush1.msra.mxu0 0.0
    %2013 = vmatprep.subr.mxu0 0.0
    %2014 = vmatpush1.msra.mxu0 0.0
    %2015 = vmatprep.subr.mxu0 0.0
    %2016 = vmatpush1.msra.mxu0 0.0
    %2017 = vmatprep.subr.mxu0 0.0
    %2018 = vmatpush1.msra.mxu0 0.0
    %2019 = vmatprep.subr.mxu0 0.0
    %2020 = vmatpush1.msra.mxu0 0.0
    %2021 = vmatprep.subr.mxu0 0.0
    %2022 = vmatpush1.msra.mxu0 0.0
    %2023 = vmatprep.subr.mxu0 0.0
    %2024 = vmatpush1.msra.mxu0 0.0
    %2025 = vmatprep.subr.mxu0 0.0
    %2026 = vmatpush1.msra.mxu0 0.0
    %2027 = vmatprep.subr.mxu0 0.0
    %2028 = vmatpush1.msra.mxu0 0.0
    %2029 = vmatprep.subr.mxu0 0.0
    %2030 = vmatpush1.msra.mxu0 0.0
    %2031 = vmatprep.subr.mxu0 0.0
    %2032 = vmatpush1.msra.mxu0 0.0
    %2033 = vmatprep.subr.mxu0 0.0
    %2034 = vmatpush1.msra.mxu0 0.0
    %2035 = vmatprep.subr.mxu0 0.0
    %2036 = vmatpush1.msra.mxu0 0.0
    %2037 = vmatprep.subr.mxu0 0.0
    %2038 = vmatpush1.msra.mxu0 0.0
    %2039 = vmatprep.subr.mxu0 0.0
    %2040 = vmatpush1.msra.mxu0 0.0
    %2041 = vmatprep.subr.mxu0 0.0
    %2042 = vmatpush1.msra.mxu0 0.0
    %2043 = vmatprep.subr.mxu0 0.0
    %2044 = vmatpush1.msra.mxu0 0.0
    %2045 = vmatprep.mubr.f32.mxu0 0.0
    %2046 = vmatmul.mubr.f32.gmra.mrb[0].mxu0 %v1979
    %v2047 = vpop.f32.mrb[0].mxu0
    %v2048 = vadd.f32 0.0, %v2047
    %v2049 = vpop.f32.mrb[0].mxu0
    %v2050 = vadd.f32 0.0, %v2049
    %2051 = vdwg.mxu0
    %2052 = vmatprep.subr.mxu0 %v1971
    %2053 = vmatpush1.msra.mxu0 %v1972
    %2054 = vmatprep.subr.mxu0 0.0
    %2055 = vmatpush1.msra.mxu0 0.0
    %2056 = vmatprep.subr.mxu0 0.0
    %2057 = vmatpush1.msra.mxu0 0.0
    %2058 = vmatprep.subr.mxu0 0.0
    %2059 = vmatpush1.msra.mxu0 0.0
    %2060 = vmatprep.subr.mxu0 0.0
    %2061 = vmatpush1.msra.mxu0 0.0
    %2062 = vmatprep.subr.mxu0 0.0
    %2063 = vmatpush1.msra.mxu0 0.0
    %2064 = vmatprep.subr.mxu0 0.0
    %2065 = vmatpush1.msra.mxu0 0.0
    %2066 = vmatprep.subr.mxu0 0.0
    %2067 = vmatpush1.msra.mxu0 0.0
    %2068 = vmatprep.subr.mxu0 0.0
    %2069 = vmatpush1.msra.mxu0 0.0
    %2070 = vmatprep.subr.mxu0 0.0
    %2071 = vmatpush1.msra.mxu0 0.0
    %2072 = vmatprep.subr.mxu0 0.0
    %2073 = vmatpush1.msra.mxu0 0.0
    %2074 = vmatprep.subr.mxu0 0.0
    %2075 = vmatpush1.msra.mxu0 0.0
    %2076 = vmatprep.subr.mxu0 0.0
    %2077 = vmatpush1.msra.mxu0 0.0
    %2078 = vmatprep.subr.mxu0 0.0
    %2079 = vmatpush1.msra.mxu0 0.0
    %2080 = vmatprep.subr.mxu0 0.0
    %2081 = vmatpush1.msra.mxu0 0.0
    %2082 = vmatprep.subr.mxu0 0.0
    %2083 = vmatpush1.msra.mxu0 0.0
    %2084 = vmatprep.subr.mxu0 0.0
    %2085 = vmatpush1.msra.mxu0 0.0
    %2086 = vmatprep.subr.mxu0 0.0
    %2087 = vmatpush1.msra.mxu0 0.0
    %2088 = vmatprep.subr.mxu0 0.0
    %2089 = vmatpush1.msra.mxu0 0.0
    %2090 = vmatprep.subr.mxu0 0.0
    %2091 = vmatpush1.msra.mxu0 0.0
    %2092 = vmatprep.subr.mxu0 0.0
    %2093 = vmatpush1.msra.mxu0 0.0
    %2094 = vmatprep.subr.mxu0 0.0
    %2095 = vmatpush1.msra.mxu0 0.0
    %2096 = vmatprep.subr.mxu0 0.0
    %2097 = vmatpush1.msra.mxu0 0.0
    %2098 = vmatprep.subr.mxu0 0.0
    %2099 = vmatpush1.msra.mxu0 0.0
    %2100 = vmatprep.subr.mxu0 0.0
    %2101 = vmatpush1.msra.mxu0 0.0
    %2102 = vmatprep.subr.mxu0 0.0
    %2103 = vmatpush1.msra.mxu0 0.0
    %2104 = vmatprep.subr.mxu0 0.0
    %2105 = vmatpush1.msra.mxu0 0.0
    %2106 = vmatprep.subr.mxu0 0.0
    %2107 = vmatpush1.msra.mxu0 0.0
    %2108 = vmatprep.subr.mxu0 0.0
    %2109 = vmatpush1.msra.mxu0 0.0
    %2110 = vmatprep.subr.mxu0 0.0
    %2111 = vmatpush1.msra.mxu0 0.0
    %2112 = vmatprep.subr.mxu0 0.0
    %2113 = vmatpush1.msra.mxu0 0.0
    %2114 = vmatprep.subr.mxu0 0.0
    %2115 = vmatpush1.msra.mxu0 0.0
    %2116 = vmatprep.mubr.f32.mxu0 0.0
    %2117 = vmatmul.mubr.f32.gmra.mrb[0].mxu0 %v1979
    %v2118 = vpop.f32.mrb[0].mxu0
    %v2119 = vadd.f32 0.0, %v2118
    %v2120 = vpop.f32.mrb[0].mxu0
    %v2121 = vadd.f32 0.0, %v2120
    %2122 = vdwg.mxu0
    %2123 = vmatprep.subr.mxu0 %v1975
    %2124 = vmatpush1.msra.mxu0 %v1970
    %2125 = vmatprep.subr.mxu0 0.0
    %2126 = vmatpush1.msra.mxu0 0.0
    %2127 = vmatprep.subr.mxu0 0.0
    %2128 = vmatpush1.msra.mxu0 0.0
    %2129 = vmatprep.subr.mxu0 0.0
    %2130 = vmatpush1.msra.mxu0 0.0
    %2131 = vmatprep.subr.mxu0 0.0
    %2132 = vmatpush1.msra.mxu0 0.0
    %2133 = vmatprep.subr.mxu0 0.0
    %2134 = vmatpush1.msra.mxu0 0.0
    %2135 = vmatprep.subr.mxu0 0.0
    %2136 = vmatpush1.msra.mxu0 0.0
    %2137 = vmatprep.subr.mxu0 0.0
    %2138 = vmatpush1.msra.mxu0 0.0
    %2139 = vmatprep.subr.mxu0 0.0
    %2140 = vmatpush1.msra.mxu0 0.0
    %2141 = vmatprep.subr.mxu0 0.0
    %2142 = vmatpush1.msra.mxu0 0.0
    %2143 = vmatprep.subr.mxu0 0.0
    %2144 = vmatpush1.msra.mxu0 0.0
    %2145 = vmatprep.subr.mxu0 0.0
    %2146 = vmatpush1.msra.mxu0 0.0
    %2147 = vmatprep.subr.mxu0 0.0
    %2148 = vmatpush1.msra.mxu0 0.0
    %2149 = vmatprep.subr.mxu0 0.0
    %2150 = vmatpush1.msra.mxu0 0.0
    %2151 = vmatprep.subr.mxu0 0.0
    %2152 = vmatpush1.msra.mxu0 0.0
    %2153 = vmatprep.subr.mxu0 0.0
    %2154 = vmatpush1.msra.mxu0 0.0
    %2155 = vmatprep.subr.mxu0 0.0
    %2156 = vmatpush1.msra.mxu0 0.0
    %2157 = vmatprep.subr.mxu0 0.0
    %2158 = vmatpush1.msra.mxu0 0.0
    %2159 = vmatprep.subr.mxu0 0.0
    %2160 = vmatpush1.msra.mxu0 0.0
    %2161 = vmatprep.subr.mxu0 0.0
    %2162 = vmatpush1.msra.mxu0 0.0
    %2163 = vmatprep.subr.mxu0 0.0
    %2164 = vmatpush1.msra.mxu0 0.0
    %2165 = vmatprep.subr.mxu0 0.0
    %2166 = vmatpush1.msra.mxu0 0.0
    %2167 = vmatprep.subr.mxu0 0.0
    %2168 = vmatpush1.msra.mxu0 0.0
    %2169 = vmatprep.subr.mxu0 0.0
    %2170 = vmatpush1.msra.mxu0 0.0
    %2171 = vmatprep.subr.mxu0 0.0
    %2172 = vmatpush1.msra.mxu0 0.0
    %2173 = vmatprep.subr.mxu0 0.0
    %2174 = vmatpush1.msra.mxu0 0.0
    %2175 = vmatprep.subr.mxu0 0.0
    %2176 = vmatpush1.msra.mxu0 0.0
    %2177 = vmatprep.subr.mxu0 0.0
    %2178 = vmatpush1.msra.mxu0 0.0
    %2179 = vmatprep.subr.mxu0 0.0
    %2180 = vmatpush1.msra.mxu0 0.0
    %2181 = vmatprep.subr.mxu0 0.0
    %2182 = vmatpush1.msra.mxu0 0.0
    %2183 = vmatprep.subr.mxu0 0.0
    %2184 = vmatpush1.msra.mxu0 0.0
    %2185 = vmatprep.subr.mxu0 0.0
    %2186 = vmatpush1.msra.mxu0 0.0
    %2187 = vmatprep.mubr.f32.mxu0 0.0
    %2188 = vmatmul.mubr.f32.gmra.mrb[0].mxu0 %v1979
    %v2189 = vpop.f32.mrb[0].mxu0
    %v2190 = vadd.f32 0.0, %v2189
    %v2191 = vpop.f32.mrb[0].mxu0
    %v2192 = vadd.f32 0.0, %v2191
    %2193 = vdwg.mxu0
    %v2194 = vadd.f32 %v1951, %v2048
    %v2195 = vadd.f32 %v1952, %v2050
    %v2196 = vadd.f32 %v1953, %v2119
    %v2197 = vadd.f32 %v1954, %v2121
    %v2198 = vadd.f32 %v1955, %v2190
    %v2199 = vadd.f32 %v1956, %v2192
    %v2201 = vlaneseq
    %v2202 = vshrl.u32 %v2201, 7
    %v2203 = vsub.s32 0, %v2202
    %v2204 = vrot.slane %v40, %v2203
    %v2205 = vlaneseq
    %v2206 = vshrl.u32 %v2205, 7
    %v2207 = vsub.s32 1, %v2206
    %v2208 = vrot.slane %v40, %v2207
    %v2209 = vlaneseq
    %v2210 = vshrl.u32 %v2209, 7
    %v2211 = vsub.s32 2, %v2210
    %v2212 = vrot.slane %v40, %v2211
    %v2213 = vlaneseq
    %v2214 = vshrl.u32 %v2213, 7
    %v2215 = vsub.s32 3, %v2214
    %v2216 = vrot.slane %v40, %v2215
    %v2217 = vlaneseq
    %v2218 = vshrl.u32 %v2217, 7
    %v2219 = vsub.s32 4, %v2218
    %v2220 = vrot.slane %v40, %v2219
    %v2221 = vlaneseq
    %v2222 = vshrl.u32 %v2221, 7
    %v2223 = vsub.s32 5, %v2222
    %v2224 = vrot.slane %v40, %v2223
    %v2231 = vmul.f32 %v2194, %v2204
    %v2232 = vmul.f32 %v2195, %v2208
    %v2233 = vmul.f32 %v2196, %v2212
    %v2234 = vmul.f32 %v2197, %v2216
    %v2235 = vmul.f32 %v2198, %v2220
    %v2236 = vmul.f32 %v2199, %v2224
    %v2237 = vadd.f32 %v2231, %v2232
    %v2238 = vadd.f32 %v2237, %v2233
    %v2239 = vadd.f32 %v2238, %v2234
    %v2240 = vadd.f32 %v2239, %v2235
    %v2241 = vadd.f32 %v2240, %v2236
    %2242 = vadd.xlane.f32.xlu0 %v2241
    %v2243 = vpop.xlane.xlu0 %2242
    %v2244 = vmul.f32 %v2243, 0.001953125
    %v2245 = vsub.f32 %v2194, %v2244
    %v2246 = vsub.f32 %v2195, %v2244
    %v2247 = vsub.f32 %v2196, %v2244
    %v2248 = vsub.f32 %v2197, %v2244
    %v2249 = vsub.f32 %v2198, %v2244
    %v2250 = vsub.f32 %v2199, %v2244
    %v2251 = vmul.f32 %v2245, %v2204
    %v2252 = vmul.f32 %v2246, %v2208
    %v2253 = vmul.f32 %v2247, %v2212
    %v2254 = vmul.f32 %v2248, %v2216
    %v2255 = vmul.f32 %v2249, %v2220
    %v2256 = vmul.f32 %v2250, %v2224
    %v2257 = vmul.f32 %v2251, %v2251
    %v2258 = vmul.f32 %v2252, %v2252
    %v2259 = vmul.f32 %v2253, %v2253
    %v2260 = vmul.f32 %v2254, %v2254
    %v2261 = vmul.f32 %v2255, %v2255
    %v2262 = vmul.f32 %v2256, %v2256
    %v2263 = vadd.f32 %v2257, %v2258
    %v2264 = vadd.f32 %v2263, %v2259
    %v2265 = vadd.f32 %v2264, %v2260
    %v2266 = vadd.f32 %v2265, %v2261
    %v2267 = vadd.f32 %v2266, %v2262
    %2268 = vadd.xlane.f32.xlu0 %v2267
    %v2269 = vpop.xlane.xlu0 %2268
    %v2270 = vmul.f32 %v2269, 0.001953125
    %v2271 = vld [vmem:[%s3] sm:$0xff]
    %v2272 = vadd.f32 %v2270, 1e-05
    %v2273 = vrsqrt.pop %v2272
    %v2274 = vmul.f32 %v2271, %v2273
    %2276 = vset.pattern.permute.xlu0 0
    %2277 = vperm.xlu0 %2276, %v2274
    %v2278 = vpop.permute.xlu0 %2277
    %v2280 = vmul.f32 %v2251, %v2278
    %v2281 = vmul.f32 %v2252, %v2278
    %v2282 = vmul.f32 %v2253, %v2278
    %v2283 = vmul.f32 %v2254, %v2278
    %v2284 = vmul.f32 %v2255, %v2278
    %v2285 = vmul.f32 %v2256, %v2278
    %v2286 = vld [vmem:[%s4] sm:$0xff]
    %2288 = vset.pattern.permute.xlu0 0
    %2289 = vperm.xlu0 %2288, %v2286
    %v2290 = vpop.permute.xlu0 %2289
    %v2292 = vadd.f32 %v2280, %v2290
    %v2293 = vadd.f32 %v2281, %v2290
    %v2294 = vadd.f32 %v2282, %v2290
    %v2295 = vadd.f32 %v2283, %v2290
    %v2296 = vadd.f32 %v2284, %v2290
    %v2297 = vadd.f32 %v2285, %v2290
    %vm2298 = vcmp.ge.f32.partialorder %v2292, 0.0
    %vm2299 = vcmp.ge.f32.partialorder %v2293, 0.0
    %vm2300 = vcmp.ge.f32.partialorder %v2294, 0.0
    %vm2301 = vcmp.ge.f32.partialorder %v2295, 0.0
    %vm2302 = vcmp.ge.f32.partialorder %v2296, 0.0
    %vm2303 = vcmp.ge.f32.partialorder %v2297, 0.0
    %v2304 = vstv %s41
    %v2305 = vmul.f32 %v2304, %v2292
    %v2306 = vmul.f32 %v2304, %v2293
    %v2307 = vmul.f32 %v2304, %v2294
    %v2308 = vmul.f32 %v2304, %v2295
    %v2309 = vmul.f32 %v2304, %v2296
    %v2310 = vmul.f32 %v2304, %v2297
    %v2311 = vsel %vm2298, %v2292, %v2305
    %v2312 = vsel %vm2299, %v2293, %v2306
    %v2313 = vsel %vm2300, %v2294, %v2307
    %v2314 = vsel %vm2301, %v2295, %v2308
    %v2315 = vsel %vm2302, %v2296, %v2309
    %v2316 = vsel %vm2303, %v2297, %v2310
    %v2317 = vmul.f32 %v2311, %v2204
    %v2318 = vmul.f32 %v2312, %v2208
    %v2319 = vmul.f32 %v2313, %v2212
    %v2320 = vmul.f32 %v2314, %v2216
    %v2321 = vmul.f32 %v2315, %v2220
    %v2322 = vmul.f32 %v2316, %v2224
    %s2323 = scalar_lea.vmem %s6, 32
    %v2324 = vld [vmem:[%s2323] sm:$0xff]
    %2325 = vrot.lane.b32.xlu0 %v2317, 19
    %v2326 = vpop.permute.xlu0 %2325
    %2327 = vrot.lane.b32.xlu0 %v2318, 19
    %v2328 = vpop.permute.xlu0 %2327
    %2329 = vrot.lane.b32.xlu0 %v2319, 19
    %v2330 = vpop.permute.xlu0 %2329
    %2331 = vrot.lane.b32.xlu0 %v2320, 19
    %v2332 = vpop.permute.xlu0 %2331
    %2333 = vrot.lane.b32.xlu0 %v2321, 19
    %v2334 = vpop.permute.xlu0 %2333
    %2335 = vrot.lane.b32.xlu0 %v2322, 19
    %v2336 = vpop.permute.xlu0 %2335
    %v2337 = vsel %vm58, %v2334, %v2336
    %v2338 = vsel %vm58, %v2332, %v2334
    %v2339 = vsel %vm58, %v2330, %v2332
    %v2340 = vsel %vm58, %v2328, %v2330
    %v2341 = vsel %vm58, %v2326, %v2328
    %v2342 = vsel %vm58, %v2336, %v2326
    %v2343 = vld [vmem:[%s6] sm:$0xff]
    %v2345 = vsel %vm66, %v2343, 0
    %2347 = vmatprep.subr.mxu0 %v2341
    %2348 = vmatpush1.msra.mxu0 %v2342
    %2349 = vmatprep.subr.mxu0 0.0
    %2350 = vmatpush1.msra.mxu0 0.0
    %2351 = vmatprep.subr.mxu0 0.0
    %2352 = vmatpush1.msra.mxu0 0.0
    %2353 = vmatprep.subr.mxu0 0.0
    %2354 = vmatpush1.msra.mxu0 0.0
    %2355 = vmatprep.subr.mxu0 0.0
    %2356 = vmatpush1.msra.mxu0 0.0
    %2357 = vmatprep.subr.mxu0 0.0
    %2358 = vmatpush1.msra.mxu0 0.0
    %2359 = vmatprep.subr.mxu0 0.0
    %2360 = vmatpush1.msra.mxu0 0.0
    %2361 = vmatprep.subr.mxu0 0.0
    %2362 = vmatpush1.msra.mxu0 0.0
    %2363 = vmatprep.subr.mxu0 0.0
    %2364 = vmatpush1.msra.mxu0 0.0
    %2365 = vmatprep.subr.mxu0 0.0
    %2366 = vmatpush1.msra.mxu0 0.0
    %2367 = vmatprep.subr.mxu0 0.0
    %2368 = vmatpush1.msra.mxu0 0.0
    %2369 = vmatprep.subr.mxu0 0.0
    %2370 = vmatpush1.msra.mxu0 0.0
    %2371 = vmatprep.subr.mxu0 0.0
    %2372 = vmatpush1.msra.mxu0 0.0
    %2373 = vmatprep.subr.mxu0 0.0
    %2374 = vmatpush1.msra.mxu0 0.0
    %2375 = vmatprep.subr.mxu0 0.0
    %2376 = vmatpush1.msra.mxu0 0.0
    %2377 = vmatprep.subr.mxu0 0.0
    %2378 = vmatpush1.msra.mxu0 0.0
    %2379 = vmatprep.subr.mxu0 0.0
    %2380 = vmatpush1.msra.mxu0 0.0
    %2381 = vmatprep.subr.mxu0 0.0
    %2382 = vmatpush1.msra.mxu0 0.0
    %2383 = vmatprep.subr.mxu0 0.0
    %2384 = vmatpush1.msra.mxu0 0.0
    %2385 = vmatprep.subr.mxu0 0.0
    %2386 = vmatpush1.msra.mxu0 0.0
    %2387 = vmatprep.subr.mxu0 0.0
    %2388 = vmatpush1.msra.mxu0 0.0
    %2389 = vmatprep.subr.mxu0 0.0
    %2390 = vmatpush1.msra.mxu0 0.0
    %2391 = vmatprep.subr.mxu0 0.0
    %2392 = vmatpush1.msra.mxu0 0.0
    %2393 = vmatprep.subr.mxu0 0.0
    %2394 = vmatpush1.msra.mxu0 0.0
    %2395 = vmatprep.subr.mxu0 0.0
    %2396 = vmatpush1.msra.mxu0 0.0
    %2397 = vmatprep.subr.mxu0 0.0
    %2398 = vmatpush1.msra.mxu0 0.0
    %2399 = vmatprep.subr.mxu0 0.0
    %2400 = vmatpush1.msra.mxu0 0.0
    %2401 = vmatprep.subr.mxu0 0.0
    %2402 = vmatpush1.msra.mxu0 0.0
    %2403 = vmatprep.subr.mxu0 0.0
    %2404 = vmatpush1.msra.mxu0 0.0
    %2405 = vmatprep.subr.mxu0 0.0
    %2406 = vmatpush1.msra.mxu0 0.0
    %2407 = vmatprep.subr.mxu0 0.0
    %2408 = vmatpush1.msra.mxu0 0.0
    %2409 = vmatprep.subr.mxu0 0.0
    %2410 = vmatpush1.msra.mxu0 0.0
    %2411 = vmatprep.mubr.f32.mxu0 0.0
    %2412 = vmatmul.mubr.f32.gmra.mrb[0].mxu0 %v2345
    %v2413 = vpop.f32.mrb[0].mxu0
    %v2414 = vadd.f32 0.0, %v2413
    %v2415 = vpop.f32.mrb[0].mxu0
    %v2416 = vadd.f32 0.0, %v2415
    %2417 = vdwg.mxu0
    %2418 = vmatprep.subr.mxu0 %v2339
    %2419 = vmatpush1.msra.mxu0 %v2340
    %2420 = vmatprep.subr.mxu0 0.0
    %2421 = vmatpush1.msra.mxu0 0.0
    %2422 = vmatprep.subr.mxu0 0.0
    %2423 = vmatpush1.msra.mxu0 0.0
    %2424 = vmatprep.subr.mxu0 0.0
    %2425 = vmatpush1.msra.mxu0 0.0
    %2426 = vmatprep.subr.mxu0 0.0
    %2427 = vmatpush1.msra.mxu0 0.0
    %2428 = vmatprep.subr.mxu0 0.0
    %2429 = vmatpush1.msra.mxu0 0.0
    %2430 = vmatprep.subr.mxu0 0.0
    %2431 = vmatpush1.msra.mxu0 0.0
    %2432 = vmatprep.subr.mxu0 0.0
    %2433 = vmatpush1.msra.mxu0 0.0
    %2434 = vmatprep.subr.mxu0 0.0
    %2435 = vmatpush1.msra.mxu0 0.0
    %2436 = vmatprep.subr.mxu0 0.0
    %2437 = vmatpush1.msra.mxu0 0.0
    %2438 = vmatprep.subr.mxu0 0.0
    %2439 = vmatpush1.msra.mxu0 0.0
    %2440 = vmatprep.subr.mxu0 0.0
    %2441 = vmatpush1.msra.mxu0 0.0
    %2442 = vmatprep.subr.mxu0 0.0
    %2443 = vmatpush1.msra.mxu0 0.0
    %2444 = vmatprep.subr.mxu0 0.0
    %2445 = vmatpush1.msra.mxu0 0.0
    %2446 = vmatprep.subr.mxu0 0.0
    %2447 = vmatpush1.msra.mxu0 0.0
    %2448 = vmatprep.subr.mxu0 0.0
    %2449 = vmatpush1.msra.mxu0 0.0
    %2450 = vmatprep.subr.mxu0 0.0
    %2451 = vmatpush1.msra.mxu0 0.0
    %2452 = vmatprep.subr.mxu0 0.0
    %2453 = vmatpush1.msra.mxu0 0.0
    %2454 = vmatprep.subr.mxu0 0.0
    %2455 = vmatpush1.msra.mxu0 0.0
    %2456 = vmatprep.subr.mxu0 0.0
    %2457 = vmatpush1.msra.mxu0 0.0
    %2458 = vmatprep.subr.mxu0 0.0
    %2459 = vmatpush1.msra.mxu0 0.0
    %2460 = vmatprep.subr.mxu0 0.0
    %2461 = vmatpush1.msra.mxu0 0.0
    %2462 = vmatprep.subr.mxu0 0.0
    %2463 = vmatpush1.msra.mxu0 0.0
    %2464 = vmatprep.subr.mxu0 0.0
    %2465 = vmatpush1.msra.mxu0 0.0
    %2466 = vmatprep.subr.mxu0 0.0
    %2467 = vmatpush1.msra.mxu0 0.0
    %2468 = vmatprep.subr.mxu0 0.0
    %2469 = vmatpush1.msra.mxu0 0.0
    %2470 = vmatprep.subr.mxu0 0.0
    %2471 = vmatpush1.msra.mxu0 0.0
    %2472 = vmatprep.subr.mxu0 0.0
    %2473 = vmatpush1.msra.mxu0 0.0
    %2474 = vmatprep.subr.mxu0 0.0
    %2475 = vmatpush1.msra.mxu0 0.0
    %2476 = vmatprep.subr.mxu0 0.0
    %2477 = vmatpush1.msra.mxu0 0.0
    %2478 = vmatprep.subr.mxu0 0.0
    %2479 = vmatpush1.msra.mxu0 0.0
    %2480 = vmatprep.subr.mxu0 0.0
    %2481 = vmatpush1.msra.mxu0 0.0
    %2482 = vmatprep.mubr.f32.mxu0 0.0
    %2483 = vmatmul.mubr.f32.gmra.mrb[0].mxu0 %v2345
    %v2484 = vpop.f32.mrb[0].mxu0
    %v2485 = vadd.f32 0.0, %v2484
    %v2486 = vpop.f32.mrb[0].mxu0
    %v2487 = vadd.f32 0.0, %v2486
    %2488 = vdwg.mxu0
    %2489 = vmatprep.subr.mxu0 %v2337
    %2490 = vmatpush1.msra.mxu0 %v2338
    %2491 = vmatprep.subr.mxu0 0.0
    %2492 = vmatpush1.msra.mxu0 0.0
    %2493 = vmatprep.subr.mxu0 0.0
    %2494 = vmatpush1.msra.mxu0 0.0
    %2495 = vmatprep.subr.mxu0 0.0
    %2496 = vmatpush1.msra.mxu0 0.0
    %2497 = vmatprep.subr.mxu0 0.0
    %2498 = vmatpush1.msra.mxu0 0.0
    %2499 = vmatprep.subr.mxu0 0.0
    %2500 = vmatpush1.msra.mxu0 0.0
    %2501 = vmatprep.subr.mxu0 0.0
    %2502 = vmatpush1.msra.mxu0 0.0
    %2503 = vmatprep.subr.mxu0 0.0
    %2504 = vmatpush1.msra.mxu0 0.0
    %2505 = vmatprep.subr.mxu0 0.0
    %2506 = vmatpush1.msra.mxu0 0.0
    %2507 = vmatprep.subr.mxu0 0.0
    %2508 = vmatpush1.msra.mxu0 0.0
    %2509 = vmatprep.subr.mxu0 0.0
    %2510 = vmatpush1.msra.mxu0 0.0
    %2511 = vmatprep.subr.mxu0 0.0
    %2512 = vmatpush1.msra.mxu0 0.0
    %2513 = vmatprep.subr.mxu0 0.0
    %2514 = vmatpush1.msra.mxu0 0.0
    %2515 = vmatprep.subr.mxu0 0.0
    %2516 = vmatpush1.msra.mxu0 0.0
    %2517 = vmatprep.subr.mxu0 0.0
    %2518 = vmatpush1.msra.mxu0 0.0
    %2519 = vmatprep.subr.mxu0 0.0
    %2520 = vmatpush1.msra.mxu0 0.0
    %2521 = vmatprep.subr.mxu0 0.0
    %2522 = vmatpush1.msra.mxu0 0.0
    %2523 = vmatprep.subr.mxu0 0.0
    %2524 = vmatpush1.msra.mxu0 0.0
    %2525 = vmatprep.subr.mxu0 0.0
    %2526 = vmatpush1.msra.mxu0 0.0
    %2527 = vmatprep.subr.mxu0 0.0
    %2528 = vmatpush1.msra.mxu0 0.0
    %2529 = vmatprep.subr.mxu0 0.0
    %2530 = vmatpush1.msra.mxu0 0.0
    %2531 = vmatprep.subr.mxu0 0.0
    %2532 = vmatpush1.msra.mxu0 0.0
    %2533 = vmatprep.subr.mxu0 0.0
    %2534 = vmatpush1.msra.mxu0 0.0
    %2535 = vmatprep.subr.mxu0 0.0
    %2536 = vmatpush1.msra.mxu0 0.0
    %2537 = vmatprep.subr.mxu0 0.0
    %2538 = vmatpush1.msra.mxu0 0.0
    %2539 = vmatprep.subr.mxu0 0.0
    %2540 = vmatpush1.msra.mxu0 0.0
    %2541 = vmatprep.subr.mxu0 0.0
    %2542 = vmatpush1.msra.mxu0 0.0
    %2543 = vmatprep.subr.mxu0 0.0
    %2544 = vmatpush1.msra.mxu0 0.0
    %2545 = vmatprep.subr.mxu0 0.0
    %2546 = vmatpush1.msra.mxu0 0.0
    %2547 = vmatprep.subr.mxu0 0.0
    %2548 = vmatpush1.msra.mxu0 0.0
    %2549 = vmatprep.subr.mxu0 0.0
    %2550 = vmatpush1.msra.mxu0 0.0
    %2551 = vmatprep.subr.mxu0 0.0
    %2552 = vmatpush1.msra.mxu0 0.0
    %2553 = vmatprep.mubr.f32.mxu0 0.0
    %2554 = vmatmul.mubr.f32.gmra.mrb[0].mxu0 %v2345
    %v2555 = vpop.f32.mrb[0].mxu0
    %v2556 = vadd.f32 0.0, %v2555
    %v2557 = vpop.f32.mrb[0].mxu0
    %v2558 = vadd.f32 0.0, %v2557
    %2559 = vdwg.mxu0
    %v2561 = vsel %vm66, %v2324, 0
    %2563 = vmatprep.subr.mxu0 %v2318
    %2564 = vmatpush1.msra.mxu0 %v2317
    %2565 = vmatprep.subr.mxu0 0.0
    %2566 = vmatpush1.msra.mxu0 0.0
    %2567 = vmatprep.subr.mxu0 0.0
    %2568 = vmatpush1.msra.mxu0 0.0
    %2569 = vmatprep.subr.mxu0 0.0
    %2570 = vmatpush1.msra.mxu0 0.0
    %2571 = vmatprep.subr.mxu0 0.0
    %2572 = vmatpush1.msra.mxu0 0.0
    %2573 = vmatprep.subr.mxu0 0.0
    %2574 = vmatpush1.msra.mxu0 0.0
    %2575 = vmatprep.subr.mxu0 0.0
    %2576 = vmatpush1.msra.mxu0 0.0
    %2577 = vmatprep.subr.mxu0 0.0
    %2578 = vmatpush1.msra.mxu0 0.0
    %2579 = vmatprep.subr.mxu0 0.0
    %2580 = vmatpush1.msra.mxu0 0.0
    %2581 = vmatprep.subr.mxu0 0.0
    %2582 = vmatpush1.msra.mxu0 0.0
    %2583 = vmatprep.subr.mxu0 0.0
    %2584 = vmatpush1.msra.mxu0 0.0
    %2585 = vmatprep.subr.mxu0 0.0
    %2586 = vmatpush1.msra.mxu0 0.0
    %2587 = vmatprep.subr.mxu0 0.0
    %2588 = vmatpush1.msra.mxu0 0.0
    %2589 = vmatprep.subr.mxu0 0.0
    %2590 = vmatpush1.msra.mxu0 0.0
    %2591 = vmatprep.subr.mxu0 0.0
    %2592 = vmatpush1.msra.mxu0 0.0
    %2593 = vmatprep.subr.mxu0 0.0
    %2594 = vmatpush1.msra.mxu0 0.0
    %2595 = vmatprep.subr.mxu0 0.0
    %2596 = vmatpush1.msra.mxu0 0.0
    %2597 = vmatprep.subr.mxu0 0.0
    %2598 = vmatpush1.msra.mxu0 0.0
    %2599 = vmatprep.subr.mxu0 0.0
    %2600 = vmatpush1.msra.mxu0 0.0
    %2601 = vmatprep.subr.mxu0 0.0
    %2602 = vmatpush1.msra.mxu0 0.0
    %2603 = vmatprep.subr.mxu0 0.0
    %2604 = vmatpush1.msra.mxu0 0.0
    %2605 = vmatprep.subr.mxu0 0.0
    %2606 = vmatpush1.msra.mxu0 0.0
    %2607 = vmatprep.subr.mxu0 0.0
    %2608 = vmatpush1.msra.mxu0 0.0
    %2609 = vmatprep.subr.mxu0 0.0
    %2610 = vmatpush1.msra.mxu0 0.0
    %2611 = vmatprep.subr.mxu0 0.0
    %2612 = vmatpush1.msra.mxu0 0.0
    %2613 = vmatprep.subr.mxu0 0.0
    %2614 = vmatpush1.msra.mxu0 0.0
    %2615 = vmatprep.subr.mxu0 0.0
    %2616 = vmatpush1.msra.mxu0 0.0
    %2617 = vmatprep.subr.mxu0 0.0
    %2618 = vmatpush1.msra.mxu0 0.0
    %2619 = vmatprep.subr.mxu0 0.0
    %2620 = vmatpush1.msra.mxu0 0.0
    %2621 = vmatprep.subr.mxu0 0.0
    %2622 = vmatpush1.msra.mxu0 0.0
    %2623 = vmatprep.subr.mxu0 0.0
    %2624 = vmatpush1.msra.mxu0 0.0
    %2625 = vmatprep.subr.mxu0 0.0
    %2626 = vmatpush1.msra.mxu0 0.0
    %2627 = vmatprep.mubr.f32.mxu0 0.0
    %2628 = vmatmul.mubr.f32.gmra.mrb[0].mxu0 %v2561
    %v2629 = vpop.f32.mrb[0].mxu0
    %v2630 = vadd.f32 %v2414, %v2629
    %v2631 = vpop.f32.mrb[0].mxu0
    %v2632 = vadd.f32 %v2416, %v2631
    %2633 = vdwg.mxu0
    %2634 = vmatprep.subr.mxu0 %v2320
    %2635 = vmatpush1.msra.mxu0 %v2319
    %2636 = vmatprep.subr.mxu0 0.0
    %2637 = vmatpush1.msra.mxu0 0.0
    %2638 = vmatprep.subr.mxu0 0.0
    %2639 = vmatpush1.msra.mxu0 0.0
    %2640 = vmatprep.subr.mxu0 0.0
    %2641 = vmatpush1.msra.mxu0 0.0
    %2642 = vmatprep.subr.mxu0 0.0
    %2643 = vmatpush1.msra.mxu0 0.0
    %2644 = vmatprep.subr.mxu0 0.0
    %2645 = vmatpush1.msra.mxu0 0.0
    %2646 = vmatprep.subr.mxu0 0.0
    %2647 = vmatpush1.msra.mxu0 0.0
    %2648 = vmatprep.subr.mxu0 0.0
    %2649 = vmatpush1.msra.mxu0 0.0
    %2650 = vmatprep.subr.mxu0 0.0
    %2651 = vmatpush1.msra.mxu0 0.0
    %2652 = vmatprep.subr.mxu0 0.0
    %2653 = vmatpush1.msra.mxu0 0.0
    %2654 = vmatprep.subr.mxu0 0.0
    %2655 = vmatpush1.msra.mxu0 0.0
    %2656 = vmatprep.subr.mxu0 0.0
    %2657 = vmatpush1.msra.mxu0 0.0
    %2658 = vmatprep.subr.mxu0 0.0
    %2659 = vmatpush1.msra.mxu0 0.0
    %2660 = vmatprep.subr.mxu0 0.0
    %2661 = vmatpush1.msra.mxu0 0.0
    %2662 = vmatprep.subr.mxu0 0.0
    %2663 = vmatpush1.msra.mxu0 0.0
    %2664 = vmatprep.subr.mxu0 0.0
    %2665 = vmatpush1.msra.mxu0 0.0
    %2666 = vmatprep.subr.mxu0 0.0
    %2667 = vmatpush1.msra.mxu0 0.0
    %2668 = vmatprep.subr.mxu0 0.0
    %2669 = vmatpush1.msra.mxu0 0.0
    %2670 = vmatprep.subr.mxu0 0.0
    %2671 = vmatpush1.msra.mxu0 0.0
    %2672 = vmatprep.subr.mxu0 0.0
    %2673 = vmatpush1.msra.mxu0 0.0
    %2674 = vmatprep.subr.mxu0 0.0
    %2675 = vmatpush1.msra.mxu0 0.0
    %2676 = vmatprep.subr.mxu0 0.0
    %2677 = vmatpush1.msra.mxu0 0.0
    %2678 = vmatprep.subr.mxu0 0.0
    %2679 = vmatpush1.msra.mxu0 0.0
    %2680 = vmatprep.subr.mxu0 0.0
    %2681 = vmatpush1.msra.mxu0 0.0
    %2682 = vmatprep.subr.mxu0 0.0
    %2683 = vmatpush1.msra.mxu0 0.0
    %2684 = vmatprep.subr.mxu0 0.0
    %2685 = vmatpush1.msra.mxu0 0.0
    %2686 = vmatprep.subr.mxu0 0.0
    %2687 = vmatpush1.msra.mxu0 0.0
    %2688 = vmatprep.subr.mxu0 0.0
    %2689 = vmatpush1.msra.mxu0 0.0
    %2690 = vmatprep.subr.mxu0 0.0
    %2691 = vmatpush1.msra.mxu0 0.0
    %2692 = vmatprep.subr.mxu0 0.0
    %2693 = vmatpush1.msra.mxu0 0.0
    %2694 = vmatprep.subr.mxu0 0.0
    %2695 = vmatpush1.msra.mxu0 0.0
    %2696 = vmatprep.subr.mxu0 0.0
    %2697 = vmatpush1.msra.mxu0 0.0
    %2698 = vmatprep.mubr.f32.mxu0 0.0
    %2699 = vmatmul.mubr.f32.gmra.mrb[0].mxu0 %v2561
    %v2700 = vpop.f32.mrb[0].mxu0
    %v2701 = vadd.f32 %v2485, %v2700
    %v2702 = vpop.f32.mrb[0].mxu0
    %v2703 = vadd.f32 %v2487, %v2702
    %2704 = vdwg.mxu0
    %2705 = vmatprep.subr.mxu0 %v2322
    %2706 = vmatpush1.msra.mxu0 %v2321
    %2707 = vmatprep.subr.mxu0 0.0
    %2708 = vmatpush1.msra.mxu0 0.0
    %2709 = vmatprep.subr.mxu0 0.0
    %2710 = vmatpush1.msra.mxu0 0.0
    %2711 = vmatprep.subr.mxu0 0.0
    %2712 = vmatpush1.msra.mxu0 0.0
    %2713 = vmatprep.subr.mxu0 0.0
    %2714 = vmatpush1.msra.mxu0 0.0
    %2715 = vmatprep.subr.mxu0 0.0
    %2716 = vmatpush1.msra.mxu0 0.0
    %2717 = vmatprep.subr.mxu0 0.0
    %2718 = vmatpush1.msra.mxu0 0.0
    %2719 = vmatprep.subr.mxu0 0.0
    %2720 = vmatpush1.msra.mxu0 0.0
    %2721 = vmatprep.subr.mxu0 0.0
    %2722 = vmatpush1.msra.mxu0 0.0
    %2723 = vmatprep.subr.mxu0 0.0
    %2724 = vmatpush1.msra.mxu0 0.0
    %2725 = vmatprep.subr.mxu0 0.0
    %2726 = vmatpush1.msra.mxu0 0.0
    %2727 = vmatprep.subr.mxu0 0.0
    %2728 = vmatpush1.msra.mxu0 0.0
    %2729 = vmatprep.subr.mxu0 0.0
    %2730 = vmatpush1.msra.mxu0 0.0
    %2731 = vmatprep.subr.mxu0 0.0
    %2732 = vmatpush1.msra.mxu0 0.0
    %2733 = vmatprep.subr.mxu0 0.0
    %2734 = vmatpush1.msra.mxu0 0.0
    %2735 = vmatprep.subr.mxu0 0.0
    %2736 = vmatpush1.msra.mxu0 0.0
    %2737 = vmatprep.subr.mxu0 0.0
    %2738 = vmatpush1.msra.mxu0 0.0
    %2739 = vmatprep.subr.mxu0 0.0
    %2740 = vmatpush1.msra.mxu0 0.0
    %2741 = vmatprep.subr.mxu0 0.0
    %2742 = vmatpush1.msra.mxu0 0.0
    %2743 = vmatprep.subr.mxu0 0.0
    %2744 = vmatpush1.msra.mxu0 0.0
    %2745 = vmatprep.subr.mxu0 0.0
    %2746 = vmatpush1.msra.mxu0 0.0
    %2747 = vmatprep.subr.mxu0 0.0
    %2748 = vmatpush1.msra.mxu0 0.0
    %2749 = vmatprep.subr.mxu0 0.0
    %2750 = vmatpush1.msra.mxu0 0.0
    %2751 = vmatprep.subr.mxu0 0.0
    %2752 = vmatpush1.msra.mxu0 0.0
    %2753 = vmatprep.subr.mxu0 0.0
    %2754 = vmatpush1.msra.mxu0 0.0
    %2755 = vmatprep.subr.mxu0 0.0
    %2756 = vmatpush1.msra.mxu0 0.0
    %2757 = vmatprep.subr.mxu0 0.0
    %2758 = vmatpush1.msra.mxu0 0.0
    %2759 = vmatprep.subr.mxu0 0.0
    %2760 = vmatpush1.msra.mxu0 0.0
    %2761 = vmatprep.subr.mxu0 0.0
    %2762 = vmatpush1.msra.mxu0 0.0
    %2763 = vmatprep.subr.mxu0 0.0
    %2764 = vmatpush1.msra.mxu0 0.0
    %2765 = vmatprep.subr.mxu0 0.0
    %2766 = vmatpush1.msra.mxu0 0.0
    %2767 = vmatprep.subr.mxu0 0.0
    %2768 = vmatpush1.msra.mxu0 0.0
    %2769 = vmatprep.mubr.f32.mxu0 0.0
    %2770 = vmatmul.mubr.f32.gmra.mrb[0].mxu0 %v2561
    %v2771 = vpop.f32.mrb[0].mxu0
    %v2772 = vadd.f32 %v2556, %v2771
    %v2773 = vpop.f32.mrb[0].mxu0
    %v2774 = vadd.f32 %v2558, %v2773
    %2775 = vdwg.mxu0
    %2776 = vrot.lane.b32.xlu0 %v2317, 18
    %v2777 = vpop.permute.xlu0 %2776
    %2778 = vrot.lane.b32.xlu0 %v2318, 18
    %v2779 = vpop.permute.xlu0 %2778
    %2780 = vrot.lane.b32.xlu0 %v2319, 18
    %v2781 = vpop.permute.xlu0 %2780
    %2782 = vrot.lane.b32.xlu0 %v2320, 18
    %v2783 = vpop.permute.xlu0 %2782
    %2784 = vrot.lane.b32.xlu0 %v2321, 18
    %v2785 = vpop.permute.xlu0 %2784
    %2786 = vrot.lane.b32.xlu0 %v2322, 18
    %v2787 = vpop.permute.xlu0 %2786
    %v2788 = vsel %vm511, %v2785, %v2787
    %v2789 = vsel %vm511, %v2783, %v2785
    %v2790 = vsel %vm511, %v2781, %v2783
    %v2791 = vsel %vm511, %v2779, %v2781
    %v2792 = vsel %vm511, %v2777, %v2779
    %v2793 = vsel %vm511, %v2787, %v2777
    %s2794 = scalar_lea.vmem %s6, 8
    %v2795 = vld [vmem:[%s2794] sm:$0xff]
    %v2797 = vsel %vm66, %v2795, 0
    %2799 = vmatprep.subr.mxu0 %v2792
    %2800 = vmatpush1.msra.mxu0 %v2793
    %2801 = vmatprep.subr.mxu0 0.0
    %2802 = vmatpush1.msra.mxu0 0.0
    %2803 = vmatprep.subr.mxu0 0.0
    %2804 = vmatpush1.msra.mxu0 0.0
    %2805 = vmatprep.subr.mxu0 0.0
    %2806 = vmatpush1.msra.mxu0 0.0
    %2807 = vmatprep.subr.mxu0 0.0
    %2808 = vmatpush1.msra.mxu0 0.0
    %2809 = vmatprep.subr.mxu0 0.0
    %2810 = vmatpush1.msra.mxu0 0.0
    %2811 = vmatprep.subr.mxu0 0.0
    %2812 = vmatpush1.msra.mxu0 0.0
    %2813 = vmatprep.subr.mxu0 0.0
    %2814 = vmatpush1.msra.mxu0 0.0
    %2815 = vmatprep.subr.mxu0 0.0
    %2816 = vmatpush1.msra.mxu0 0.0
    %2817 = vmatprep.subr.mxu0 0.0
    %2818 = vmatpush1.msra.mxu0 0.0
    %2819 = vmatprep.subr.mxu0 0.0
    %2820 = vmatpush1.msra.mxu0 0.0
    %2821 = vmatprep.subr.mxu0 0.0
    %2822 = vmatpush1.msra.mxu0 0.0
    %2823 = vmatprep.subr.mxu0 0.0
    %2824 = vmatpush1.msra.mxu0 0.0
    %2825 = vmatprep.subr.mxu0 0.0
    %2826 = vmatpush1.msra.mxu0 0.0
    %2827 = vmatprep.subr.mxu0 0.0
    %2828 = vmatpush1.msra.mxu0 0.0
    %2829 = vmatprep.subr.mxu0 0.0
    %2830 = vmatpush1.msra.mxu0 0.0
    %2831 = vmatprep.subr.mxu0 0.0
    %2832 = vmatpush1.msra.mxu0 0.0
    %2833 = vmatprep.subr.mxu0 0.0
    %2834 = vmatpush1.msra.mxu0 0.0
    %2835 = vmatprep.subr.mxu0 0.0
    %2836 = vmatpush1.msra.mxu0 0.0
    %2837 = vmatprep.subr.mxu0 0.0
    %2838 = vmatpush1.msra.mxu0 0.0
    %2839 = vmatprep.subr.mxu0 0.0
    %2840 = vmatpush1.msra.mxu0 0.0
    %2841 = vmatprep.subr.mxu0 0.0
    %2842 = vmatpush1.msra.mxu0 0.0
    %2843 = vmatprep.subr.mxu0 0.0
    %2844 = vmatpush1.msra.mxu0 0.0
    %2845 = vmatprep.subr.mxu0 0.0
    %2846 = vmatpush1.msra.mxu0 0.0
    %2847 = vmatprep.subr.mxu0 0.0
    %2848 = vmatpush1.msra.mxu0 0.0
    %2849 = vmatprep.subr.mxu0 0.0
    %2850 = vmatpush1.msra.mxu0 0.0
    %2851 = vmatprep.subr.mxu0 0.0
    %2852 = vmatpush1.msra.mxu0 0.0
    %2853 = vmatprep.subr.mxu0 0.0
    %2854 = vmatpush1.msra.mxu0 0.0
    %2855 = vmatprep.subr.mxu0 0.0
    %2856 = vmatpush1.msra.mxu0 0.0
    %2857 = vmatprep.subr.mxu0 0.0
    %2858 = vmatpush1.msra.mxu0 0.0
    %2859 = vmatprep.subr.mxu0 0.0
    %2860 = vmatpush1.msra.mxu0 0.0
    %2861 = vmatprep.subr.mxu0 0.0
    %2862 = vmatpush1.msra.mxu0 0.0
    %2863 = vmatprep.mubr.f32.mxu0 0.0
    %2864 = vmatmul.mubr.f32.gmra.mrb[0].mxu0 %v2797
    %v2865 = vpop.f32.mrb[0].mxu0
    %v2866 = vadd.f32 0.0, %v2865
    %v2867 = vpop.f32.mrb[0].mxu0
    %v2868 = vadd.f32 0.0, %v2867
    %2869 = vdwg.mxu0
    %2870 = vmatprep.subr.mxu0 %v2790
    %2871 = vmatpush1.msra.mxu0 %v2791
    %2872 = vmatprep.subr.mxu0 0.0
    %2873 = vmatpush1.msra.mxu0 0.0
    %2874 = vmatprep.subr.mxu0 0.0
    %2875 = vmatpush1.msra.mxu0 0.0
    %2876 = vmatprep.subr.mxu0 0.0
    %2877 = vmatpush1.msra.mxu0 0.0
    %2878 = vmatprep.subr.mxu0 0.0
    %2879 = vmatpush1.msra.mxu0 0.0
    %2880 = vmatprep.subr.mxu0 0.0
    %2881 = vmatpush1.msra.mxu0 0.0
    %2882 = vmatprep.subr.mxu0 0.0
    %2883 = vmatpush1.msra.mxu0 0.0
    %2884 = vmatprep.subr.mxu0 0.0
    %2885 = vmatpush1.msra.mxu0 0.0
    %2886 = vmatprep.subr.mxu0 0.0
    %2887 = vmatpush1.msra.mxu0 0.0
    %2888 = vmatprep.subr.mxu0 0.0
    %2889 = vmatpush1.msra.mxu0 0.0
    %2890 = vmatprep.subr.mxu0 0.0
    %2891 = vmatpush1.msra.mxu0 0.0
    %2892 = vmatprep.subr.mxu0 0.0
    %2893 = vmatpush1.msra.mxu0 0.0
    %2894 = vmatprep.subr.mxu0 0.0
    %2895 = vmatpush1.msra.mxu0 0.0
    %2896 = vmatprep.subr.mxu0 0.0
    %2897 = vmatpush1.msra.mxu0 0.0
    %2898 = vmatprep.subr.mxu0 0.0
    %2899 = vmatpush1.msra.mxu0 0.0
    %2900 = vmatprep.subr.mxu0 0.0
    %2901 = vmatpush1.msra.mxu0 0.0
    %2902 = vmatprep.subr.mxu0 0.0
    %2903 = vmatpush1.msra.mxu0 0.0
    %2904 = vmatprep.subr.mxu0 0.0
    %2905 = vmatpush1.msra.mxu0 0.0
    %2906 = vmatprep.subr.mxu0 0.0
    %2907 = vmatpush1.msra.mxu0 0.0
    %2908 = vmatprep.subr.mxu0 0.0
    %2909 = vmatpush1.msra.mxu0 0.0
    %2910 = vmatprep.subr.mxu0 0.0
    %2911 = vmatpush1.msra.mxu0 0.0
    %2912 = vmatprep.subr.mxu0 0.0
    %2913 = vmatpush1.msra.mxu0 0.0
    %2914 = vmatprep.subr.mxu0 0.0
    %2915 = vmatpush1.msra.mxu0 0.0
    %2916 = vmatprep.subr.mxu0 0.0
    %2917 = vmatpush1.msra.mxu0 0.0
    %2918 = vmatprep.subr.mxu0 0.0
    %2919 = vmatpush1.msra.mxu0 0.0
    %2920 = vmatprep.subr.mxu0 0.0
    %2921 = vmatpush1.msra.mxu0 0.0
    %2922 = vmatprep.subr.mxu0 0.0
    %2923 = vmatpush1.msra.mxu0 0.0
    %2924 = vmatprep.subr.mxu0 0.0
    %2925 = vmatpush1.msra.mxu0 0.0
    %2926 = vmatprep.subr.mxu0 0.0
    %2927 = vmatpush1.msra.mxu0 0.0
    %2928 = vmatprep.subr.mxu0 0.0
    %2929 = vmatpush1.msra.mxu0 0.0
    %2930 = vmatprep.subr.mxu0 0.0
    %2931 = vmatpush1.msra.mxu0 0.0
    %2932 = vmatprep.subr.mxu0 0.0
    %2933 = vmatpush1.msra.mxu0 0.0
    %2934 = vmatprep.mubr.f32.mxu0 0.0
    %2935 = vmatmul.mubr.f32.gmra.mrb[0].mxu0 %v2797
    %v2936 = vpop.f32.mrb[0].mxu0
    %v2937 = vadd.f32 0.0, %v2936
    %v2938 = vpop.f32.mrb[0].mxu0
    %v2939 = vadd.f32 0.0, %v2938
    %2940 = vdwg.mxu0
    %2941 = vmatprep.subr.mxu0 %v2788
    %2942 = vmatpush1.msra.mxu0 %v2789
    %2943 = vmatprep.subr.mxu0 0.0
    %2944 = vmatpush1.msra.mxu0 0.0
    %2945 = vmatprep.subr.mxu0 0.0
    %2946 = vmatpush1.msra.mxu0 0.0
    %2947 = vmatprep.subr.mxu0 0.0
    %2948 = vmatpush1.msra.mxu0 0.0
    %2949 = vmatprep.subr.mxu0 0.0
    %2950 = vmatpush1.msra.mxu0 0.0
    %2951 = vmatprep.subr.mxu0 0.0
    %2952 = vmatpush1.msra.mxu0 0.0
    %2953 = vmatprep.subr.mxu0 0.0
    %2954 = vmatpush1.msra.mxu0 0.0
    %2955 = vmatprep.subr.mxu0 0.0
    %2956 = vmatpush1.msra.mxu0 0.0
    %2957 = vmatprep.subr.mxu0 0.0
    %2958 = vmatpush1.msra.mxu0 0.0
    %2959 = vmatprep.subr.mxu0 0.0
    %2960 = vmatpush1.msra.mxu0 0.0
    %2961 = vmatprep.subr.mxu0 0.0
    %2962 = vmatpush1.msra.mxu0 0.0
    %2963 = vmatprep.subr.mxu0 0.0
    %2964 = vmatpush1.msra.mxu0 0.0
    %2965 = vmatprep.subr.mxu0 0.0
    %2966 = vmatpush1.msra.mxu0 0.0
    %2967 = vmatprep.subr.mxu0 0.0
    %2968 = vmatpush1.msra.mxu0 0.0
    %2969 = vmatprep.subr.mxu0 0.0
    %2970 = vmatpush1.msra.mxu0 0.0
    %2971 = vmatprep.subr.mxu0 0.0
    %2972 = vmatpush1.msra.mxu0 0.0
    %2973 = vmatprep.subr.mxu0 0.0
    %2974 = vmatpush1.msra.mxu0 0.0
    %2975 = vmatprep.subr.mxu0 0.0
    %2976 = vmatpush1.msra.mxu0 0.0
    %2977 = vmatprep.subr.mxu0 0.0
    %2978 = vmatpush1.msra.mxu0 0.0
    %2979 = vmatprep.subr.mxu0 0.0
    %2980 = vmatpush1.msra.mxu0 0.0
    %2981 = vmatprep.subr.mxu0 0.0
    %2982 = vmatpush1.msra.mxu0 0.0
    %2983 = vmatprep.subr.mxu0 0.0
    %2984 = vmatpush1.msra.mxu0 0.0
    %2985 = vmatprep.subr.mxu0 0.0
    %2986 = vmatpush1.msra.mxu0 0.0
    %2987 = vmatprep.subr.mxu0 0.0
    %2988 = vmatpush1.msra.mxu0 0.0
    %2989 = vmatprep.subr.mxu0 0.0
    %2990 = vmatpush1.msra.mxu0 0.0
    %2991 = vmatprep.subr.mxu0 0.0
    %2992 = vmatpush1.msra.mxu0 0.0
    %2993 = vmatprep.subr.mxu0 0.0
    %2994 = vmatpush1.msra.mxu0 0.0
    %2995 = vmatprep.subr.mxu0 0.0
    %2996 = vmatpush1.msra.mxu0 0.0
    %2997 = vmatprep.subr.mxu0 0.0
    %2998 = vmatpush1.msra.mxu0 0.0
    %2999 = vmatprep.subr.mxu0 0.0
    %3000 = vmatpush1.msra.mxu0 0.0
    %3001 = vmatprep.subr.mxu0 0.0
    %3002 = vmatpush1.msra.mxu0 0.0
    %3003 = vmatprep.subr.mxu0 0.0
    %3004 = vmatpush1.msra.mxu0 0.0
    %3005 = vmatprep.mubr.f32.mxu0 0.0
    %3006 = vmatmul.mubr.f32.gmra.mrb[0].mxu0 %v2797
    %v3007 = vpop.f32.mrb[0].mxu0
    %v3008 = vadd.f32 0.0, %v3007
    %v3009 = vpop.f32.mrb[0].mxu0
    %v3010 = vadd.f32 0.0, %v3009
    %3011 = vdwg.mxu0
    %v3012 = vadd.f32 %v2630, %v2866
    %v3013 = vadd.f32 %v2632, %v2868
    %v3014 = vadd.f32 %v2701, %v2937
    %v3015 = vadd.f32 %v2703, %v2939
    %v3016 = vadd.f32 %v2772, %v3008
    %v3017 = vadd.f32 %v2774, %v3010
    %3018 = vrot.lane.b32.xlu0 %v2317, 17
    %v3019 = vpop.permute.xlu0 %3018
    %3020 = vrot.lane.b32.xlu0 %v2318, 17
    %v3021 = vpop.permute.xlu0 %3020
    %3022 = vrot.lane.b32.xlu0 %v2319, 17
    %v3023 = vpop.permute.xlu0 %3022
    %3024 = vrot.lane.b32.xlu0 %v2320, 17
    %v3025 = vpop.permute.xlu0 %3024
    %3026 = vrot.lane.b32.xlu0 %v2321, 17
    %v3027 = vpop.permute.xlu0 %3026
    %3028 = vrot.lane.b32.xlu0 %v2322, 17
    %v3029 = vpop.permute.xlu0 %3028
    %v3030 = vsel %vm754, %v3027, %v3029
    %v3031 = vsel %vm754, %v3025, %v3027
    %v3032 = vsel %vm754, %v3023, %v3025
    %v3033 = vsel %vm754, %v3021, %v3023
    %v3034 = vsel %vm754, %v3019, %v3021
    %v3035 = vsel %vm754, %v3029, %v3019
    %s3036 = scalar_lea.vmem %s6, 16
    %v3037 = vld [vmem:[%s3036] sm:$0xff]
    %v3039 = vsel %vm66, %v3037, 0
    %3041 = vmatprep.subr.mxu0 %v3034
    %3042 = vmatpush1.msra.mxu0 %v3035
    %3043 = vmatprep.subr.mxu0 0.0
    %3044 = vmatpush1.msra.mxu0 0.0
    %3045 = vmatprep.subr.mxu0 0.0
    %3046 = vmatpush1.msra.mxu0 0.0
    %3047 = vmatprep.subr.mxu0 0.0
    %3048 = vmatpush1.msra.mxu0 0.0
    %3049 = vmatprep.subr.mxu0 0.0
    %3050 = vmatpush1.msra.mxu0 0.0
    %3051 = vmatprep.subr.mxu0 0.0
    %3052 = vmatpush1.msra.mxu0 0.0
    %3053 = vmatprep.subr.mxu0 0.0
    %3054 = vmatpush1.msra.mxu0 0.0
    %3055 = vmatprep.subr.mxu0 0.0
    %3056 = vmatpush1.msra.mxu0 0.0
    %3057 = vmatprep.subr.mxu0 0.0
    %3058 = vmatpush1.msra.mxu0 0.0
    %3059 = vmatprep.subr.mxu0 0.0
    %3060 = vmatpush1.msra.mxu0 0.0
    %3061 = vmatprep.subr.mxu0 0.0
    %3062 = vmatpush1.msra.mxu0 0.0
    %3063 = vmatprep.subr.mxu0 0.0
    %3064 = vmatpush1.msra.mxu0 0.0
    %3065 = vmatprep.subr.mxu0 0.0
    %3066 = vmatpush1.msra.mxu0 0.0
    %3067 = vmatprep.subr.mxu0 0.0
    %3068 = vmatpush1.msra.mxu0 0.0
    %3069 = vmatprep.subr.mxu0 0.0
    %3070 = vmatpush1.msra.mxu0 0.0
    %3071 = vmatprep.subr.mxu0 0.0
    %3072 = vmatpush1.msra.mxu0 0.0
    %3073 = vmatprep.subr.mxu0 0.0
    %3074 = vmatpush1.msra.mxu0 0.0
    %3075 = vmatprep.subr.mxu0 0.0
    %3076 = vmatpush1.msra.mxu0 0.0
    %3077 = vmatprep.subr.mxu0 0.0
    %3078 = vmatpush1.msra.mxu0 0.0
    %3079 = vmatprep.subr.mxu0 0.0
    %3080 = vmatpush1.msra.mxu0 0.0
    %3081 = vmatprep.subr.mxu0 0.0
    %3082 = vmatpush1.msra.mxu0 0.0
    %3083 = vmatprep.subr.mxu0 0.0
    %3084 = vmatpush1.msra.mxu0 0.0
    %3085 = vmatprep.subr.mxu0 0.0
    %3086 = vmatpush1.msra.mxu0 0.0
    %3087 = vmatprep.subr.mxu0 0.0
    %3088 = vmatpush1.msra.mxu0 0.0
    %3089 = vmatprep.subr.mxu0 0.0
    %3090 = vmatpush1.msra.mxu0 0.0
    %3091 = vmatprep.subr.mxu0 0.0
    %3092 = vmatpush1.msra.mxu0 0.0
    %3093 = vmatprep.subr.mxu0 0.0
    %3094 = vmatpush1.msra.mxu0 0.0
    %3095 = vmatprep.subr.mxu0 0.0
    %3096 = vmatpush1.msra.mxu0 0.0
    %3097 = vmatprep.subr.mxu0 0.0
    %3098 = vmatpush1.msra.mxu0 0.0
    %3099 = vmatprep.subr.mxu0 0.0
    %3100 = vmatpush1.msra.mxu0 0.0
    %3101 = vmatprep.subr.mxu0 0.0
    %3102 = vmatpush1.msra.mxu0 0.0
    %3103 = vmatprep.subr.mxu0 0.0
    %3104 = vmatpush1.msra.mxu0 0.0
    %3105 = vmatprep.mubr.f32.mxu0 0.0
    %3106 = vmatmul.mubr.f32.gmra.mrb[0].mxu0 %v3039
    %v3107 = vpop.f32.mrb[0].mxu0
    %v3108 = vadd.f32 0.0, %v3107
    %v3109 = vpop.f32.mrb[0].mxu0
    %v3110 = vadd.f32 0.0, %v3109
    %3111 = vdwg.mxu0
    %3112 = vmatprep.subr.mxu0 %v3032
    %3113 = vmatpush1.msra.mxu0 %v3033
    %3114 = vmatprep.subr.mxu0 0.0
    %3115 = vmatpush1.msra.mxu0 0.0
    %3116 = vmatprep.subr.mxu0 0.0
    %3117 = vmatpush1.msra.mxu0 0.0
    %3118 = vmatprep.subr.mxu0 0.0
    %3119 = vmatpush1.msra.mxu0 0.0
    %3120 = vmatprep.subr.mxu0 0.0
    %3121 = vmatpush1.msra.mxu0 0.0
    %3122 = vmatprep.subr.mxu0 0.0
    %3123 = vmatpush1.msra.mxu0 0.0
    %3124 = vmatprep.subr.mxu0 0.0
    %3125 = vmatpush1.msra.mxu0 0.0
    %3126 = vmatprep.subr.mxu0 0.0
    %3127 = vmatpush1.msra.mxu0 0.0
    %3128 = vmatprep.subr.mxu0 0.0
    %3129 = vmatpush1.msra.mxu0 0.0
    %3130 = vmatprep.subr.mxu0 0.0
    %3131 = vmatpush1.msra.mxu0 0.0
    %3132 = vmatprep.subr.mxu0 0.0
    %3133 = vmatpush1.msra.mxu0 0.0
    %3134 = vmatprep.subr.mxu0 0.0
    %3135 = vmatpush1.msra.mxu0 0.0
    %3136 = vmatprep.subr.mxu0 0.0
    %3137 = vmatpush1.msra.mxu0 0.0
    %3138 = vmatprep.subr.mxu0 0.0
    %3139 = vmatpush1.msra.mxu0 0.0
    %3140 = vmatprep.subr.mxu0 0.0
    %3141 = vmatpush1.msra.mxu0 0.0
    %3142 = vmatprep.subr.mxu0 0.0
    %3143 = vmatpush1.msra.mxu0 0.0
    %3144 = vmatprep.subr.mxu0 0.0
    %3145 = vmatpush1.msra.mxu0 0.0
    %3146 = vmatprep.subr.mxu0 0.0
    %3147 = vmatpush1.msra.mxu0 0.0
    %3148 = vmatprep.subr.mxu0 0.0
    %3149 = vmatpush1.msra.mxu0 0.0
    %3150 = vmatprep.subr.mxu0 0.0
    %3151 = vmatpush1.msra.mxu0 0.0
    %3152 = vmatprep.subr.mxu0 0.0
    %3153 = vmatpush1.msra.mxu0 0.0
    %3154 = vmatprep.subr.mxu0 0.0
    %3155 = vmatpush1.msra.mxu0 0.0
    %3156 = vmatprep.subr.mxu0 0.0
    %3157 = vmatpush1.msra.mxu0 0.0
    %3158 = vmatprep.subr.mxu0 0.0
    %3159 = vmatpush1.msra.mxu0 0.0
    %3160 = vmatprep.subr.mxu0 0.0
    %3161 = vmatpush1.msra.mxu0 0.0
    %3162 = vmatprep.subr.mxu0 0.0
    %3163 = vmatpush1.msra.mxu0 0.0
    %3164 = vmatprep.subr.mxu0 0.0
    %3165 = vmatpush1.msra.mxu0 0.0
    %3166 = vmatprep.subr.mxu0 0.0
    %3167 = vmatpush1.msra.mxu0 0.0
    %3168 = vmatprep.subr.mxu0 0.0
    %3169 = vmatpush1.msra.mxu0 0.0
    %3170 = vmatprep.subr.mxu0 0.0
    %3171 = vmatpush1.msra.mxu0 0.0
    %3172 = vmatprep.subr.mxu0 0.0
    %3173 = vmatpush1.msra.mxu0 0.0
    %3174 = vmatprep.subr.mxu0 0.0
    %3175 = vmatpush1.msra.mxu0 0.0
    %3176 = vmatprep.mubr.f32.mxu0 0.0
    %3177 = vmatmul.mubr.f32.gmra.mrb[0].mxu0 %v3039
    %v3178 = vpop.f32.mrb[0].mxu0
    %v3179 = vadd.f32 0.0, %v3178
    %v3180 = vpop.f32.mrb[0].mxu0
    %v3181 = vadd.f32 0.0, %v3180
    %3182 = vdwg.mxu0
    %3183 = vmatprep.subr.mxu0 %v3030
    %3184 = vmatpush1.msra.mxu0 %v3031
    %3185 = vmatprep.subr.mxu0 0.0
    %3186 = vmatpush1.msra.mxu0 0.0
    %3187 = vmatprep.subr.mxu0 0.0
    %3188 = vmatpush1.msra.mxu0 0.0
    %3189 = vmatprep.subr.mxu0 0.0
    %3190 = vmatpush1.msra.mxu0 0.0
    %3191 = vmatprep.subr.mxu0 0.0
    %3192 = vmatpush1.msra.mxu0 0.0
    %3193 = vmatprep.subr.mxu0 0.0
    %3194 = vmatpush1.msra.mxu0 0.0
    %3195 = vmatprep.subr.mxu0 0.0
    %3196 = vmatpush1.msra.mxu0 0.0
    %3197 = vmatprep.subr.mxu0 0.0
    %3198 = vmatpush1.msra.mxu0 0.0
    %3199 = vmatprep.subr.mxu0 0.0
    %3200 = vmatpush1.msra.mxu0 0.0
    %3201 = vmatprep.subr.mxu0 0.0
    %3202 = vmatpush1.msra.mxu0 0.0
    %3203 = vmatprep.subr.mxu0 0.0
    %3204 = vmatpush1.msra.mxu0 0.0
    %3205 = vmatprep.subr.mxu0 0.0
    %3206 = vmatpush1.msra.mxu0 0.0
    %3207 = vmatprep.subr.mxu0 0.0
    %3208 = vmatpush1.msra.mxu0 0.0
    %3209 = vmatprep.subr.mxu0 0.0
    %3210 = vmatpush1.msra.mxu0 0.0
    %3211 = vmatprep.subr.mxu0 0.0
    %3212 = vmatpush1.msra.mxu0 0.0
    %3213 = vmatprep.subr.mxu0 0.0
    %3214 = vmatpush1.msra.mxu0 0.0
    %3215 = vmatprep.subr.mxu0 0.0
    %3216 = vmatpush1.msra.mxu0 0.0
    %3217 = vmatprep.subr.mxu0 0.0
    %3218 = vmatpush1.msra.mxu0 0.0
    %3219 = vmatprep.subr.mxu0 0.0
    %3220 = vmatpush1.msra.mxu0 0.0
    %3221 = vmatprep.subr.mxu0 0.0
    %3222 = vmatpush1.msra.mxu0 0.0
    %3223 = vmatprep.subr.mxu0 0.0
    %3224 = vmatpush1.msra.mxu0 0.0
    %3225 = vmatprep.subr.mxu0 0.0
    %3226 = vmatpush1.msra.mxu0 0.0
    %3227 = vmatprep.subr.mxu0 0.0
    %3228 = vmatpush1.msra.mxu0 0.0
    %3229 = vmatprep.subr.mxu0 0.0
    %3230 = vmatpush1.msra.mxu0 0.0
    %3231 = vmatprep.subr.mxu0 0.0
    %3232 = vmatpush1.msra.mxu0 0.0
    %3233 = vmatprep.subr.mxu0 0.0
    %3234 = vmatpush1.msra.mxu0 0.0
    %3235 = vmatprep.subr.mxu0 0.0
    %3236 = vmatpush1.msra.mxu0 0.0
    %3237 = vmatprep.subr.mxu0 0.0
    %3238 = vmatpush1.msra.mxu0 0.0
    %3239 = vmatprep.subr.mxu0 0.0
    %3240 = vmatpush1.msra.mxu0 0.0
    %3241 = vmatprep.subr.mxu0 0.0
    %3242 = vmatpush1.msra.mxu0 0.0
    %3243 = vmatprep.subr.mxu0 0.0
    %3244 = vmatpush1.msra.mxu0 0.0
    %3245 = vmatprep.subr.mxu0 0.0
    %3246 = vmatpush1.msra.mxu0 0.0
    %3247 = vmatprep.mubr.f32.mxu0 0.0
    %3248 = vmatmul.mubr.f32.gmra.mrb[0].mxu0 %v3039
    %v3249 = vpop.f32.mrb[0].mxu0
    %v3250 = vadd.f32 0.0, %v3249
    %v3251 = vpop.f32.mrb[0].mxu0
    %v3252 = vadd.f32 0.0, %v3251
    %3253 = vdwg.mxu0
    %v3254 = vadd.f32 %v3012, %v3108
    %v3255 = vadd.f32 %v3013, %v3110
    %v3256 = vadd.f32 %v3014, %v3179
    %v3257 = vadd.f32 %v3015, %v3181
    %v3258 = vadd.f32 %v3016, %v3250
    %v3259 = vadd.f32 %v3017, %v3252
    %3260 = vrot.lane.b32.xlu0 %v2317, 1
    %v3261 = vpop.permute.xlu0 %3260
    %3262 = vrot.lane.b32.xlu0 %v2318, 1
    %v3263 = vpop.permute.xlu0 %3262
    %3264 = vrot.lane.b32.xlu0 %v2319, 1
    %v3265 = vpop.permute.xlu0 %3264
    %3266 = vrot.lane.b32.xlu0 %v2320, 1
    %v3267 = vpop.permute.xlu0 %3266
    %3268 = vrot.lane.b32.xlu0 %v2321, 1
    %v3269 = vpop.permute.xlu0 %3268
    %3270 = vrot.lane.b32.xlu0 %v2322, 1
    %v3271 = vpop.permute.xlu0 %3270
    %v3272 = vsel %vm997, %v3269, %v3271
    %v3273 = vsel %vm997, %v3267, %v3269
    %v3274 = vsel %vm997, %v3265, %v3267
    %v3275 = vsel %vm997, %v3263, %v3265
    %v3276 = vsel %vm997, %v3261, %v3263
    %v3277 = vsel %vm997, %v3271, %v3261
    %s3278 = scalar_lea.vmem %s6, 24
    %v3279 = vld [vmem:[%s3278] sm:$0xff]
    %v3281 = vsel %vm66, %v3279, 0
    %3283 = vmatprep.subr.mxu0 %v3276
    %3284 = vmatpush1.msra.mxu0 %v3277
    %3285 = vmatprep.subr.mxu0 0.0
    %3286 = vmatpush1.msra.mxu0 0.0
    %3287 = vmatprep.subr.mxu0 0.0
    %3288 = vmatpush1.msra.mxu0 0.0
    %3289 = vmatprep.subr.mxu0 0.0
    %3290 = vmatpush1.msra.mxu0 0.0
    %3291 = vmatprep.subr.mxu0 0.0
    %3292 = vmatpush1.msra.mxu0 0.0
    %3293 = vmatprep.subr.mxu0 0.0
    %3294 = vmatpush1.msra.mxu0 0.0
    %3295 = vmatprep.subr.mxu0 0.0
    %3296 = vmatpush1.msra.mxu0 0.0
    %3297 = vmatprep.subr.mxu0 0.0
    %3298 = vmatpush1.msra.mxu0 0.0
    %3299 = vmatprep.subr.mxu0 0.0
    %3300 = vmatpush1.msra.mxu0 0.0
    %3301 = vmatprep.subr.mxu0 0.0
    %3302 = vmatpush1.msra.mxu0 0.0
    %3303 = vmatprep.subr.mxu0 0.0
    %3304 = vmatpush1.msra.mxu0 0.0
    %3305 = vmatprep.subr.mxu0 0.0
    %3306 = vmatpush1.msra.mxu0 0.0
    %3307 = vmatprep.subr.mxu0 0.0
    %3308 = vmatpush1.msra.mxu0 0.0
    %3309 = vmatprep.subr.mxu0 0.0
    %3310 = vmatpush1.msra.mxu0 0.0
    %3311 = vmatprep.subr.mxu0 0.0
    %3312 = vmatpush1.msra.mxu0 0.0
    %3313 = vmatprep.subr.mxu0 0.0
    %3314 = vmatpush1.msra.mxu0 0.0
    %3315 = vmatprep.subr.mxu0 0.0
    %3316 = vmatpush1.msra.mxu0 0.0
    %3317 = vmatprep.subr.mxu0 0.0
    %3318 = vmatpush1.msra.mxu0 0.0
    %3319 = vmatprep.subr.mxu0 0.0
    %3320 = vmatpush1.msra.mxu0 0.0
    %3321 = vmatprep.subr.mxu0 0.0
    %3322 = vmatpush1.msra.mxu0 0.0
    %3323 = vmatprep.subr.mxu0 0.0
    %3324 = vmatpush1.msra.mxu0 0.0
    %3325 = vmatprep.subr.mxu0 0.0
    %3326 = vmatpush1.msra.mxu0 0.0
    %3327 = vmatprep.subr.mxu0 0.0
    %3328 = vmatpush1.msra.mxu0 0.0
    %3329 = vmatprep.subr.mxu0 0.0
    %3330 = vmatpush1.msra.mxu0 0.0
    %3331 = vmatprep.subr.mxu0 0.0
    %3332 = vmatpush1.msra.mxu0 0.0
    %3333 = vmatprep.subr.mxu0 0.0
    %3334 = vmatpush1.msra.mxu0 0.0
    %3335 = vmatprep.subr.mxu0 0.0
    %3336 = vmatpush1.msra.mxu0 0.0
    %3337 = vmatprep.subr.mxu0 0.0
    %3338 = vmatpush1.msra.mxu0 0.0
    %3339 = vmatprep.subr.mxu0 0.0
    %3340 = vmatpush1.msra.mxu0 0.0
    %3341 = vmatprep.subr.mxu0 0.0
    %3342 = vmatpush1.msra.mxu0 0.0
    %3343 = vmatprep.subr.mxu0 0.0
    %3344 = vmatpush1.msra.mxu0 0.0
    %3345 = vmatprep.subr.mxu0 0.0
    %3346 = vmatpush1.msra.mxu0 0.0
    %3347 = vmatprep.mubr.f32.mxu0 0.0
    %3348 = vmatmul.mubr.f32.gmra.mrb[0].mxu0 %v3281
    %v3349 = vpop.f32.mrb[0].mxu0
    %v3350 = vadd.f32 0.0, %v3349
    %v3351 = vpop.f32.mrb[0].mxu0
    %v3352 = vadd.f32 0.0, %v3351
    %3353 = vdwg.mxu0
    %3354 = vmatprep.subr.mxu0 %v3274
    %3355 = vmatpush1.msra.mxu0 %v3275
    %3356 = vmatprep.subr.mxu0 0.0
    %3357 = vmatpush1.msra.mxu0 0.0
    %3358 = vmatprep.subr.mxu0 0.0
    %3359 = vmatpush1.msra.mxu0 0.0
    %3360 = vmatprep.subr.mxu0 0.0
    %3361 = vmatpush1.msra.mxu0 0.0
    %3362 = vmatprep.subr.mxu0 0.0
    %3363 = vmatpush1.msra.mxu0 0.0
    %3364 = vmatprep.subr.mxu0 0.0
    %3365 = vmatpush1.msra.mxu0 0.0
    %3366 = vmatprep.subr.mxu0 0.0
    %3367 = vmatpush1.msra.mxu0 0.0
    %3368 = vmatprep.subr.mxu0 0.0
    %3369 = vmatpush1.msra.mxu0 0.0
    %3370 = vmatprep.subr.mxu0 0.0
    %3371 = vmatpush1.msra.mxu0 0.0
    %3372 = vmatprep.subr.mxu0 0.0
    %3373 = vmatpush1.msra.mxu0 0.0
    %3374 = vmatprep.subr.mxu0 0.0
    %3375 = vmatpush1.msra.mxu0 0.0
    %3376 = vmatprep.subr.mxu0 0.0
    %3377 = vmatpush1.msra.mxu0 0.0
    %3378 = vmatprep.subr.mxu0 0.0
    %3379 = vmatpush1.msra.mxu0 0.0
    %3380 = vmatprep.subr.mxu0 0.0
    %3381 = vmatpush1.msra.mxu0 0.0
    %3382 = vmatprep.subr.mxu0 0.0
    %3383 = vmatpush1.msra.mxu0 0.0
    %3384 = vmatprep.subr.mxu0 0.0
    %3385 = vmatpush1.msra.mxu0 0.0
    %3386 = vmatprep.subr.mxu0 0.0
    %3387 = vmatpush1.msra.mxu0 0.0
    %3388 = vmatprep.subr.mxu0 0.0
    %3389 = vmatpush1.msra.mxu0 0.0
    %3390 = vmatprep.subr.mxu0 0.0
    %3391 = vmatpush1.msra.mxu0 0.0
    %3392 = vmatprep.subr.mxu0 0.0
    %3393 = vmatpush1.msra.mxu0 0.0
    %3394 = vmatprep.subr.mxu0 0.0
    %3395 = vmatpush1.msra.mxu0 0.0
    %3396 = vmatprep.subr.mxu0 0.0
    %3397 = vmatpush1.msra.mxu0 0.0
    %3398 = vmatprep.subr.mxu0 0.0
    %3399 = vmatpush1.msra.mxu0 0.0
    %3400 = vmatprep.subr.mxu0 0.0
    %3401 = vmatpush1.msra.mxu0 0.0
    %3402 = vmatprep.subr.mxu0 0.0
    %3403 = vmatpush1.msra.mxu0 0.0
    %3404 = vmatprep.subr.mxu0 0.0
    %3405 = vmatpush1.msra.mxu0 0.0
    %3406 = vmatprep.subr.mxu0 0.0
    %3407 = vmatpush1.msra.mxu0 0.0
    %3408 = vmatprep.subr.mxu0 0.0
    %3409 = vmatpush1.msra.mxu0 0.0
    %3410 = vmatprep.subr.mxu0 0.0
    %3411 = vmatpush1.msra.mxu0 0.0
    %3412 = vmatprep.subr.mxu0 0.0
    %3413 = vmatpush1.msra.mxu0 0.0
    %3414 = vmatprep.subr.mxu0 0.0
    %3415 = vmatpush1.msra.mxu0 0.0
    %3416 = vmatprep.subr.mxu0 0.0
    %3417 = vmatpush1.msra.mxu0 0.0
    %3418 = vmatprep.mubr.f32.mxu0 0.0
    %3419 = vmatmul.mubr.f32.gmra.mrb[0].mxu0 %v3281
    %v3420 = vpop.f32.mrb[0].mxu0
    %v3421 = vadd.f32 0.0, %v3420
    %v3422 = vpop.f32.mrb[0].mxu0
    %v3423 = vadd.f32 0.0, %v3422
    %3424 = vdwg.mxu0
    %3425 = vmatprep.subr.mxu0 %v3272
    %3426 = vmatpush1.msra.mxu0 %v3273
    %3427 = vmatprep.subr.mxu0 0.0
    %3428 = vmatpush1.msra.mxu0 0.0
    %3429 = vmatprep.subr.mxu0 0.0
    %3430 = vmatpush1.msra.mxu0 0.0
    %3431 = vmatprep.subr.mxu0 0.0
    %3432 = vmatpush1.msra.mxu0 0.0
    %3433 = vmatprep.subr.mxu0 0.0
    %3434 = vmatpush1.msra.mxu0 0.0
    %3435 = vmatprep.subr.mxu0 0.0
    %3436 = vmatpush1.msra.mxu0 0.0
    %3437 = vmatprep.subr.mxu0 0.0
    %3438 = vmatpush1.msra.mxu0 0.0
    %3439 = vmatprep.subr.mxu0 0.0
    %3440 = vmatpush1.msra.mxu0 0.0
    %3441 = vmatprep.subr.mxu0 0.0
    %3442 = vmatpush1.msra.mxu0 0.0
    %3443 = vmatprep.subr.mxu0 0.0
    %3444 = vmatpush1.msra.mxu0 0.0
    %3445 = vmatprep.subr.mxu0 0.0
    %3446 = vmatpush1.msra.mxu0 0.0
    %3447 = vmatprep.subr.mxu0 0.0
    %3448 = vmatpush1.msra.mxu0 0.0
    %3449 = vmatprep.subr.mxu0 0.0
    %3450 = vmatpush1.msra.mxu0 0.0
    %3451 = vmatprep.subr.mxu0 0.0
    %3452 = vmatpush1.msra.mxu0 0.0
    %3453 = vmatprep.subr.mxu0 0.0
    %3454 = vmatpush1.msra.mxu0 0.0
    %3455 = vmatprep.subr.mxu0 0.0
    %3456 = vmatpush1.msra.mxu0 0.0
    %3457 = vmatprep.subr.mxu0 0.0
    %3458 = vmatpush1.msra.mxu0 0.0
    %3459 = vmatprep.subr.mxu0 0.0
    %3460 = vmatpush1.msra.mxu0 0.0
    %3461 = vmatprep.subr.mxu0 0.0
    %3462 = vmatpush1.msra.mxu0 0.0
    %3463 = vmatprep.subr.mxu0 0.0
    %3464 = vmatpush1.msra.mxu0 0.0
    %3465 = vmatprep.subr.mxu0 0.0
    %3466 = vmatpush1.msra.mxu0 0.0
    %3467 = vmatprep.subr.mxu0 0.0
    %3468 = vmatpush1.msra.mxu0 0.0
    %3469 = vmatprep.subr.mxu0 0.0
    %3470 = vmatpush1.msra.mxu0 0.0
    %3471 = vmatprep.subr.mxu0 0.0
    %3472 = vmatpush1.msra.mxu0 0.0
    %3473 = vmatprep.subr.mxu0 0.0
    %3474 = vmatpush1.msra.mxu0 0.0
    %3475 = vmatprep.subr.mxu0 0.0
    %3476 = vmatpush1.msra.mxu0 0.0
    %3477 = vmatprep.subr.mxu0 0.0
    %3478 = vmatpush1.msra.mxu0 0.0
    %3479 = vmatprep.subr.mxu0 0.0
    %3480 = vmatpush1.msra.mxu0 0.0
    %3481 = vmatprep.subr.mxu0 0.0
    %3482 = vmatpush1.msra.mxu0 0.0
    %3483 = vmatprep.subr.mxu0 0.0
    %3484 = vmatpush1.msra.mxu0 0.0
    %3485 = vmatprep.subr.mxu0 0.0
    %3486 = vmatpush1.msra.mxu0 0.0
    %3487 = vmatprep.subr.mxu0 0.0
    %3488 = vmatpush1.msra.mxu0 0.0
    %3489 = vmatprep.mubr.f32.mxu0 0.0
    %3490 = vmatmul.mubr.f32.gmra.mrb[0].mxu0 %v3281
    %v3491 = vpop.f32.mrb[0].mxu0
    %v3492 = vadd.f32 0.0, %v3491
    %v3493 = vpop.f32.mrb[0].mxu0
    %v3494 = vadd.f32 0.0, %v3493
    %3495 = vdwg.mxu0
    %v3496 = vadd.f32 %v3254, %v3350
    %v3497 = vadd.f32 %v3255, %v3352
    %v3498 = vadd.f32 %v3256, %v3421
    %v3499 = vadd.f32 %v3257, %v3423
    %v3500 = vadd.f32 %v3258, %v3492
    %v3501 = vadd.f32 %v3259, %v3494
    %3502 = vrot.lane.b32.xlu0 %v2317, 127
    %v3503 = vpop.permute.xlu0 %3502
    %3504 = vrot.lane.b32.xlu0 %v2318, 127
    %v3505 = vpop.permute.xlu0 %3504
    %3506 = vrot.lane.b32.xlu0 %v2319, 127
    %v3507 = vpop.permute.xlu0 %3506
    %3508 = vrot.lane.b32.xlu0 %v2320, 127
    %v3509 = vpop.permute.xlu0 %3508
    %3510 = vrot.lane.b32.xlu0 %v2321, 127
    %v3511 = vpop.permute.xlu0 %3510
    %3512 = vrot.lane.b32.xlu0 %v2322, 127
    %v3513 = vpop.permute.xlu0 %3512
    %v3514 = vsel %vm1240, %v3511, %v3513
    %v3515 = vsel %vm1240, %v3509, %v3511
    %v3516 = vsel %vm1240, %v3507, %v3509
    %v3517 = vsel %vm1240, %v3505, %v3507
    %v3518 = vsel %vm1240, %v3503, %v3505
    %v3519 = vsel %vm1240, %v3513, %v3503
    %s3520 = scalar_lea.vmem %s6, 40
    %v3521 = vld [vmem:[%s3520] sm:$0xff]
    %v3523 = vsel %vm66, %v3521, 0
    %3525 = vmatprep.subr.mxu0 %v3517
    %3526 = vmatpush1.msra.mxu0 %v3518
    %3527 = vmatprep.subr.mxu0 0.0
    %3528 = vmatpush1.msra.mxu0 0.0
    %3529 = vmatprep.subr.mxu0 0.0
    %3530 = vmatpush1.msra.mxu0 0.0
    %3531 = vmatprep.subr.mxu0 0.0
    %3532 = vmatpush1.msra.mxu0 0.0
    %3533 = vmatprep.subr.mxu0 0.0
    %3534 = vmatpush1.msra.mxu0 0.0
    %3535 = vmatprep.subr.mxu0 0.0
    %3536 = vmatpush1.msra.mxu0 0.0
    %3537 = vmatprep.subr.mxu0 0.0
    %3538 = vmatpush1.msra.mxu0 0.0
    %3539 = vmatprep.subr.mxu0 0.0
    %3540 = vmatpush1.msra.mxu0 0.0
    %3541 = vmatprep.subr.mxu0 0.0
    %3542 = vmatpush1.msra.mxu0 0.0
    %3543 = vmatprep.subr.mxu0 0.0
    %3544 = vmatpush1.msra.mxu0 0.0
    %3545 = vmatprep.subr.mxu0 0.0
    %3546 = vmatpush1.msra.mxu0 0.0
    %3547 = vmatprep.subr.mxu0 0.0
    %3548 = vmatpush1.msra.mxu0 0.0
    %3549 = vmatprep.subr.mxu0 0.0
    %3550 = vmatpush1.msra.mxu0 0.0
    %3551 = vmatprep.subr.mxu0 0.0
    %3552 = vmatpush1.msra.mxu0 0.0
    %3553 = vmatprep.subr.mxu0 0.0
    %3554 = vmatpush1.msra.mxu0 0.0
    %3555 = vmatprep.subr.mxu0 0.0
    %3556 = vmatpush1.msra.mxu0 0.0
    %3557 = vmatprep.subr.mxu0 0.0
    %3558 = vmatpush1.msra.mxu0 0.0
    %3559 = vmatprep.subr.mxu0 0.0
    %3560 = vmatpush1.msra.mxu0 0.0
    %3561 = vmatprep.subr.mxu0 0.0
    %3562 = vmatpush1.msra.mxu0 0.0
    %3563 = vmatprep.subr.mxu0 0.0
    %3564 = vmatpush1.msra.mxu0 0.0
    %3565 = vmatprep.subr.mxu0 0.0
    %3566 = vmatpush1.msra.mxu0 0.0
    %3567 = vmatprep.subr.mxu0 0.0
    %3568 = vmatpush1.msra.mxu0 0.0
    %3569 = vmatprep.subr.mxu0 0.0
    %3570 = vmatpush1.msra.mxu0 0.0
    %3571 = vmatprep.subr.mxu0 0.0
    %3572 = vmatpush1.msra.mxu0 0.0
    %3573 = vmatprep.subr.mxu0 0.0
    %3574 = vmatpush1.msra.mxu0 0.0
    %3575 = vmatprep.subr.mxu0 0.0
    %3576 = vmatpush1.msra.mxu0 0.0
    %3577 = vmatprep.subr.mxu0 0.0
    %3578 = vmatpush1.msra.mxu0 0.0
    %3579 = vmatprep.subr.mxu0 0.0
    %3580 = vmatpush1.msra.mxu0 0.0
    %3581 = vmatprep.subr.mxu0 0.0
    %3582 = vmatpush1.msra.mxu0 0.0
    %3583 = vmatprep.subr.mxu0 0.0
    %3584 = vmatpush1.msra.mxu0 0.0
    %3585 = vmatprep.subr.mxu0 0.0
    %3586 = vmatpush1.msra.mxu0 0.0
    %3587 = vmatprep.subr.mxu0 0.0
    %3588 = vmatpush1.msra.mxu0 0.0
    %3589 = vmatprep.mubr.f32.mxu0 0.0
    %3590 = vmatmul.mubr.f32.gmra.mrb[0].mxu0 %v3523
    %v3591 = vpop.f32.mrb[0].mxu0
    %v3592 = vadd.f32 0.0, %v3591
    %v3593 = vpop.f32.mrb[0].mxu0
    %v3594 = vadd.f32 0.0, %v3593
    %3595 = vdwg.mxu0
    %3596 = vmatprep.subr.mxu0 %v3515
    %3597 = vmatpush1.msra.mxu0 %v3516
    %3598 = vmatprep.subr.mxu0 0.0
    %3599 = vmatpush1.msra.mxu0 0.0
    %3600 = vmatprep.subr.mxu0 0.0
    %3601 = vmatpush1.msra.mxu0 0.0
    %3602 = vmatprep.subr.mxu0 0.0
    %3603 = vmatpush1.msra.mxu0 0.0
    %3604 = vmatprep.subr.mxu0 0.0
    %3605 = vmatpush1.msra.mxu0 0.0
    %3606 = vmatprep.subr.mxu0 0.0
    %3607 = vmatpush1.msra.mxu0 0.0
    %3608 = vmatprep.subr.mxu0 0.0
    %3609 = vmatpush1.msra.mxu0 0.0
    %3610 = vmatprep.subr.mxu0 0.0
    %3611 = vmatpush1.msra.mxu0 0.0
    %3612 = vmatprep.subr.mxu0 0.0
    %3613 = vmatpush1.msra.mxu0 0.0
    %3614 = vmatprep.subr.mxu0 0.0
    %3615 = vmatpush1.msra.mxu0 0.0
    %3616 = vmatprep.subr.mxu0 0.0
    %3617 = vmatpush1.msra.mxu0 0.0
    %3618 = vmatprep.subr.mxu0 0.0
    %3619 = vmatpush1.msra.mxu0 0.0
    %3620 = vmatprep.subr.mxu0 0.0
    %3621 = vmatpush1.msra.mxu0 0.0
    %3622 = vmatprep.subr.mxu0 0.0
    %3623 = vmatpush1.msra.mxu0 0.0
    %3624 = vmatprep.subr.mxu0 0.0
    %3625 = vmatpush1.msra.mxu0 0.0
    %3626 = vmatprep.subr.mxu0 0.0
    %3627 = vmatpush1.msra.mxu0 0.0
    %3628 = vmatprep.subr.mxu0 0.0
    %3629 = vmatpush1.msra.mxu0 0.0
    %3630 = vmatprep.subr.mxu0 0.0
    %3631 = vmatpush1.msra.mxu0 0.0
    %3632 = vmatprep.subr.mxu0 0.0
    %3633 = vmatpush1.msra.mxu0 0.0
    %3634 = vmatprep.subr.mxu0 0.0
    %3635 = vmatpush1.msra.mxu0 0.0
    %3636 = vmatprep.subr.mxu0 0.0
    %3637 = vmatpush1.msra.mxu0 0.0
    %3638 = vmatprep.subr.mxu0 0.0
    %3639 = vmatpush1.msra.mxu0 0.0
    %3640 = vmatprep.subr.mxu0 0.0
    %3641 = vmatpush1.msra.mxu0 0.0
    %3642 = vmatprep.subr.mxu0 0.0
    %3643 = vmatpush1.msra.mxu0 0.0
    %3644 = vmatprep.subr.mxu0 0.0
    %3645 = vmatpush1.msra.mxu0 0.0
    %3646 = vmatprep.subr.mxu0 0.0
    %3647 = vmatpush1.msra.mxu0 0.0
    %3648 = vmatprep.subr.mxu0 0.0
    %3649 = vmatpush1.msra.mxu0 0.0
    %3650 = vmatprep.subr.mxu0 0.0
    %3651 = vmatpush1.msra.mxu0 0.0
    %3652 = vmatprep.subr.mxu0 0.0
    %3653 = vmatpush1.msra.mxu0 0.0
    %3654 = vmatprep.subr.mxu0 0.0
    %3655 = vmatpush1.msra.mxu0 0.0
    %3656 = vmatprep.subr.mxu0 0.0
    %3657 = vmatpush1.msra.mxu0 0.0
    %3658 = vmatprep.subr.mxu0 0.0
    %3659 = vmatpush1.msra.mxu0 0.0
    %3660 = vmatprep.mubr.f32.mxu0 0.0
    %3661 = vmatmul.mubr.f32.gmra.mrb[0].mxu0 %v3523
    %v3662 = vpop.f32.mrb[0].mxu0
    %v3663 = vadd.f32 0.0, %v3662
    %v3664 = vpop.f32.mrb[0].mxu0
    %v3665 = vadd.f32 0.0, %v3664
    %3666 = vdwg.mxu0
    %3667 = vmatprep.subr.mxu0 %v3519
    %3668 = vmatpush1.msra.mxu0 %v3514
    %3669 = vmatprep.subr.mxu0 0.0
    %3670 = vmatpush1.msra.mxu0 0.0
    %3671 = vmatprep.subr.mxu0 0.0
    %3672 = vmatpush1.msra.mxu0 0.0
    %3673 = vmatprep.subr.mxu0 0.0
    %3674 = vmatpush1.msra.mxu0 0.0
    %3675 = vmatprep.subr.mxu0 0.0
    %3676 = vmatpush1.msra.mxu0 0.0
    %3677 = vmatprep.subr.mxu0 0.0
    %3678 = vmatpush1.msra.mxu0 0.0
    %3679 = vmatprep.subr.mxu0 0.0
    %3680 = vmatpush1.msra.mxu0 0.0
    %3681 = vmatprep.subr.mxu0 0.0
    %3682 = vmatpush1.msra.mxu0 0.0
    %3683 = vmatprep.subr.mxu0 0.0
    %3684 = vmatpush1.msra.mxu0 0.0
    %3685 = vmatprep.subr.mxu0 0.0
    %3686 = vmatpush1.msra.mxu0 0.0
    %3687 = vmatprep.subr.mxu0 0.0
    %3688 = vmatpush1.msra.mxu0 0.0
    %3689 = vmatprep.subr.mxu0 0.0
    %3690 = vmatpush1.msra.mxu0 0.0
    %3691 = vmatprep.subr.mxu0 0.0
    %3692 = vmatpush1.msra.mxu0 0.0
    %3693 = vmatprep.subr.mxu0 0.0
    %3694 = vmatpush1.msra.mxu0 0.0
    %3695 = vmatprep.subr.mxu0 0.0
    %3696 = vmatpush1.msra.mxu0 0.0
    %3697 = vmatprep.subr.mxu0 0.0
    %3698 = vmatpush1.msra.mxu0 0.0
    %3699 = vmatprep.subr.mxu0 0.0
    %3700 = vmatpush1.msra.mxu0 0.0
    %3701 = vmatprep.subr.mxu0 0.0
    %3702 = vmatpush1.msra.mxu0 0.0
    %3703 = vmatprep.subr.mxu0 0.0
    %3704 = vmatpush1.msra.mxu0 0.0
    %3705 = vmatprep.subr.mxu0 0.0
    %3706 = vmatpush1.msra.mxu0 0.0
    %3707 = vmatprep.subr.mxu0 0.0
    %3708 = vmatpush1.msra.mxu0 0.0
    %3709 = vmatprep.subr.mxu0 0.0
    %3710 = vmatpush1.msra.mxu0 0.0
    %3711 = vmatprep.subr.mxu0 0.0
    %3712 = vmatpush1.msra.mxu0 0.0
    %3713 = vmatprep.subr.mxu0 0.0
    %3714 = vmatpush1.msra.mxu0 0.0
    %3715 = vmatprep.subr.mxu0 0.0
    %3716 = vmatpush1.msra.mxu0 0.0
    %3717 = vmatprep.subr.mxu0 0.0
    %3718 = vmatpush1.msra.mxu0 0.0
    %3719 = vmatprep.subr.mxu0 0.0
    %3720 = vmatpush1.msra.mxu0 0.0
    %3721 = vmatprep.subr.mxu0 0.0
    %3722 = vmatpush1.msra.mxu0 0.0
    %3723 = vmatprep.subr.mxu0 0.0
    %3724 = vmatpush1.msra.mxu0 0.0
    %3725 = vmatprep.subr.mxu0 0.0
    %3726 = vmatpush1.msra.mxu0 0.0
    %3727 = vmatprep.subr.mxu0 0.0
    %3728 = vmatpush1.msra.mxu0 0.0
    %3729 = vmatprep.subr.mxu0 0.0
    %3730 = vmatpush1.msra.mxu0 0.0
    %3731 = vmatprep.mubr.f32.mxu0 0.0
    %3732 = vmatmul.mubr.f32.gmra.mrb[0].mxu0 %v3523
    %v3733 = vpop.f32.mrb[0].mxu0
    %v3734 = vadd.f32 0.0, %v3733
    %v3735 = vpop.f32.mrb[0].mxu0
    %v3736 = vadd.f32 0.0, %v3735
    %3737 = vdwg.mxu0
    %v3738 = vadd.f32 %v3496, %v3592
    %v3739 = vadd.f32 %v3497, %v3594
    %v3740 = vadd.f32 %v3498, %v3663
    %v3741 = vadd.f32 %v3499, %v3665
    %v3742 = vadd.f32 %v3500, %v3734
    %v3743 = vadd.f32 %v3501, %v3736
    %3744 = vrot.lane.b32.xlu0 %v2317, 111
    %v3745 = vpop.permute.xlu0 %3744
    %3746 = vrot.lane.b32.xlu0 %v2318, 111
    %v3747 = vpop.permute.xlu0 %3746
    %3748 = vrot.lane.b32.xlu0 %v2319, 111
    %v3749 = vpop.permute.xlu0 %3748
    %3750 = vrot.lane.b32.xlu0 %v2320, 111
    %v3751 = vpop.permute.xlu0 %3750
    %3752 = vrot.lane.b32.xlu0 %v2321, 111
    %v3753 = vpop.permute.xlu0 %3752
    %3754 = vrot.lane.b32.xlu0 %v2322, 111
    %v3755 = vpop.permute.xlu0 %3754
    %v3756 = vsel %vm1483, %v3753, %v3755
    %v3757 = vsel %vm1483, %v3751, %v3753
    %v3758 = vsel %vm1483, %v3749, %v3751
    %v3759 = vsel %vm1483, %v3747, %v3749
    %v3760 = vsel %vm1483, %v3745, %v3747
    %v3761 = vsel %vm1483, %v3755, %v3745
    %s3762 = scalar_lea.vmem %s6, 48
    %v3763 = vld [vmem:[%s3762] sm:$0xff]
    %v3765 = vsel %vm66, %v3763, 0
    %3767 = vmatprep.subr.mxu0 %v3759
    %3768 = vmatpush1.msra.mxu0 %v3760
    %3769 = vmatprep.subr.mxu0 0.0
    %3770 = vmatpush1.msra.mxu0 0.0
    %3771 = vmatprep.subr.mxu0 0.0
    %3772 = vmatpush1.msra.mxu0 0.0
    %3773 = vmatprep.subr.mxu0 0.0
    %3774 = vmatpush1.msra.mxu0 0.0
    %3775 = vmatprep.subr.mxu0 0.0
    %3776 = vmatpush1.msra.mxu0 0.0
    %3777 = vmatprep.subr.mxu0 0.0
    %3778 = vmatpush1.msra.mxu0 0.0
    %3779 = vmatprep.subr.mxu0 0.0
    %3780 = vmatpush1.msra.mxu0 0.0
    %3781 = vmatprep.subr.mxu0 0.0
    %3782 = vmatpush1.msra.mxu0 0.0
    %3783 = vmatprep.subr.mxu0 0.0
    %3784 = vmatpush1.msra.mxu0 0.0
    %3785 = vmatprep.subr.mxu0 0.0
    %3786 = vmatpush1.msra.mxu0 0.0
    %3787 = vmatprep.subr.mxu0 0.0
    %3788 = vmatpush1.msra.mxu0 0.0
    %3789 = vmatprep.subr.mxu0 0.0
    %3790 = vmatpush1.msra.mxu0 0.0
    %3791 = vmatprep.subr.mxu0 0.0
    %3792 = vmatpush1.msra.mxu0 0.0
    %3793 = vmatprep.subr.mxu0 0.0
    %3794 = vmatpush1.msra.mxu0 0.0
    %3795 = vmatprep.subr.mxu0 0.0
    %3796 = vmatpush1.msra.mxu0 0.0
    %3797 = vmatprep.subr.mxu0 0.0
    %3798 = vmatpush1.msra.mxu0 0.0
    %3799 = vmatprep.subr.mxu0 0.0
    %3800 = vmatpush1.msra.mxu0 0.0
    %3801 = vmatprep.subr.mxu0 0.0
    %3802 = vmatpush1.msra.mxu0 0.0
    %3803 = vmatprep.subr.mxu0 0.0
    %3804 = vmatpush1.msra.mxu0 0.0
    %3805 = vmatprep.subr.mxu0 0.0
    %3806 = vmatpush1.msra.mxu0 0.0
    %3807 = vmatprep.subr.mxu0 0.0
    %3808 = vmatpush1.msra.mxu0 0.0
    %3809 = vmatprep.subr.mxu0 0.0
    %3810 = vmatpush1.msra.mxu0 0.0
    %3811 = vmatprep.subr.mxu0 0.0
    %3812 = vmatpush1.msra.mxu0 0.0
    %3813 = vmatprep.subr.mxu0 0.0
    %3814 = vmatpush1.msra.mxu0 0.0
    %3815 = vmatprep.subr.mxu0 0.0
    %3816 = vmatpush1.msra.mxu0 0.0
    %3817 = vmatprep.subr.mxu0 0.0
    %3818 = vmatpush1.msra.mxu0 0.0
    %3819 = vmatprep.subr.mxu0 0.0
    %3820 = vmatpush1.msra.mxu0 0.0
    %3821 = vmatprep.subr.mxu0 0.0
    %3822 = vmatpush1.msra.mxu0 0.0
    %3823 = vmatprep.subr.mxu0 0.0
    %3824 = vmatpush1.msra.mxu0 0.0
    %3825 = vmatprep.subr.mxu0 0.0
    %3826 = vmatpush1.msra.mxu0 0.0
    %3827 = vmatprep.subr.mxu0 0.0
    %3828 = vmatpush1.msra.mxu0 0.0
    %3829 = vmatprep.subr.mxu0 0.0
    %3830 = vmatpush1.msra.mxu0 0.0
    %3831 = vmatprep.mubr.f32.mxu0 0.0
    %3832 = vmatmul.mubr.f32.gmra.mrb[0].mxu0 %v3765
    %v3833 = vpop.f32.mrb[0].mxu0
    %v3834 = vadd.f32 0.0, %v3833
    %v3835 = vpop.f32.mrb[0].mxu0
    %v3836 = vadd.f32 0.0, %v3835
    %3837 = vdwg.mxu0
    %3838 = vmatprep.subr.mxu0 %v3757
    %3839 = vmatpush1.msra.mxu0 %v3758
    %3840 = vmatprep.subr.mxu0 0.0
    %3841 = vmatpush1.msra.mxu0 0.0
    %3842 = vmatprep.subr.mxu0 0.0
    %3843 = vmatpush1.msra.mxu0 0.0
    %3844 = vmatprep.subr.mxu0 0.0
    %3845 = vmatpush1.msra.mxu0 0.0
    %3846 = vmatprep.subr.mxu0 0.0
    %3847 = vmatpush1.msra.mxu0 0.0
    %3848 = vmatprep.subr.mxu0 0.0
    %3849 = vmatpush1.msra.mxu0 0.0
    %3850 = vmatprep.subr.mxu0 0.0
    %3851 = vmatpush1.msra.mxu0 0.0
    %3852 = vmatprep.subr.mxu0 0.0
    %3853 = vmatpush1.msra.mxu0 0.0
    %3854 = vmatprep.subr.mxu0 0.0
    %3855 = vmatpush1.msra.mxu0 0.0
    %3856 = vmatprep.subr.mxu0 0.0
    %3857 = vmatpush1.msra.mxu0 0.0
    %3858 = vmatprep.subr.mxu0 0.0
    %3859 = vmatpush1.msra.mxu0 0.0
    %3860 = vmatprep.subr.mxu0 0.0
    %3861 = vmatpush1.msra.mxu0 0.0
    %3862 = vmatprep.subr.mxu0 0.0
    %3863 = vmatpush1.msra.mxu0 0.0
    %3864 = vmatprep.subr.mxu0 0.0
    %3865 = vmatpush1.msra.mxu0 0.0
    %3866 = vmatprep.subr.mxu0 0.0
    %3867 = vmatpush1.msra.mxu0 0.0
    %3868 = vmatprep.subr.mxu0 0.0
    %3869 = vmatpush1.msra.mxu0 0.0
    %3870 = vmatprep.subr.mxu0 0.0
    %3871 = vmatpush1.msra.mxu0 0.0
    %3872 = vmatprep.subr.mxu0 0.0
    %3873 = vmatpush1.msra.mxu0 0.0
    %3874 = vmatprep.subr.mxu0 0.0
    %3875 = vmatpush1.msra.mxu0 0.0
    %3876 = vmatprep.subr.mxu0 0.0
    %3877 = vmatpush1.msra.mxu0 0.0
    %3878 = vmatprep.subr.mxu0 0.0
    %3879 = vmatpush1.msra.mxu0 0.0
    %3880 = vmatprep.subr.mxu0 0.0
    %3881 = vmatpush1.msra.mxu0 0.0
    %3882 = vmatprep.subr.mxu0 0.0
    %3883 = vmatpush1.msra.mxu0 0.0
    %3884 = vmatprep.subr.mxu0 0.0
    %3885 = vmatpush1.msra.mxu0 0.0
    %3886 = vmatprep.subr.mxu0 0.0
    %3887 = vmatpush1.msra.mxu0 0.0
    %3888 = vmatprep.subr.mxu0 0.0
    %3889 = vmatpush1.msra.mxu0 0.0
    %3890 = vmatprep.subr.mxu0 0.0
    %3891 = vmatpush1.msra.mxu0 0.0
    %3892 = vmatprep.subr.mxu0 0.0
    %3893 = vmatpush1.msra.mxu0 0.0
    %3894 = vmatprep.subr.mxu0 0.0
    %3895 = vmatpush1.msra.mxu0 0.0
    %3896 = vmatprep.subr.mxu0 0.0
    %3897 = vmatpush1.msra.mxu0 0.0
    %3898 = vmatprep.subr.mxu0 0.0
    %3899 = vmatpush1.msra.mxu0 0.0
    %3900 = vmatprep.subr.mxu0 0.0
    %3901 = vmatpush1.msra.mxu0 0.0
    %3902 = vmatprep.mubr.f32.mxu0 0.0
    %3903 = vmatmul.mubr.f32.gmra.mrb[0].mxu0 %v3765
    %v3904 = vpop.f32.mrb[0].mxu0
    %v3905 = vadd.f32 0.0, %v3904
    %v3906 = vpop.f32.mrb[0].mxu0
    %v3907 = vadd.f32 0.0, %v3906
    %3908 = vdwg.mxu0
    %3909 = vmatprep.subr.mxu0 %v3761
    %3910 = vmatpush1.msra.mxu0 %v3756
    %3911 = vmatprep.subr.mxu0 0.0
    %3912 = vmatpush1.msra.mxu0 0.0
    %3913 = vmatprep.subr.mxu0 0.0
    %3914 = vmatpush1.msra.mxu0 0.0
    %3915 = vmatprep.subr.mxu0 0.0
    %3916 = vmatpush1.msra.mxu0 0.0
    %3917 = vmatprep.subr.mxu0 0.0
    %3918 = vmatpush1.msra.mxu0 0.0
    %3919 = vmatprep.subr.mxu0 0.0
    %3920 = vmatpush1.msra.mxu0 0.0
    %3921 = vmatprep.subr.mxu0 0.0
    %3922 = vmatpush1.msra.mxu0 0.0
    %3923 = vmatprep.subr.mxu0 0.0
    %3924 = vmatpush1.msra.mxu0 0.0
    %3925 = vmatprep.subr.mxu0 0.0
    %3926 = vmatpush1.msra.mxu0 0.0
    %3927 = vmatprep.subr.mxu0 0.0
    %3928 = vmatpush1.msra.mxu0 0.0
    %3929 = vmatprep.subr.mxu0 0.0
    %3930 = vmatpush1.msra.mxu0 0.0
    %3931 = vmatprep.subr.mxu0 0.0
    %3932 = vmatpush1.msra.mxu0 0.0
    %3933 = vmatprep.subr.mxu0 0.0
    %3934 = vmatpush1.msra.mxu0 0.0
    %3935 = vmatprep.subr.mxu0 0.0
    %3936 = vmatpush1.msra.mxu0 0.0
    %3937 = vmatprep.subr.mxu0 0.0
    %3938 = vmatpush1.msra.mxu0 0.0
    %3939 = vmatprep.subr.mxu0 0.0
    %3940 = vmatpush1.msra.mxu0 0.0
    %3941 = vmatprep.subr.mxu0 0.0
    %3942 = vmatpush1.msra.mxu0 0.0
    %3943 = vmatprep.subr.mxu0 0.0
    %3944 = vmatpush1.msra.mxu0 0.0
    %3945 = vmatprep.subr.mxu0 0.0
    %3946 = vmatpush1.msra.mxu0 0.0
    %3947 = vmatprep.subr.mxu0 0.0
    %3948 = vmatpush1.msra.mxu0 0.0
    %3949 = vmatprep.subr.mxu0 0.0
    %3950 = vmatpush1.msra.mxu0 0.0
    %3951 = vmatprep.subr.mxu0 0.0
    %3952 = vmatpush1.msra.mxu0 0.0
    %3953 = vmatprep.subr.mxu0 0.0
    %3954 = vmatpush1.msra.mxu0 0.0
    %3955 = vmatprep.subr.mxu0 0.0
    %3956 = vmatpush1.msra.mxu0 0.0
    %3957 = vmatprep.subr.mxu0 0.0
    %3958 = vmatpush1.msra.mxu0 0.0
    %3959 = vmatprep.subr.mxu0 0.0
    %3960 = vmatpush1.msra.mxu0 0.0
    %3961 = vmatprep.subr.mxu0 0.0
    %3962 = vmatpush1.msra.mxu0 0.0
    %3963 = vmatprep.subr.mxu0 0.0
    %3964 = vmatpush1.msra.mxu0 0.0
    %3965 = vmatprep.subr.mxu0 0.0
    %3966 = vmatpush1.msra.mxu0 0.0
    %3967 = vmatprep.subr.mxu0 0.0
    %3968 = vmatpush1.msra.mxu0 0.0
    %3969 = vmatprep.subr.mxu0 0.0
    %3970 = vmatpush1.msra.mxu0 0.0
    %3971 = vmatprep.subr.mxu0 0.0
    %3972 = vmatpush1.msra.mxu0 0.0
    %3973 = vmatprep.mubr.f32.mxu0 0.0
    %3974 = vmatmul.mubr.f32.gmra.mrb[0].mxu0 %v3765
    %v3975 = vpop.f32.mrb[0].mxu0
    %v3976 = vadd.f32 0.0, %v3975
    %v3977 = vpop.f32.mrb[0].mxu0
    %v3978 = vadd.f32 0.0, %v3977
    %3979 = vdwg.mxu0
    %v3980 = vadd.f32 %v3738, %v3834
    %v3981 = vadd.f32 %v3739, %v3836
    %v3982 = vadd.f32 %v3740, %v3905
    %v3983 = vadd.f32 %v3741, %v3907
    %v3984 = vadd.f32 %v3742, %v3976
    %v3985 = vadd.f32 %v3743, %v3978
    %3986 = vrot.lane.b32.xlu0 %v2317, 110
    %v3987 = vpop.permute.xlu0 %3986
    %3988 = vrot.lane.b32.xlu0 %v2318, 110
    %v3989 = vpop.permute.xlu0 %3988
    %3990 = vrot.lane.b32.xlu0 %v2319, 110
    %v3991 = vpop.permute.xlu0 %3990
    %3992 = vrot.lane.b32.xlu0 %v2320, 110
    %v3993 = vpop.permute.xlu0 %3992
    %3994 = vrot.lane.b32.xlu0 %v2321, 110
    %v3995 = vpop.permute.xlu0 %3994
    %3996 = vrot.lane.b32.xlu0 %v2322, 110
    %v3997 = vpop.permute.xlu0 %3996
    %v3998 = vsel %vm1726, %v3995, %v3997
    %v3999 = vsel %vm1726, %v3993, %v3995
    %v4000 = vsel %vm1726, %v3991, %v3993
    %v4001 = vsel %vm1726, %v3989, %v3991
    %v4002 = vsel %vm1726, %v3987, %v3989
    %v4003 = vsel %vm1726, %v3997, %v3987
    %s4004 = scalar_lea.vmem %s6, 56
    %v4005 = vld [vmem:[%s4004] sm:$0xff]
    %v4007 = vsel %vm66, %v4005, 0
    %4009 = vmatprep.subr.mxu0 %v4001
    %4010 = vmatpush1.msra.mxu0 %v4002
    %4011 = vmatprep.subr.mxu0 0.0
    %4012 = vmatpush1.msra.mxu0 0.0
    %4013 = vmatprep.subr.mxu0 0.0
    %4014 = vmatpush1.msra.mxu0 0.0
    %4015 = vmatprep.subr.mxu0 0.0
    %4016 = vmatpush1.msra.mxu0 0.0
    %4017 = vmatprep.subr.mxu0 0.0
    %4018 = vmatpush1.msra.mxu0 0.0
    %4019 = vmatprep.subr.mxu0 0.0
    %4020 = vmatpush1.msra.mxu0 0.0
    %4021 = vmatprep.subr.mxu0 0.0
    %4022 = vmatpush1.msra.mxu0 0.0
    %4023 = vmatprep.subr.mxu0 0.0
    %4024 = vmatpush1.msra.mxu0 0.0
    %4025 = vmatprep.subr.mxu0 0.0
    %4026 = vmatpush1.msra.mxu0 0.0
    %4027 = vmatprep.subr.mxu0 0.0
    %4028 = vmatpush1.msra.mxu0 0.0
    %4029 = vmatprep.subr.mxu0 0.0
    %4030 = vmatpush1.msra.mxu0 0.0
    %4031 = vmatprep.subr.mxu0 0.0
    %4032 = vmatpush1.msra.mxu0 0.0
    %4033 = vmatprep.subr.mxu0 0.0
    %4034 = vmatpush1.msra.mxu0 0.0
    %4035 = vmatprep.subr.mxu0 0.0
    %4036 = vmatpush1.msra.mxu0 0.0
    %4037 = vmatprep.subr.mxu0 0.0
    %4038 = vmatpush1.msra.mxu0 0.0
    %4039 = vmatprep.subr.mxu0 0.0
    %4040 = vmatpush1.msra.mxu0 0.0
    %4041 = vmatprep.subr.mxu0 0.0
    %4042 = vmatpush1.msra.mxu0 0.0
    %4043 = vmatprep.subr.mxu0 0.0
    %4044 = vmatpush1.msra.mxu0 0.0
    %4045 = vmatprep.subr.mxu0 0.0
    %4046 = vmatpush1.msra.mxu0 0.0
    %4047 = vmatprep.subr.mxu0 0.0
    %4048 = vmatpush1.msra.mxu0 0.0
    %4049 = vmatprep.subr.mxu0 0.0
    %4050 = vmatpush1.msra.mxu0 0.0
    %4051 = vmatprep.subr.mxu0 0.0
    %4052 = vmatpush1.msra.mxu0 0.0
    %4053 = vmatprep.subr.mxu0 0.0
    %4054 = vmatpush1.msra.mxu0 0.0
    %4055 = vmatprep.subr.mxu0 0.0
    %4056 = vmatpush1.msra.mxu0 0.0
    %4057 = vmatprep.subr.mxu0 0.0
    %4058 = vmatpush1.msra.mxu0 0.0
    %4059 = vmatprep.subr.mxu0 0.0
    %4060 = vmatpush1.msra.mxu0 0.0
    %4061 = vmatprep.subr.mxu0 0.0
    %4062 = vmatpush1.msra.mxu0 0.0
    %4063 = vmatprep.subr.mxu0 0.0
    %4064 = vmatpush1.msra.mxu0 0.0
    %4065 = vmatprep.subr.mxu0 0.0
    %4066 = vmatpush1.msra.mxu0 0.0
    %4067 = vmatprep.subr.mxu0 0.0
    %4068 = vmatpush1.msra.mxu0 0.0
    %4069 = vmatprep.subr.mxu0 0.0
    %4070 = vmatpush1.msra.mxu0 0.0
    %4071 = vmatprep.subr.mxu0 0.0
    %4072 = vmatpush1.msra.mxu0 0.0
    %4073 = vmatprep.mubr.f32.mxu0 0.0
    %4074 = vmatmul.mubr.f32.gmra.mrb[0].mxu0 %v4007
    %v4075 = vpop.f32.mrb[0].mxu0
    %v4076 = vadd.f32 0.0, %v4075
    %v4077 = vpop.f32.mrb[0].mxu0
    %v4078 = vadd.f32 0.0, %v4077
    %4079 = vdwg.mxu0
    %4080 = vmatprep.subr.mxu0 %v3999
    %4081 = vmatpush1.msra.mxu0 %v4000
    %4082 = vmatprep.subr.mxu0 0.0
    %4083 = vmatpush1.msra.mxu0 0.0
    %4084 = vmatprep.subr.mxu0 0.0
    %4085 = vmatpush1.msra.mxu0 0.0
    %4086 = vmatprep.subr.mxu0 0.0
    %4087 = vmatpush1.msra.mxu0 0.0
    %4088 = vmatprep.subr.mxu0 0.0
    %4089 = vmatpush1.msra.mxu0 0.0
    %4090 = vmatprep.subr.mxu0 0.0
    %4091 = vmatpush1.msra.mxu0 0.0
    %4092 = vmatprep.subr.mxu0 0.0
    %4093 = vmatpush1.msra.mxu0 0.0
    %4094 = vmatprep.subr.mxu0 0.0
    %4095 = vmatpush1.msra.mxu0 0.0
    %4096 = vmatprep.subr.mxu0 0.0
    %4097 = vmatpush1.msra.mxu0 0.0
    %4098 = vmatprep.subr.mxu0 0.0
    %4099 = vmatpush1.msra.mxu0 0.0
    %4100 = vmatprep.subr.mxu0 0.0
    %4101 = vmatpush1.msra.mxu0 0.0
    %4102 = vmatprep.subr.mxu0 0.0
    %4103 = vmatpush1.msra.mxu0 0.0
    %4104 = vmatprep.subr.mxu0 0.0
    %4105 = vmatpush1.msra.mxu0 0.0
    %4106 = vmatprep.subr.mxu0 0.0
    %4107 = vmatpush1.msra.mxu0 0.0
    %4108 = vmatprep.subr.mxu0 0.0
    %4109 = vmatpush1.msra.mxu0 0.0
    %4110 = vmatprep.subr.mxu0 0.0
    %4111 = vmatpush1.msra.mxu0 0.0
    %4112 = vmatprep.subr.mxu0 0.0
    %4113 = vmatpush1.msra.mxu0 0.0
    %4114 = vmatprep.subr.mxu0 0.0
    %4115 = vmatpush1.msra.mxu0 0.0
    %4116 = vmatprep.subr.mxu0 0.0
    %4117 = vmatpush1.msra.mxu0 0.0
    %4118 = vmatprep.subr.mxu0 0.0
    %4119 = vmatpush1.msra.mxu0 0.0
    %4120 = vmatprep.subr.mxu0 0.0
    %4121 = vmatpush1.msra.mxu0 0.0
    %4122 = vmatprep.subr.mxu0 0.0
    %4123 = vmatpush1.msra.mxu0 0.0
    %4124 = vmatprep.subr.mxu0 0.0
    %4125 = vmatpush1.msra.mxu0 0.0
    %4126 = vmatprep.subr.mxu0 0.0
    %4127 = vmatpush1.msra.mxu0 0.0
    %4128 = vmatprep.subr.mxu0 0.0
    %4129 = vmatpush1.msra.mxu0 0.0
    %4130 = vmatprep.subr.mxu0 0.0
    %4131 = vmatpush1.msra.mxu0 0.0
    %4132 = vmatprep.subr.mxu0 0.0
    %4133 = vmatpush1.msra.mxu0 0.0
    %4134 = vmatprep.subr.mxu0 0.0
    %4135 = vmatpush1.msra.mxu0 0.0
    %4136 = vmatprep.subr.mxu0 0.0
    %4137 = vmatpush1.msra.mxu0 0.0
    %4138 = vmatprep.subr.mxu0 0.0
    %4139 = vmatpush1.msra.mxu0 0.0
    %4140 = vmatprep.subr.mxu0 0.0
    %4141 = vmatpush1.msra.mxu0 0.0
    %4142 = vmatprep.subr.mxu0 0.0
    %4143 = vmatpush1.msra.mxu0 0.0
    %4144 = vmatprep.mubr.f32.mxu0 0.0
    %4145 = vmatmul.mubr.f32.gmra.mrb[0].mxu0 %v4007
    %v4146 = vpop.f32.mrb[0].mxu0
    %v4147 = vadd.f32 0.0, %v4146
    %v4148 = vpop.f32.mrb[0].mxu0
    %v4149 = vadd.f32 0.0, %v4148
    %4150 = vdwg.mxu0
    %4151 = vmatprep.subr.mxu0 %v4003
    %4152 = vmatpush1.msra.mxu0 %v3998
    %4153 = vmatprep.subr.mxu0 0.0
    %4154 = vmatpush1.msra.mxu0 0.0
    %4155 = vmatprep.subr.mxu0 0.0
    %4156 = vmatpush1.msra.mxu0 0.0
    %4157 = vmatprep.subr.mxu0 0.0
    %4158 = vmatpush1.msra.mxu0 0.0
    %4159 = vmatprep.subr.mxu0 0.0
    %4160 = vmatpush1.msra.mxu0 0.0
    %4161 = vmatprep.subr.mxu0 0.0
    %4162 = vmatpush1.msra.mxu0 0.0
    %4163 = vmatprep.subr.mxu0 0.0
    %4164 = vmatpush1.msra.mxu0 0.0
    %4165 = vmatprep.subr.mxu0 0.0
    %4166 = vmatpush1.msra.mxu0 0.0
    %4167 = vmatprep.subr.mxu0 0.0
    %4168 = vmatpush1.msra.mxu0 0.0
    %4169 = vmatprep.subr.mxu0 0.0
    %4170 = vmatpush1.msra.mxu0 0.0
    %4171 = vmatprep.subr.mxu0 0.0
    %4172 = vmatpush1.msra.mxu0 0.0
    %4173 = vmatprep.subr.mxu0 0.0
    %4174 = vmatpush1.msra.mxu0 0.0
    %4175 = vmatprep.subr.mxu0 0.0
    %4176 = vmatpush1.msra.mxu0 0.0
    %4177 = vmatprep.subr.mxu0 0.0
    %4178 = vmatpush1.msra.mxu0 0.0
    %4179 = vmatprep.subr.mxu0 0.0
    %4180 = vmatpush1.msra.mxu0 0.0
    %4181 = vmatprep.subr.mxu0 0.0
    %4182 = vmatpush1.msra.mxu0 0.0
    %4183 = vmatprep.subr.mxu0 0.0
    %4184 = vmatpush1.msra.mxu0 0.0
    %4185 = vmatprep.subr.mxu0 0.0
    %4186 = vmatpush1.msra.mxu0 0.0
    %4187 = vmatprep.subr.mxu0 0.0
    %4188 = vmatpush1.msra.mxu0 0.0
    %4189 = vmatprep.subr.mxu0 0.0
    %4190 = vmatpush1.msra.mxu0 0.0
    %4191 = vmatprep.subr.mxu0 0.0
    %4192 = vmatpush1.msra.mxu0 0.0
    %4193 = vmatprep.subr.mxu0 0.0
    %4194 = vmatpush1.msra.mxu0 0.0
    %4195 = vmatprep.subr.mxu0 0.0
    %4196 = vmatpush1.msra.mxu0 0.0
    %4197 = vmatprep.subr.mxu0 0.0
    %4198 = vmatpush1.msra.mxu0 0.0
    %4199 = vmatprep.subr.mxu0 0.0
    %4200 = vmatpush1.msra.mxu0 0.0
    %4201 = vmatprep.subr.mxu0 0.0
    %4202 = vmatpush1.msra.mxu0 0.0
    %4203 = vmatprep.subr.mxu0 0.0
    %4204 = vmatpush1.msra.mxu0 0.0
    %4205 = vmatprep.subr.mxu0 0.0
    %4206 = vmatpush1.msra.mxu0 0.0
    %4207 = vmatprep.subr.mxu0 0.0
    %4208 = vmatpush1.msra.mxu0 0.0
    %4209 = vmatprep.subr.mxu0 0.0
    %4210 = vmatpush1.msra.mxu0 0.0
    %4211 = vmatprep.subr.mxu0 0.0
    %4212 = vmatpush1.msra.mxu0 0.0
    %4213 = vmatprep.subr.mxu0 0.0
    %4214 = vmatpush1.msra.mxu0 0.0
    %4215 = vmatprep.mubr.f32.mxu0 0.0
    %4216 = vmatmul.mubr.f32.gmra.mrb[0].mxu0 %v4007
    %v4217 = vpop.f32.mrb[0].mxu0
    %v4218 = vadd.f32 0.0, %v4217
    %v4219 = vpop.f32.mrb[0].mxu0
    %v4220 = vadd.f32 0.0, %v4219
    %4221 = vdwg.mxu0
    %v4222 = vadd.f32 %v3980, %v4076
    %v4223 = vadd.f32 %v3981, %v4078
    %v4224 = vadd.f32 %v3982, %v4147
    %v4225 = vadd.f32 %v3983, %v4149
    %v4226 = vadd.f32 %v3984, %v4218
    %v4227 = vadd.f32 %v3985, %v4220
    %4228 = vrot.lane.b32.xlu0 %v2317, 109
    %v4229 = vpop.permute.xlu0 %4228
    %4230 = vrot.lane.b32.xlu0 %v2318, 109
    %v4231 = vpop.permute.xlu0 %4230
    %4232 = vrot.lane.b32.xlu0 %v2319, 109
    %v4233 = vpop.permute.xlu0 %4232
    %4234 = vrot.lane.b32.xlu0 %v2320, 109
    %v4235 = vpop.permute.xlu0 %4234
    %4236 = vrot.lane.b32.xlu0 %v2321, 109
    %v4237 = vpop.permute.xlu0 %4236
    %4238 = vrot.lane.b32.xlu0 %v2322, 109
    %v4239 = vpop.permute.xlu0 %4238
    %v4240 = vsel %vm1969, %v4237, %v4239
    %v4241 = vsel %vm1969, %v4235, %v4237
    %v4242 = vsel %vm1969, %v4233, %v4235
    %v4243 = vsel %vm1969, %v4231, %v4233
    %v4244 = vsel %vm1969, %v4229, %v4231
    %v4245 = vsel %vm1969, %v4239, %v4229
    %s4246 = scalar_lea.vmem %s6, 64
    %v4247 = vld [vmem:[%s4246] sm:$0xff]
    %v4249 = vsel %vm66, %v4247, 0
    %4251 = vmatprep.subr.mxu0 %v4243
    %4252 = vmatpush1.msra.mxu0 %v4244
    %4253 = vmatprep.subr.mxu0 0.0
    %4254 = vmatpush1.msra.mxu0 0.0
    %4255 = vmatprep.subr.mxu0 0.0
    %4256 = vmatpush1.msra.mxu0 0.0
    %4257 = vmatprep.subr.mxu0 0.0
    %4258 = vmatpush1.msra.mxu0 0.0
    %4259 = vmatprep.subr.mxu0 0.0
    %4260 = vmatpush1.msra.mxu0 0.0
    %4261 = vmatprep.subr.mxu0 0.0
    %4262 = vmatpush1.msra.mxu0 0.0
    %4263 = vmatprep.subr.mxu0 0.0
    %4264 = vmatpush1.msra.mxu0 0.0
    %4265 = vmatprep.subr.mxu0 0.0
    %4266 = vmatpush1.msra.mxu0 0.0
    %4267 = vmatprep.subr.mxu0 0.0
    %4268 = vmatpush1.msra.mxu0 0.0
    %4269 = vmatprep.subr.mxu0 0.0
    %4270 = vmatpush1.msra.mxu0 0.0
    %4271 = vmatprep.subr.mxu0 0.0
    %4272 = vmatpush1.msra.mxu0 0.0
    %4273 = vmatprep.subr.mxu0 0.0
    %4274 = vmatpush1.msra.mxu0 0.0
    %4275 = vmatprep.subr.mxu0 0.0
    %4276 = vmatpush1.msra.mxu0 0.0
    %4277 = vmatprep.subr.mxu0 0.0
    %4278 = vmatpush1.msra.mxu0 0.0
    %4279 = vmatprep.subr.mxu0 0.0
    %4280 = vmatpush1.msra.mxu0 0.0
    %4281 = vmatprep.subr.mxu0 0.0
    %4282 = vmatpush1.msra.mxu0 0.0
    %4283 = vmatprep.subr.mxu0 0.0
    %4284 = vmatpush1.msra.mxu0 0.0
    %4285 = vmatprep.subr.mxu0 0.0
    %4286 = vmatpush1.msra.mxu0 0.0
    %4287 = vmatprep.subr.mxu0 0.0
    %4288 = vmatpush1.msra.mxu0 0.0
    %4289 = vmatprep.subr.mxu0 0.0
    %4290 = vmatpush1.msra.mxu0 0.0
    %4291 = vmatprep.subr.mxu0 0.0
    %4292 = vmatpush1.msra.mxu0 0.0
    %4293 = vmatprep.subr.mxu0 0.0
    %4294 = vmatpush1.msra.mxu0 0.0
    %4295 = vmatprep.subr.mxu0 0.0
    %4296 = vmatpush1.msra.mxu0 0.0
    %4297 = vmatprep.subr.mxu0 0.0
    %4298 = vmatpush1.msra.mxu0 0.0
    %4299 = vmatprep.subr.mxu0 0.0
    %4300 = vmatpush1.msra.mxu0 0.0
    %4301 = vmatprep.subr.mxu0 0.0
    %4302 = vmatpush1.msra.mxu0 0.0
    %4303 = vmatprep.subr.mxu0 0.0
    %4304 = vmatpush1.msra.mxu0 0.0
    %4305 = vmatprep.subr.mxu0 0.0
    %4306 = vmatpush1.msra.mxu0 0.0
    %4307 = vmatprep.subr.mxu0 0.0
    %4308 = vmatpush1.msra.mxu0 0.0
    %4309 = vmatprep.subr.mxu0 0.0
    %4310 = vmatpush1.msra.mxu0 0.0
    %4311 = vmatprep.subr.mxu0 0.0
    %4312 = vmatpush1.msra.mxu0 0.0
    %4313 = vmatprep.subr.mxu0 0.0
    %4314 = vmatpush1.msra.mxu0 0.0
    %4315 = vmatprep.mubr.f32.mxu0 0.0
    %4316 = vmatmul.mubr.f32.gmra.mrb[0].mxu0 %v4249
    %v4317 = vpop.f32.mrb[0].mxu0
    %v4318 = vadd.f32 0.0, %v4317
    %v4319 = vpop.f32.mrb[0].mxu0
    %v4320 = vadd.f32 0.0, %v4319
    %4321 = vdwg.mxu0
    %4322 = vmatprep.subr.mxu0 %v4241
    %4323 = vmatpush1.msra.mxu0 %v4242
    %4324 = vmatprep.subr.mxu0 0.0
    %4325 = vmatpush1.msra.mxu0 0.0
    %4326 = vmatprep.subr.mxu0 0.0
    %4327 = vmatpush1.msra.mxu0 0.0
    %4328 = vmatprep.subr.mxu0 0.0
    %4329 = vmatpush1.msra.mxu0 0.0
    %4330 = vmatprep.subr.mxu0 0.0
    %4331 = vmatpush1.msra.mxu0 0.0
    %4332 = vmatprep.subr.mxu0 0.0
    %4333 = vmatpush1.msra.mxu0 0.0
    %4334 = vmatprep.subr.mxu0 0.0
    %4335 = vmatpush1.msra.mxu0 0.0
    %4336 = vmatprep.subr.mxu0 0.0
    %4337 = vmatpush1.msra.mxu0 0.0
    %4338 = vmatprep.subr.mxu0 0.0
    %4339 = vmatpush1.msra.mxu0 0.0
    %4340 = vmatprep.subr.mxu0 0.0
    %4341 = vmatpush1.msra.mxu0 0.0
    %4342 = vmatprep.subr.mxu0 0.0
    %4343 = vmatpush1.msra.mxu0 0.0
    %4344 = vmatprep.subr.mxu0 0.0
    %4345 = vmatpush1.msra.mxu0 0.0
    %4346 = vmatprep.subr.mxu0 0.0
    %4347 = vmatpush1.msra.mxu0 0.0
    %4348 = vmatprep.subr.mxu0 0.0
    %4349 = vmatpush1.msra.mxu0 0.0
    %4350 = vmatprep.subr.mxu0 0.0
    %4351 = vmatpush1.msra.mxu0 0.0
    %4352 = vmatprep.subr.mxu0 0.0
    %4353 = vmatpush1.msra.mxu0 0.0
    %4354 = vmatprep.subr.mxu0 0.0
    %4355 = vmatpush1.msra.mxu0 0.0
    %4356 = vmatprep.subr.mxu0 0.0
    %4357 = vmatpush1.msra.mxu0 0.0
    %4358 = vmatprep.subr.mxu0 0.0
    %4359 = vmatpush1.msra.mxu0 0.0
    %4360 = vmatprep.subr.mxu0 0.0
    %4361 = vmatpush1.msra.mxu0 0.0
    %4362 = vmatprep.subr.mxu0 0.0
    %4363 = vmatpush1.msra.mxu0 0.0
    %4364 = vmatprep.subr.mxu0 0.0
    %4365 = vmatpush1.msra.mxu0 0.0
    %4366 = vmatprep.subr.mxu0 0.0
    %4367 = vmatpush1.msra.mxu0 0.0
    %4368 = vmatprep.subr.mxu0 0.0
    %4369 = vmatpush1.msra.mxu0 0.0
    %4370 = vmatprep.subr.mxu0 0.0
    %4371 = vmatpush1.msra.mxu0 0.0
    %4372 = vmatprep.subr.mxu0 0.0
    %4373 = vmatpush1.msra.mxu0 0.0
    %4374 = vmatprep.subr.mxu0 0.0
    %4375 = vmatpush1.msra.mxu0 0.0
    %4376 = vmatprep.subr.mxu0 0.0
    %4377 = vmatpush1.msra.mxu0 0.0
    %4378 = vmatprep.subr.mxu0 0.0
    %4379 = vmatpush1.msra.mxu0 0.0
    %4380 = vmatprep.subr.mxu0 0.0
    %4381 = vmatpush1.msra.mxu0 0.0
    %4382 = vmatprep.subr.mxu0 0.0
    %4383 = vmatpush1.msra.mxu0 0.0
    %4384 = vmatprep.subr.mxu0 0.0
    %4385 = vmatpush1.msra.mxu0 0.0
    %4386 = vmatprep.mubr.f32.mxu0 0.0
    %4387 = vmatmul.mubr.f32.gmra.mrb[0].mxu0 %v4249
    %v4388 = vpop.f32.mrb[0].mxu0
    %v4389 = vadd.f32 0.0, %v4388
    %v4390 = vpop.f32.mrb[0].mxu0
    %v4391 = vadd.f32 0.0, %v4390
    %4392 = vdwg.mxu0
    %4393 = vmatprep.subr.mxu0 %v4245
    %4394 = vmatpush1.msra.mxu0 %v4240
    %4395 = vmatprep.subr.mxu0 0.0
    %4396 = vmatpush1.msra.mxu0 0.0
    %4397 = vmatprep.subr.mxu0 0.0
    %4398 = vmatpush1.msra.mxu0 0.0
    %4399 = vmatprep.subr.mxu0 0.0
    %4400 = vmatpush1.msra.mxu0 0.0
    %4401 = vmatprep.subr.mxu0 0.0
    %4402 = vmatpush1.msra.mxu0 0.0
    %4403 = vmatprep.subr.mxu0 0.0
    %4404 = vmatpush1.msra.mxu0 0.0
    %4405 = vmatprep.subr.mxu0 0.0
    %4406 = vmatpush1.msra.mxu0 0.0
    %4407 = vmatprep.subr.mxu0 0.0
    %4408 = vmatpush1.msra.mxu0 0.0
    %4409 = vmatprep.subr.mxu0 0.0
    %4410 = vmatpush1.msra.mxu0 0.0
    %4411 = vmatprep.subr.mxu0 0.0
    %4412 = vmatpush1.msra.mxu0 0.0
    %4413 = vmatprep.subr.mxu0 0.0
    %4414 = vmatpush1.msra.mxu0 0.0
    %4415 = vmatprep.subr.mxu0 0.0
    %4416 = vmatpush1.msra.mxu0 0.0
    %4417 = vmatprep.subr.mxu0 0.0
    %4418 = vmatpush1.msra.mxu0 0.0
    %4419 = vmatprep.subr.mxu0 0.0
    %4420 = vmatpush1.msra.mxu0 0.0
    %4421 = vmatprep.subr.mxu0 0.0
    %4422 = vmatpush1.msra.mxu0 0.0
    %4423 = vmatprep.subr.mxu0 0.0
    %4424 = vmatpush1.msra.mxu0 0.0
    %4425 = vmatprep.subr.mxu0 0.0
    %4426 = vmatpush1.msra.mxu0 0.0
    %4427 = vmatprep.subr.mxu0 0.0
    %4428 = vmatpush1.msra.mxu0 0.0
    %4429 = vmatprep.subr.mxu0 0.0
    %4430 = vmatpush1.msra.mxu0 0.0
    %4431 = vmatprep.subr.mxu0 0.0
    %4432 = vmatpush1.msra.mxu0 0.0
    %4433 = vmatprep.subr.mxu0 0.0
    %4434 = vmatpush1.msra.mxu0 0.0
    %4435 = vmatprep.subr.mxu0 0.0
    %4436 = vmatpush1.msra.mxu0 0.0
    %4437 = vmatprep.subr.mxu0 0.0
    %4438 = vmatpush1.msra.mxu0 0.0
    %4439 = vmatprep.subr.mxu0 0.0
    %4440 = vmatpush1.msra.mxu0 0.0
    %4441 = vmatprep.subr.mxu0 0.0
    %4442 = vmatpush1.msra.mxu0 0.0
    %4443 = vmatprep.subr.mxu0 0.0
    %4444 = vmatpush1.msra.mxu0 0.0
    %4445 = vmatprep.subr.mxu0 0.0
    %4446 = vmatpush1.msra.mxu0 0.0
    %4447 = vmatprep.subr.mxu0 0.0
    %4448 = vmatpush1.msra.mxu0 0.0
    %4449 = vmatprep.subr.mxu0 0.0
    %4450 = vmatpush1.msra.mxu0 0.0
    %4451 = vmatprep.subr.mxu0 0.0
    %4452 = vmatpush1.msra.mxu0 0.0
    %4453 = vmatprep.subr.mxu0 0.0
    %4454 = vmatpush1.msra.mxu0 0.0
    %4455 = vmatprep.subr.mxu0 0.0
    %4456 = vmatpush1.msra.mxu0 0.0
    %4457 = vmatprep.mubr.f32.mxu0 0.0
    %4458 = vmatmul.mubr.f32.gmra.mrb[0].mxu0 %v4249
    %v4459 = vpop.f32.mrb[0].mxu0
    %v4460 = vadd.f32 0.0, %v4459
    %v4461 = vpop.f32.mrb[0].mxu0
    %v4462 = vadd.f32 0.0, %v4461
    %4463 = vdwg.mxu0
    %v4464 = vadd.f32 %v4222, %v4318
    %v4465 = vadd.f32 %v4223, %v4320
    %v4466 = vadd.f32 %v4224, %v4389
    %v4467 = vadd.f32 %v4225, %v4391
    %v4468 = vadd.f32 %v4226, %v4460
    %v4469 = vadd.f32 %v4227, %v4462
    %v4470 = vmul.f32 %v4464, %v2204
    %v4471 = vmul.f32 %v4465, %v2208
    %v4472 = vmul.f32 %v4466, %v2212
    %v4473 = vmul.f32 %v4467, %v2216
    %v4474 = vmul.f32 %v4468, %v2220
    %v4475 = vmul.f32 %v4469, %v2224
    %v4476 = vadd.f32 %v4470, %v4471
    %v4477 = vadd.f32 %v4476, %v4472
    %v4478 = vadd.f32 %v4477, %v4473
    %v4479 = vadd.f32 %v4478, %v4474
    %v4480 = vadd.f32 %v4479, %v4475
    %4481 = vadd.xlane.f32.xlu0 %v4480
    %v4482 = vpop.xlane.xlu0 %4481
    %v4483 = vmul.f32 %v4482, 0.001953125
    %v4484 = vsub.f32 %v4464, %v4483
    %v4485 = vsub.f32 %v4465, %v4483
    %v4486 = vsub.f32 %v4466, %v4483
    %v4487 = vsub.f32 %v4467, %v4483
    %v4488 = vsub.f32 %v4468, %v4483
    %v4489 = vsub.f32 %v4469, %v4483
    %v4490 = vmul.f32 %v4484, %v2204
    %v4491 = vmul.f32 %v4485, %v2208
    %v4492 = vmul.f32 %v4486, %v2212
    %v4493 = vmul.f32 %v4487, %v2216
    %v4494 = vmul.f32 %v4488, %v2220
    %v4495 = vmul.f32 %v4489, %v2224
    %v4496 = vmul.f32 %v4490, %v4490
    %v4497 = vmul.f32 %v4491, %v4491
    %v4498 = vmul.f32 %v4492, %v4492
    %v4499 = vmul.f32 %v4493, %v4493
    %v4500 = vmul.f32 %v4494, %v4494
    %v4501 = vmul.f32 %v4495, %v4495
    %v4502 = vadd.f32 %v4496, %v4497
    %v4503 = vadd.f32 %v4502, %v4498
    %v4504 = vadd.f32 %v4503, %v4499
    %v4505 = vadd.f32 %v4504, %v4500
    %v4506 = vadd.f32 %v4505, %v4501
    %4507 = vadd.xlane.f32.xlu0 %v4506
    %v4508 = vpop.xlane.xlu0 %4507
    %v4509 = vmul.f32 %v4508, 0.001953125
    %v4510 = vld [vmem:[%s7] sm:$0xff]
    %v4511 = vadd.f32 %v4509, 1e-05
    %v4512 = vrsqrt.pop %v4511
    %v4513 = vmul.f32 %v4510, %v4512
    %4515 = vset.pattern.permute.xlu0 0
    %4516 = vperm.xlu0 %4515, %v4513
    %v4517 = vpop.permute.xlu0 %4516
    %v4519 = vmul.f32 %v4490, %v4517
    %v4520 = vmul.f32 %v4491, %v4517
    %v4521 = vmul.f32 %v4492, %v4517
    %v4522 = vmul.f32 %v4493, %v4517
    %v4523 = vmul.f32 %v4494, %v4517
    %v4524 = vmul.f32 %v4495, %v4517
    %v4525 = vadd.f32 %v34, %v4519
    %v4526 = vadd.f32 %v35, %v4520
    %v4527 = vadd.f32 %v36, %v4521
    %v4528 = vadd.f32 %v37, %v4522
    %v4529 = vadd.f32 %v38, %v4523
    %v4530 = vadd.f32 %v39, %v4524
    %v4531 = vld [vmem:[%s8] sm:$0xff]
    %4533 = vset.pattern.permute.xlu0 0
    %4534 = vperm.xlu0 %4533, %v4531
    %v4535 = vpop.permute.xlu0 %4534
    %v4537 = vadd.f32 %v4525, %v4535
    %v4538 = vadd.f32 %v4526, %v4535
    %v4539 = vadd.f32 %v4527, %v4535
    %v4540 = vadd.f32 %v4528, %v4535
    %v4541 = vadd.f32 %v4529, %v4535
    %v4542 = vadd.f32 %v4530, %v4535
    %4543 = vst [vmem:[#allocation3] sm:$0xff] %v4537
    %4544 = vst [vmem:[#allocation3 + $0x8] sm:$0xff] %v4538
    %4545 = vst [vmem:[#allocation3 + $0x10] sm:$0xff] %v4539
    %4546 = vst [vmem:[#allocation3 + $0x18] sm:$0xff] %v4540
    %4547 = vst [vmem:[#allocation3 + $0x20] sm:$0xff] %v4541
    %4548 = vst [vmem:[#allocation3 + $0x28] sm:$0xff] %v4542
    // Predicated region
    $region38: #{tpu_custom_call.1} parent=1 // pred_check
      _
    $region39: #{tpu_custom_call.1} parent=1 // pred_check_branch
      %4550 = sbr.rel (0) target = $region41
    $region40: #{tpu_custom_call.1} parent=1 // pred_region
      %s4552 = ssub.s32 768, 768
      %4553 = vsyncadd [#allocation4], %s4552
      %s4555 = sshll.u32 [#allocation3], 4
      %s4556 = int_to_ptr.vmem [resolvable:$true] %s4555
      %4558 = dma.vmem_to_hbm [thread:$0]  %s4556, 768, %s9, [#allocation4]
    $region41: #{tpu_custom_call.1} parent=1 // pred_fallthru
      _
    // Predicated region
    $region42: #{tpu_custom_call.1} parent=1 // pred_check
      _
    $region43: #{tpu_custom_call.1} parent=1 // pred_check_branch
      %4560 = sbr.rel (0) target = $region45
    $region44: #{tpu_custom_call.1} parent=1 // pred_region
      %4561 = dma.done [#allocation4], 768
    $region45: #{tpu_custom_call.1} parent=1 // pred_fallthru
      _
    %4562 = vsyncpa [#allocation4], 1

</llo_original>
